<compile_context>
chip_gen: v7x
topology: tpu7x:2x2x1
jax: 0.10.0
libtpu: 0.0.40
codegen_flags: <defaults>
</compile_context>

<pallas_src>
import functools

import jax
import jax.numpy as jnp
from jax.experimental import pallas as pl
from jax.experimental.pallas import tpu as pltpu


def _conv_kernel(x_ref, w_ref, b_ref, y_ref, stats_ref, *, k, stride, h_out, w_out):
    """One batch element: conv + bias, plus per-channel partial BN stats.

    x_ref:     (1, Hp, Wp, Cin)      zero-padded, channels-last
    w_ref:     (k, k, Cin, Cout)
    b_ref:     (1, Cout)
    y_ref:     (1, Hout*Wout, Cout)  conv + bias, f32
    stats_ref: (1, 2, Cout)          [sum, sum-of-squares] over Hout*Wout
    """
    c_in = x_ref.shape[-1]
    c_out = w_ref.shape[-1]
    span_h = (h_out - 1) * stride + 1
    span_w = (w_out - 1) * stride + 1

    acc = jnp.zeros((h_out * w_out, c_out), jnp.float32)
    for ki in range(k):
        for kj in range(k):
            # Static, contiguous window read from VMEM (no strided ref idxers).
            win = x_ref[0, ki:ki + span_h, kj:kj + span_w, :]
            if stride > 1:
                win = win[::stride, ::stride, :]  # value-level subsample
            patch = win.reshape(h_out * w_out, c_in)
            acc = acc + jnp.dot(patch, w_ref[ki, kj],
                                preferred_element_type=jnp.float32)
    acc = acc + b_ref[...].astype(jnp.float32)    # (1, Cout) broadcast

    y_ref[0] = acc
    s = jnp.sum(acc, axis=0, keepdims=True)       # (1, Cout)
    ss = jnp.sum(acc * acc, axis=0, keepdims=True)
    stats_ref[0] = jnp.concatenate([s, ss], axis=0)


def _bn_elu_kernel(y_ref, scale_ref, shift_ref, o_ref):
    """Fused per-channel affine (folded BatchNorm) + ELU(alpha=1)."""
    z = y_ref[0] * scale_ref[...] + shift_ref[...]
    o_ref[0] = jnp.where(z > 0.0, z, jnp.exp(jnp.minimum(z, 0.0)) - 1.0).astype(
        o_ref.dtype)


def conv_block_forward(x, weight, bias, gamma, beta, *, stride=1, eps=1e-5):
    """Equivalent of the PyTorch Conv module forward: pad -> conv -> BN -> ELU."""
    n, c_in, h, w = x.shape
    c_out, c_in_w, k, k2 = weight.shape
    assert c_in == c_in_w and k == k2

    p = (k - 1) // 2                 # int(np.floor((k - 1) / 2))
    hp, wp = h + 2 * p, w + 2 * p
    h_out = (hp - k) // stride + 1
    w_out = (wp - k) // stride + 1
    hw = h_out * w_out

    # Channels-last inside the kernels; zero padding on H/W (F.pad default).
    x_pad = jnp.pad(jnp.transpose(x, (0, 2, 3, 1)),
                    ((0, 0), (p, p), (p, p), (0, 0)))
    w_hwio = jnp.transpose(weight, (2, 3, 1, 0))           # (k, k, Cin, Cout)
    b2 = bias.reshape(1, c_out).astype(jnp.float32)

    conv_call = pl.pallas_call(
        functools.partial(_conv_kernel, k=k, stride=stride,
                          h_out=h_out, w_out=w_out),
        out_shape=(
            jax.ShapeDtypeStruct((n, hw, c_out), jnp.float32),
            jax.ShapeDtypeStruct((n, 2, c_out), jnp.float32),
        ),
        grid=(n,),
        in_specs=[
            pl.BlockSpec((1, hp, wp, c_in), lambda i: (i, 0, 0, 0)),
            pl.BlockSpec((k, k, c_in, c_out), lambda i: (0, 0, 0, 0)),
            pl.BlockSpec((1, c_out), lambda i: (0, 0)),
        ],
        out_specs=(
            pl.BlockSpec((1, hw, c_out), lambda i: (i, 0, 0)),
            pl.BlockSpec((1, 2, c_out), lambda i: (i, 0, 0)),
        ),
        compiler_params=pltpu.CompilerParams(dimension_semantics=("parallel",)),
    )
    y_conv, stats = conv_call(x_pad, w_hwio, b2)

    # Finalize training-mode BatchNorm2d statistics (biased variance) from the
    # per-image partial sums: a tiny (N, 2, Cout) -> (Cout,) reduction in JAX.
    count = n * hw
    gamma_f = gamma.astype(jnp.float32)
    beta_f = beta.astype(jnp.float32)
    mean = jnp.sum(stats[:, 0, :], axis=0) / count
    ex2 = jnp.sum(stats[:, 1, :], axis=0) / count
    var = jnp.maximum(ex2 - mean * mean, 0.0)
    inv_std = jax.lax.rsqrt(var + eps)
    scale = (gamma_f * inv_std).reshape(1, c_out)
    shift = (beta_f - mean * gamma_f * inv_std).reshape(1, c_out)
    # TODO(synk): running_mean/running_var buffer updates (training side effect
    # of nn.BatchNorm2d) are not materialized; only the forward output is.

    bn_call = pl.pallas_call(
        _bn_elu_kernel,
        out_shape=jax.ShapeDtypeStruct((n, hw, c_out), x.dtype),
        grid=(n,),
        in_specs=[
            pl.BlockSpec((1, hw, c_out), lambda i: (i, 0, 0)),
            pl.BlockSpec((1, c_out), lambda i: (0, 0)),
            pl.BlockSpec((1, c_out), lambda i: (0, 0)),
        ],
        out_specs=pl.BlockSpec((1, hw, c_out), lambda i: (i, 0, 0)),
        compiler_params=pltpu.CompilerParams(dimension_semantics=("parallel",)),
    )
    out = bn_call(y_conv, scale, shift)

    # Back to PyTorch's NCHW layout.
    return out.reshape(n, h_out, w_out, c_out).transpose(0, 3, 1, 2)


def _reference_forward(x, weight, bias, gamma, beta, *, stride=1, eps=1e-5):
    """Pure-JAX reference: same pad -> conv -> train-mode BN -> ELU semantics."""
    k = weight.shape[2]
    p = (k - 1) // 2
    x_pad = jnp.pad(x, ((0, 0), (0, 0), (p, p), (p, p)))
    y = jax.lax.conv_general_dilated(
        x_pad, weight, window_strides=(stride, stride), padding="VALID",
        dimension_numbers=("NCHW", "OIHW", "NCHW"),
        precision=jax.lax.Precision.HIGHEST)
    y = y + bias.reshape(1, -1, 1, 1)
    mean = jnp.mean(y, axis=(0, 2, 3), keepdims=True)
    var = jnp.mean(jnp.square(y - mean), axis=(0, 2, 3), keepdims=True)
    yn = (y - mean) * jax.lax.rsqrt(var + eps)
    yn = yn * gamma.reshape(1, -1, 1, 1) + beta.reshape(1, -1, 1, 1)
    return jnp.where(yn > 0.0, yn, jnp.exp(jnp.minimum(yn, 0.0)) - 1.0)


if __name__ == "__main__":
    key = jax.random.PRNGKey(0)
    kx, kw, kb, kg, kbeta = jax.random.split(key, 5)

    batch, c_in, c_out, spatial = 2, 4, 8, 16
    kernel_size, stride = 3, 1

    x = jax.random.normal(kx, (batch, c_in, spatial, spatial), jnp.float32)
    weight = 0.1 * jax.random.normal(
        kw, (c_out, c_in, kernel_size, kernel_size), jnp.float32)
    bias = 0.1 * jax.random.normal(kb, (c_out,), jnp.float32)
    gamma = 1.0 + 0.1 * jax.random.normal(kg, (c_out,), jnp.float32)
    beta = 0.1 * jax.random.normal(kbeta, (c_out,), jnp.float32)

    out = conv_block_forward(x, weight, bias, gamma, beta, stride=stride)
    out = jax.block_until_ready(out)

    ref = _reference_forward(x, weight, bias, gamma, beta, stride=stride)
    assert out.shape == ref.shape, (out.shape, ref.shape)
    max_diff = float(jnp.max(jnp.abs(out - ref)))
    assert jnp.allclose(out, ref, atol=2e-2, rtol=2e-2), (
        f"Pallas Conv block mismatch vs reference, max abs diff={max_diff}")

    print("KERNEL_OK")
</pallas_src>

<mosaic_0001>
module attributes {stable_mosaic.version = 11 : i64} {
  func.func @_conv_kernel(%arg0: i32, %arg1: memref<1x18x18x4xf32, #tpu.memory_space<vmem>>, %arg2: memref<3x3x4x8xf32, #tpu.memory_space<vmem>>, %arg3: memref<1x8xf32, #tpu.memory_space<vmem>>, %arg4: memref<1x256x8xf32, #tpu.memory_space<vmem>>, %arg5: memref<1x2x8xf32, #tpu.memory_space<vmem>>) attributes {dimension_semantics = [#tpu.dimension_semantics<parallel>], iteration_bounds = array<i64: 2>, scalar_prefetch = 0 : i64, scratch_operands = 0 : i64, tpu.core_type = #tpu.core_type<tc>, window_params = [{transform_indices = @transform_0, window_bounds = array<i64: 1, 18, 18, 4>}, {pipeline_mode = #tpu.pipeline_mode<synchronous>, transform_indices = @transform_1, window_bounds = array<i64: 3, 3, 4, 8>}, {pipeline_mode = #tpu.pipeline_mode<synchronous>, transform_indices = @transform_2, window_bounds = array<i64: 1, 8>}, {transform_indices = @transform_3, window_bounds = array<i64: 1, 256, 8>}, {transform_indices = @transform_4, window_bounds = array<i64: 1, 2, 8>}]} {
    %cst = arith.constant 0.000000e+00 : f32
    %0 = vector.broadcast %cst : f32 to vector<256x8xf32>
    %c0 = arith.constant 0 : index
    %c0_0 = arith.constant 0 : index
    %c0_1 = arith.constant 0 : index
    %c0_2 = arith.constant 0 : index
    %1 = vector.load %arg1[%c0, %c0_0, %c0_1, %c0_2] : memref<1x18x18x4xf32, #tpu.memory_space<vmem>>, vector<1x16x16x4xf32>
    %2 = vector.shape_cast %1 : vector<1x16x16x4xf32> to vector<16x16x4xf32>
    %3 = vector.shape_cast %2 : vector<16x16x4xf32> to vector<256x4xf32>
    %c0_3 = arith.constant 0 : index
    %c0_4 = arith.constant 0 : index
    %c0_5 = arith.constant 0 : index
    %c0_6 = arith.constant 0 : index
    %4 = vector.load %arg2[%c0_3, %c0_4, %c0_5, %c0_6] : memref<3x3x4x8xf32, #tpu.memory_space<vmem>>, vector<1x1x4x8xf32>
    %5 = vector.shape_cast %4 : vector<1x1x4x8xf32> to vector<4x8xf32>
    %cst_7 = arith.constant dense<0.000000e+00> : vector<256x8xf32>
    %6 = tpu.matmul %3, %5, %cst_7 {dimension_numbers = #tpu.dot_dimension_numbers<[1], [0], [0], [1], [0, 0, 1, 1], [], []>} : vector<256x4xf32>, vector<4x8xf32>, vector<256x8xf32> -> vector<256x8xf32>
    %7 = arith.addf %0, %6 : vector<256x8xf32>
    %c0_8 = arith.constant 0 : index
    %c0_9 = arith.constant 0 : index
    %c1 = arith.constant 1 : index
    %c0_10 = arith.constant 0 : index
    %8 = vector.load %arg1[%c0_8, %c0_9, %c1, %c0_10] : memref<1x18x18x4xf32, #tpu.memory_space<vmem>>, vector<1x16x16x4xf32>
    %9 = vector.shape_cast %8 : vector<1x16x16x4xf32> to vector<16x16x4xf32>
    %10 = vector.shape_cast %9 : vector<16x16x4xf32> to vector<256x4xf32>
    %c0_11 = arith.constant 0 : index
    %c1_12 = arith.constant 1 : index
    %c0_13 = arith.constant 0 : index
    %c0_14 = arith.constant 0 : index
    %11 = vector.load %arg2[%c0_11, %c1_12, %c0_13, %c0_14] : memref<3x3x4x8xf32, #tpu.memory_space<vmem>>, vector<1x1x4x8xf32>
    %12 = vector.shape_cast %11 : vector<1x1x4x8xf32> to vector<4x8xf32>
    %cst_15 = arith.constant dense<0.000000e+00> : vector<256x8xf32>
    %13 = tpu.matmul %10, %12, %cst_15 {dimension_numbers = #tpu.dot_dimension_numbers<[1], [0], [0], [1], [0, 0, 1, 1], [], []>} : vector<256x4xf32>, vector<4x8xf32>, vector<256x8xf32> -> vector<256x8xf32>
    %14 = arith.addf %7, %13 : vector<256x8xf32>
    %c0_16 = arith.constant 0 : index
    %c0_17 = arith.constant 0 : index
    %c2 = arith.constant 2 : index
    %c0_18 = arith.constant 0 : index
    %15 = vector.load %arg1[%c0_16, %c0_17, %c2, %c0_18] : memref<1x18x18x4xf32, #tpu.memory_space<vmem>>, vector<1x16x16x4xf32>
    %16 = vector.shape_cast %15 : vector<1x16x16x4xf32> to vector<16x16x4xf32>
    %17 = vector.shape_cast %16 : vector<16x16x4xf32> to vector<256x4xf32>
    %c0_19 = arith.constant 0 : index
    %c2_20 = arith.constant 2 : index
    %c0_21 = arith.constant 0 : index
    %c0_22 = arith.constant 0 : index
    %18 = vector.load %arg2[%c0_19, %c2_20, %c0_21, %c0_22] : memref<3x3x4x8xf32, #tpu.memory_space<vmem>>, vector<1x1x4x8xf32>
    %19 = vector.shape_cast %18 : vector<1x1x4x8xf32> to vector<4x8xf32>
    %cst_23 = arith.constant dense<0.000000e+00> : vector<256x8xf32>
    %20 = tpu.matmul %17, %19, %cst_23 {dimension_numbers = #tpu.dot_dimension_numbers<[1], [0], [0], [1], [0, 0, 1, 1], [], []>} : vector<256x4xf32>, vector<4x8xf32>, vector<256x8xf32> -> vector<256x8xf32>
    %21 = arith.addf %14, %20 : vector<256x8xf32>
    %c0_24 = arith.constant 0 : index
    %c1_25 = arith.constant 1 : index
    %c0_26 = arith.constant 0 : index
    %c0_27 = arith.constant 0 : index
    %22 = vector.load %arg1[%c0_24, %c1_25, %c0_26, %c0_27] : memref<1x18x18x4xf32, #tpu.memory_space<vmem>>, vector<1x16x16x4xf32>
    %23 = vector.shape_cast %22 : vector<1x16x16x4xf32> to vector<16x16x4xf32>
    %24 = vector.shape_cast %23 : vector<16x16x4xf32> to vector<256x4xf32>
    %c1_28 = arith.constant 1 : index
    %c0_29 = arith.constant 0 : index
    %c0_30 = arith.constant 0 : index
    %c0_31 = arith.constant 0 : index
    %25 = vector.load %arg2[%c1_28, %c0_29, %c0_30, %c0_31] : memref<3x3x4x8xf32, #tpu.memory_space<vmem>>, vector<1x1x4x8xf32>
    %26 = vector.shape_cast %25 : vector<1x1x4x8xf32> to vector<4x8xf32>
    %cst_32 = arith.constant dense<0.000000e+00> : vector<256x8xf32>
    %27 = tpu.matmul %24, %26, %cst_32 {dimension_numbers = #tpu.dot_dimension_numbers<[1], [0], [0], [1], [0, 0, 1, 1], [], []>} : vector<256x4xf32>, vector<4x8xf32>, vector<256x8xf32> -> vector<256x8xf32>
    %28 = arith.addf %21, %27 : vector<256x8xf32>
    %c0_33 = arith.constant 0 : index
    %c1_34 = arith.constant 1 : index
    %c1_35 = arith.constant 1 : index
    %c0_36 = arith.constant 0 : index
    %29 = vector.load %arg1[%c0_33, %c1_34, %c1_35, %c0_36] : memref<1x18x18x4xf32, #tpu.memory_space<vmem>>, vector<1x16x16x4xf32>
    %30 = vector.shape_cast %29 : vector<1x16x16x4xf32> to vector<16x16x4xf32>
    %31 = vector.shape_cast %30 : vector<16x16x4xf32> to vector<256x4xf32>
    %c1_37 = arith.constant 1 : index
    %c1_38 = arith.constant 1 : index
    %c0_39 = arith.constant 0 : index
    %c0_40 = arith.constant 0 : index
    %32 = vector.load %arg2[%c1_37, %c1_38, %c0_39, %c0_40] : memref<3x3x4x8xf32, #tpu.memory_space<vmem>>, vector<1x1x4x8xf32>
    %33 = vector.shape_cast %32 : vector<1x1x4x8xf32> to vector<4x8xf32>
    %cst_41 = arith.constant dense<0.000000e+00> : vector<256x8xf32>
    %34 = tpu.matmul %31, %33, %cst_41 {dimension_numbers = #tpu.dot_dimension_numbers<[1], [0], [0], [1], [0, 0, 1, 1], [], []>} : vector<256x4xf32>, vector<4x8xf32>, vector<256x8xf32> -> vector<256x8xf32>
    %35 = arith.addf %28, %34 : vector<256x8xf32>
    %c0_42 = arith.constant 0 : index
    %c1_43 = arith.constant 1 : index
    %c2_44 = arith.constant 2 : index
    %c0_45 = arith.constant 0 : index
    %36 = vector.load %arg1[%c0_42, %c1_43, %c2_44, %c0_45] : memref<1x18x18x4xf32, #tpu.memory_space<vmem>>, vector<1x16x16x4xf32>
    %37 = vector.shape_cast %36 : vector<1x16x16x4xf32> to vector<16x16x4xf32>
    %38 = vector.shape_cast %37 : vector<16x16x4xf32> to vector<256x4xf32>
    %c1_46 = arith.constant 1 : index
    %c2_47 = arith.constant 2 : index
    %c0_48 = arith.constant 0 : index
    %c0_49 = arith.constant 0 : index
    %39 = vector.load %arg2[%c1_46, %c2_47, %c0_48, %c0_49] : memref<3x3x4x8xf32, #tpu.memory_space<vmem>>, vector<1x1x4x8xf32>
    %40 = vector.shape_cast %39 : vector<1x1x4x8xf32> to vector<4x8xf32>
    %cst_50 = arith.constant dense<0.000000e+00> : vector<256x8xf32>
    %41 = tpu.matmul %38, %40, %cst_50 {dimension_numbers = #tpu.dot_dimension_numbers<[1], [0], [0], [1], [0, 0, 1, 1], [], []>} : vector<256x4xf32>, vector<4x8xf32>, vector<256x8xf32> -> vector<256x8xf32>
    %42 = arith.addf %35, %41 : vector<256x8xf32>
    %c0_51 = arith.constant 0 : index
    %c2_52 = arith.constant 2 : index
    %c0_53 = arith.constant 0 : index
    %c0_54 = arith.constant 0 : index
    %43 = vector.load %arg1[%c0_51, %c2_52, %c0_53, %c0_54] : memref<1x18x18x4xf32, #tpu.memory_space<vmem>>, vector<1x16x16x4xf32>
    %44 = vector.shape_cast %43 : vector<1x16x16x4xf32> to vector<16x16x4xf32>
    %45 = vector.shape_cast %44 : vector<16x16x4xf32> to vector<256x4xf32>
    %c2_55 = arith.constant 2 : index
    %c0_56 = arith.constant 0 : index
    %c0_57 = arith.constant 0 : index
    %c0_58 = arith.constant 0 : index
    %46 = vector.load %arg2[%c2_55, %c0_56, %c0_57, %c0_58] : memref<3x3x4x8xf32, #tpu.memory_space<vmem>>, vector<1x1x4x8xf32>
    %47 = vector.shape_cast %46 : vector<1x1x4x8xf32> to vector<4x8xf32>
    %cst_59 = arith.constant dense<0.000000e+00> : vector<256x8xf32>
    %48 = tpu.matmul %45, %47, %cst_59 {dimension_numbers = #tpu.dot_dimension_numbers<[1], [0], [0], [1], [0, 0, 1, 1], [], []>} : vector<256x4xf32>, vector<4x8xf32>, vector<256x8xf32> -> vector<256x8xf32>
    %49 = arith.addf %42, %48 : vector<256x8xf32>
    %c0_60 = arith.constant 0 : index
    %c2_61 = arith.constant 2 : index
    %c1_62 = arith.constant 1 : index
    %c0_63 = arith.constant 0 : index
    %50 = vector.load %arg1[%c0_60, %c2_61, %c1_62, %c0_63] : memref<1x18x18x4xf32, #tpu.memory_space<vmem>>, vector<1x16x16x4xf32>
    %51 = vector.shape_cast %50 : vector<1x16x16x4xf32> to vector<16x16x4xf32>
    %52 = vector.shape_cast %51 : vector<16x16x4xf32> to vector<256x4xf32>
    %c2_64 = arith.constant 2 : index
    %c1_65 = arith.constant 1 : index
    %c0_66 = arith.constant 0 : index
    %c0_67 = arith.constant 0 : index
    %53 = vector.load %arg2[%c2_64, %c1_65, %c0_66, %c0_67] : memref<3x3x4x8xf32, #tpu.memory_space<vmem>>, vector<1x1x4x8xf32>
    %54 = vector.shape_cast %53 : vector<1x1x4x8xf32> to vector<4x8xf32>
    %cst_68 = arith.constant dense<0.000000e+00> : vector<256x8xf32>
    %55 = tpu.matmul %52, %54, %cst_68 {dimension_numbers = #tpu.dot_dimension_numbers<[1], [0], [0], [1], [0, 0, 1, 1], [], []>} : vector<256x4xf32>, vector<4x8xf32>, vector<256x8xf32> -> vector<256x8xf32>
    %56 = arith.addf %49, %55 : vector<256x8xf32>
    %c0_69 = arith.constant 0 : index
    %c2_70 = arith.constant 2 : index
    %c2_71 = arith.constant 2 : index
    %c0_72 = arith.constant 0 : index
    %57 = vector.load %arg1[%c0_69, %c2_70, %c2_71, %c0_72] : memref<1x18x18x4xf32, #tpu.memory_space<vmem>>, vector<1x16x16x4xf32>
    %58 = vector.shape_cast %57 : vector<1x16x16x4xf32> to vector<16x16x4xf32>
    %59 = vector.shape_cast %58 : vector<16x16x4xf32> to vector<256x4xf32>
    %c2_73 = arith.constant 2 : index
    %c2_74 = arith.constant 2 : index
    %c0_75 = arith.constant 0 : index
    %c0_76 = arith.constant 0 : index
    %60 = vector.load %arg2[%c2_73, %c2_74, %c0_75, %c0_76] : memref<3x3x4x8xf32, #tpu.memory_space<vmem>>, vector<1x1x4x8xf32>
    %61 = vector.shape_cast %60 : vector<1x1x4x8xf32> to vector<4x8xf32>
    %cst_77 = arith.constant dense<0.000000e+00> : vector<256x8xf32>
    %62 = tpu.matmul %59, %61, %cst_77 {dimension_numbers = #tpu.dot_dimension_numbers<[1], [0], [0], [1], [0, 0, 1, 1], [], []>} : vector<256x4xf32>, vector<4x8xf32>, vector<256x8xf32> -> vector<256x8xf32>
    %63 = arith.addf %56, %62 : vector<256x8xf32>
    %c0_78 = arith.constant 0 : index
    %c0_79 = arith.constant 0 : index
    %64 = vector.load %arg3[%c0_78, %c0_79] : memref<1x8xf32, #tpu.memory_space<vmem>>, vector<1x8xf32>
    %65 = vector.broadcast %64 : vector<1x8xf32> to vector<256x8xf32>
    %66 = arith.addf %63, %65 : vector<256x8xf32>
    %c0_80 = arith.constant 0 : index
    %c0_81 = arith.constant 0 : index
    %c0_82 = arith.constant 0 : index
    %67 = vector.load %arg4[%c0_80, %c0_81, %c0_82] : memref<1x256x8xf32, #tpu.memory_space<vmem>>, vector<1x256x8xf32>
    %68 = vector.shape_cast %67 : vector<1x256x8xf32> to vector<256x8xf32>
    %69 = vector.shape_cast %66 : vector<256x8xf32> to vector<1x256x8xf32>
    tpu.vector_store %arg4[%c0_80, %c0_81, %c0_82], %69 {strides = array<i32>} : memref<1x256x8xf32, #tpu.memory_space<vmem>>, vector<1x256x8xf32>,
    %cst_83 = arith.constant dense<0.000000e+00> : vector<8xf32>
    %70 = vector.multi_reduction <add>, %66, %cst_83 [0] : vector<256x8xf32> to vector<8xf32>
    %71 = vector.shape_cast %70 : vector<8xf32> to vector<1x8xf32>
    %72 = arith.mulf %66, %66 : vector<256x8xf32>
    %cst_84 = arith.constant dense<0.000000e+00> : vector<8xf32>
    %73 = vector.multi_reduction <add>, %72, %cst_84 [0] : vector<256x8xf32> to vector<8xf32>
    %74 = vector.shape_cast %73 : vector<8xf32> to vector<1x8xf32>
    %75 = tpu.concatenate %71, %74 in 0 : vector<1x8xf32>, vector<1x8xf32> -> vector<2x8xf32>
    %c0_85 = arith.constant 0 : index
    %c0_86 = arith.constant 0 : index
    %c0_87 = arith.constant 0 : index
    %76 = vector.load %arg5[%c0_85, %c0_86, %c0_87] : memref<1x2x8xf32, #tpu.memory_space<vmem>>, vector<1x2x8xf32>
    %77 = vector.shape_cast %76 : vector<1x2x8xf32> to vector<2x8xf32>
    %78 = vector.shape_cast %75 : vector<2x8xf32> to vector<1x2x8xf32>
    tpu.vector_store %arg5[%c0_85, %c0_86, %c0_87], %78 {strides = array<i32>} : memref<1x2x8xf32, #tpu.memory_space<vmem>>, vector<1x2x8xf32>,
    return
  }
  func.func @transform_0(%arg0: i32) -> (i32, i32, i32, i32) {
    %c0_i32 = arith.constant 0 : i32
    %c0_i32_0 = arith.constant 0 : i32
    %c0_i32_1 = arith.constant 0 : i32
    %c0_i32_2 = arith.constant 0 : i32
    return %arg0, %c0_i32, %c0_i32_0, %c0_i32_1 : i32, i32, i32, i32
  }
  func.func @transform_1(%arg0: i32) -> (i32, i32, i32, i32) {
    %c0_i32 = arith.constant 0 : i32
    %c0_i32_0 = arith.constant 0 : i32
    %c0_i32_1 = arith.constant 0 : i32
    %c0_i32_2 = arith.constant 0 : i32
    %c0_i32_3 = arith.constant 0 : i32
    return %c0_i32, %c0_i32_0, %c0_i32_1, %c0_i32_2 : i32, i32, i32, i32
  }
  func.func @transform_2(%arg0: i32) -> (i32, i32) {
    %c0_i32 = arith.constant 0 : i32
    %c0_i32_0 = arith.constant 0 : i32
    %c0_i32_1 = arith.constant 0 : i32
    return %c0_i32, %c0_i32_0 : i32, i32
  }
  func.func @transform_3(%arg0: i32) -> (i32, i32, i32) {
    %c0_i32 = arith.constant 0 : i32
    %c0_i32_0 = arith.constant 0 : i32
    %c0_i32_1 = arith.constant 0 : i32
    return %arg0, %c0_i32, %c0_i32_0 : i32, i32, i32
  }
  func.func @transform_4(%arg0: i32) -> (i32, i32, i32) {
    %c0_i32 = arith.constant 0 : i32
    %c0_i32_0 = arith.constant 0 : i32
    %c0_i32_1 = arith.constant 0 : i32
    return %arg0, %c0_i32, %c0_i32_0 : i32, i32, i32
  }
}

</mosaic_0001>

<llo_original>
// kernel: tpu_custom_call.1
$region0: #{tpu_custom_call.1}
  #allocation0 [shape = 'u32[]', space=smem, size = 0x4, offset = 0x4, fixed_abs, tag = 'smem constant byte address 0x4 - core index']
  #allocation1 [shape = 'u32[144,128]{1,0:T(1,128)}', space=vmem, size = 0x12000, scoped, tag = 'internal scratch']
  %s0 = inlined_call_operand.vmem [shape: f32[2,18,18,4], index: 0, kind: input, shape index: {}]
  %s1 = inlined_call_operand.vmem [shape: f32[3,3,4,8], index: 1, kind: input, shape index: {}]
  %s2 = inlined_call_operand.vmem [shape: f32[1,8], index: 2, kind: input, shape index: {}]
  %s3 = inlined_call_operand.vmem [shape: f32[2,256,8], index: 3, kind: output, shape index: {0}]
  %s4 = inlined_call_operand.hbm [shape: f32[2,2,8], index: 4, kind: output, shape index: {1}]
  %5 = xla_tuple %s3, %s4
  %s6 = sld [smem:[#allocation0]]
  $region53: #{tpu_custom_call.1} parent=0
    _
  %s8 = ssub.s32 1, %s6
  %s9 = scalar_select 0, %s8, %s6
  $region1: #{tpu_custom_call.1} parent=0
    #allocation2 [shape = 'u8[2048]{0}', space=vmem, size = 0x800, scoped, tag = 'output window, operand 1']
    #allocation3 [shape = 's32[2]{0}', space=sflag, size = 0x8, scoped, tag = 'scoped memory for tpu_custom_call.1']
    %10 = vsyncpa [#allocation3], 0
    %s11 = scalar_lea.sflag [#allocation3], 1
    %12 = vsyncpa %s11, 0
    loop: start=0, step=1, limit=4
    $region2: #{tpu_custom_call.1} parent=1 // loop_pre_header
      _
    $region3: #{tpu_custom_call.1} parent=1 // loop_header
      %s14 = sphi 0, %s18
      %p15 = scmp.ge.s32.totalorder %s14, 4
      %s24 = sphi 0, %s26
      %s27 = sphi 0, %s24
      %s28 = sphi 0, %s27
      %s44 = sphi 0, %s28
      %s48 = sphi 0, %s48
      %s50 = sphi 0, %s48
      %s51 = sphi 0, %s50
      %s65 = sphi 0, %s51
      %s69 = sphi 0, %s69
      %s71 = sphi 0, %s69
      %s72 = sphi 0, %s71
      %s86 = sphi 0, %s72
      %s92 = sphi 0, %s94
      %s95 = sphi 0, %s92
      %s96 = sphi 0, %s95
      %s112 = sphi 0, %s96
      %s118 = sphi 0, %s120
      %s121 = sphi 0, %s118
      %s122 = sphi 0, %s121
      %s138 = sphi 0, %s122
    $region4: #{tpu_custom_call.1} parent=1 // loop_header_branch
      %17 = sbr.rel (%p15) target = $region8
    $region5: #{tpu_custom_call.1} parent=1 // loop_body
      %s19 = ssub.s32 %s14, 1
      %s20 = ssub.s32 %s14, 2
      %s21 = sadd.s32 %s14, 1
      %s22 = ssub.s32 %s14, %s21
      %p23 = scmp.eq.s32.totalorder %s22, 0
      %s25 = sadd.s32 %s24, 1
      %s26 = scalar_select %p23, %s24, %s25
      %p29 = pneg %p23
      %p30 = scmp.eq.s32.totalorder %s14, 1
      %p31 = por %p29, %p30
      %p32 = scmp.ne.s32.totalorder %s24, %s27
      %p33 = scmp.eq.s32.totalorder %s14, 0
      %p34 = por %p32, %p33
      %p35 = scmp.ne.s32.totalorder %s24, %s27
      %p36 = scmp.eq.s32.totalorder %s19, 1
      %p37 = por %p35, %p36
      %p38 = scmp.ne.s32.totalorder %s27, %s28
      %p39 = scmp.eq.s32.totalorder %s19, 0
      %p40 = por %p38, %p39
      %p41 = scmp.ne.s32.totalorder %s27, %s28
      %p42 = scmp.eq.s32.totalorder %s20, 1
      %p43 = por %p41, %p42
      %p45 = scmp.ne.s32.totalorder %s28, %s44
      %p46 = scmp.eq.s32.totalorder %s20, 0
      %p47 = por %p45, %p46
      %s49 = sadd.s32 %s48, 1
      %p52 = scmp.eq.s32.totalorder %s14, 1
      %p53 = scmp.ne.s32.totalorder %s48, %s50
      %p54 = scmp.eq.s32.totalorder %s14, 0
      %p55 = por %p53, %p54
      %p56 = scmp.ne.s32.totalorder %s48, %s50
      %p57 = scmp.eq.s32.totalorder %s19, 1
      %p58 = por %p56, %p57
      %p59 = scmp.ne.s32.totalorder %s50, %s51
      %p60 = scmp.eq.s32.totalorder %s19, 0
      %p61 = por %p59, %p60
      %p62 = scmp.ne.s32.totalorder %s50, %s51
      %p63 = scmp.eq.s32.totalorder %s20, 1
      %p64 = por %p62, %p63
      %p66 = scmp.ne.s32.totalorder %s51, %s65
      %p67 = scmp.eq.s32.totalorder %s20, 0
      %p68 = por %p66, %p67
      %s70 = sadd.s32 %s69, 1
      %p73 = scmp.eq.s32.totalorder %s14, 1
      %p74 = scmp.ne.s32.totalorder %s69, %s71
      %p75 = scmp.eq.s32.totalorder %s14, 0
      %p76 = por %p74, %p75
      %p77 = scmp.ne.s32.totalorder %s69, %s71
      %p78 = scmp.eq.s32.totalorder %s19, 1
      %p79 = por %p77, %p78
      %p80 = scmp.ne.s32.totalorder %s71, %s72
      %p81 = scmp.eq.s32.totalorder %s19, 0
      %p82 = por %p80, %p81
      %p83 = scmp.ne.s32.totalorder %s71, %s72
      %p84 = scmp.eq.s32.totalorder %s20, 1
      %p85 = por %p83, %p84
      %p87 = scmp.ne.s32.totalorder %s72, %s86
      %p88 = scmp.eq.s32.totalorder %s20, 0
      %p89 = por %p87, %p88
      %s90 = ssub.s32 %s14, %s21
      %p91 = scmp.eq.s32.totalorder %s90, 0
      %s93 = sadd.s32 %s92, 1
      %s94 = scalar_select %p91, %s92, %s93
      %p97 = pneg %p91
      %p98 = scmp.eq.s32.totalorder %s14, 1
      %p99 = por %p97, %p98
      %p100 = scmp.ne.s32.totalorder %s92, %s95
      %p101 = scmp.eq.s32.totalorder %s14, 0
      %p102 = por %p100, %p101
      %p103 = scmp.ne.s32.totalorder %s92, %s95
      %p104 = scmp.eq.s32.totalorder %s19, 1
      %p105 = por %p103, %p104
      %p106 = scmp.ne.s32.totalorder %s95, %s96
      %p107 = scmp.eq.s32.totalorder %s19, 0
      %p108 = por %p106, %p107
      %p109 = scmp.ne.s32.totalorder %s95, %s96
      %p110 = scmp.eq.s32.totalorder %s20, 1
      %p111 = por %p109, %p110
      %p113 = scmp.ne.s32.totalorder %s96, %s112
      %p114 = scmp.eq.s32.totalorder %s20, 0
      %p115 = por %p113, %p114
      %s116 = ssub.s32 %s14, %s21
      %p117 = scmp.eq.s32.totalorder %s116, 0
      %s119 = sadd.s32 %s118, 1
      %s120 = scalar_select %p117, %s118, %s119
      %p123 = pneg %p117
      %p124 = scmp.eq.s32.totalorder %s14, 1
      %p125 = por %p123, %p124
      %p126 = scmp.ne.s32.totalorder %s118, %s121
      %p127 = scmp.eq.s32.totalorder %s14, 0
      %p128 = por %p126, %p127
      %p129 = scmp.ne.s32.totalorder %s118, %s121
      %p130 = scmp.eq.s32.totalorder %s19, 1
      %p131 = por %p129, %p130
      %p132 = scmp.ne.s32.totalorder %s121, %s122
      %p133 = scmp.eq.s32.totalorder %s19, 0
      %p134 = por %p132, %p133
      %p135 = scmp.ne.s32.totalorder %s121, %s122
      %p136 = scmp.eq.s32.totalorder %s20, 1
      %p137 = por %p135, %p136
      %p139 = scmp.ne.s32.totalorder %s122, %s138
      %p140 = scmp.eq.s32.totalorder %s20, 0
      %p141 = por %p139, %p140
      %p142 = scmp.le.s32.totalorder 1, %s14
      %p143 = scmp.lt.s32.totalorder %s14, 3
      %p144 = pnand %p142, %p143
      %p145 = pneg %p144
      // Predicated region
      $region9: #{tpu_custom_call.1} parent=5 // pred_check
        _
      $region10: #{tpu_custom_call.1} parent=5 // pred_check_branch
        %147 = sbr.rel (%p144) target = $region12
      $region11: #{tpu_custom_call.1} parent=5 // pred_region
        %s148 = ssub.s32 %s14, 1
        // Predicated region
        $region13: #{tpu_custom_call.1} parent=11 // pred_check
          %p149 = pneg %p61
        $region14: #{tpu_custom_call.1} parent=11 // pred_check_branch
          %151 = sbr.rel (%p149) target = $region16
        $region15: #{tpu_custom_call.1} parent=11 // pred_region
          _
        $region16: #{tpu_custom_call.1} parent=11 // pred_fallthru
          _
        // Predicated region
        $region17: #{tpu_custom_call.1} parent=11 // pred_check
          %p152 = pneg %p82
        $region18: #{tpu_custom_call.1} parent=11 // pred_check_branch
          %154 = sbr.rel (%p152) target = $region20
        $region19: #{tpu_custom_call.1} parent=11 // pred_region
          _
        $region20: #{tpu_custom_call.1} parent=11 // pred_fallthru
          _
      $region12: #{tpu_custom_call.1} parent=5 // pred_fallthru
        _
      %p155 = scmp.lt.s32.totalorder %s14, 2
      // Predicated region
      $region21: #{tpu_custom_call.1} parent=5 // pred_check
        %p156 = pneg %p155
      $region22: #{tpu_custom_call.1} parent=5 // pred_check_branch
        %158 = sbr.rel (%p156) target = $region24
      $region23: #{tpu_custom_call.1} parent=5 // pred_region
        // Predicated region
        $region25: #{tpu_custom_call.1} parent=23 // pred_check
          %p159 = pneg %p34
        $region26: #{tpu_custom_call.1} parent=23 // pred_check_branch
          %161 = sbr.rel (%p159) target = $region28
        $region27: #{tpu_custom_call.1} parent=23 // pred_region
          %p162 = scmp.lt.s32.totalorder %s14, 1
          %s163 = scalar_select %p162, %s14, 1
          %s164 = smul.addr %s163, 54
          %s165 = smul.addr %s164, 8
          %s166 = scalar_lea.vmem %s0, %s165
        $region28: #{tpu_custom_call.1} parent=23 // pred_fallthru
          _
      $region24: #{tpu_custom_call.1} parent=5 // pred_fallthru
        _
      %p167 = scmp.le.s32.totalorder 1, %s14
      %p168 = scmp.lt.s32.totalorder %s14, 3
      %p169 = pnand %p167, %p168
      %p170 = pneg %p169
      // Predicated region
      $region29: #{tpu_custom_call.1} parent=5 // pred_check
        _
      $region30: #{tpu_custom_call.1} parent=5 // pred_check_branch
        %172 = sbr.rel (%p169) target = $region32
      $region31: #{tpu_custom_call.1} parent=5 // pred_region
        %s173 = ssub.s32 %s14, 1
        %p174 = scmp.lt.s32.totalorder %s19, 1
        %s175 = scalar_select %p174, %s19, 1
        %s176 = smul.addr %s175, 54
        %s177 = smul.addr %s176, 8
        %s178 = scalar_lea.vmem %s0, %s177
        %p179 = pneg %p40
        %p180 = pneg %p37
        %p181 = pneg %p61
        %p182 = pneg %p58
        %p183 = pneg %p82
        %p184 = pneg %p79
        %p185 = pneg %p108
        %p186 = pneg %p105
        %p187 = scmp.lt.s32.totalorder %s19, 1
        %s188 = scalar_select %p187, %s19, 1
        %s189 = smul.addr %s188, 32
        %s190 = smul.addr %s189, 8
        %s191 = scalar_lea.vmem %s3, %s190
        %p192 = pneg %p134
        %p193 = pneg %p131
        %s194 = sand.u32 %s121, 1
        %s195 = scalar_lea.sflag [#allocation3], %s194
        %s196 = sand.u32 %s121, 1
        %s197 = smul.addr %s196, 2
        %s198 = scalar_lea.vmem [#allocation2], %s197
        %p199 = scmp.lt.s32.totalorder %s19, 1
        %s200 = scalar_select %p199, %s19, 1
        %s201 = smul.addr %s200, 54
        %s202 = smul.addr %s201, 8
        %s203 = scalar_lea.vmem %s0, %s202
        %p204 = scmp.lt.s32.totalorder %s19, 1
        %s205 = scalar_select %p204, %s19, 1
        %s206 = smul.addr %s205, 32
        %s207 = smul.addr %s206, 8
        %s208 = scalar_lea.vmem %s3, %s207
        %v209 = vld [vmem:[%s203] sm:$0xff]
        %v210 = vld [vmem:[%s203 + $0x8] sm:$0xff]
        %v211 = vld [vmem:[%s203 + $0x18] sm:$0xff]
        %v212 = vld [vmem:[%s203 + $0x20] sm:$0xff]
        %v213 = vld [vmem:[%s203 + $0x30] sm:$0xff]
        %v214 = vld [vmem:[%s203 + $0x38] sm:$0xff]
        %v215 = vld [vmem:[%s203 + $0x48] sm:$0xff]
        %v216 = vld [vmem:[%s203 + $0x50] sm:$0xff]
        %v217 = vld [vmem:[%s203 + $0x60] sm:$0xff]
        %v218 = vld [vmem:[%s203 + $0x68] sm:$0xff]
        %v219 = vld [vmem:[%s203 + $0x78] sm:$0xff]
        %v220 = vld [vmem:[%s203 + $0x80] sm:$0xff]
        %v221 = vld [vmem:[%s203 + $0x90] sm:$0xff]
        %v222 = vld [vmem:[%s203 + $0x98] sm:$0xff]
        %v223 = vld [vmem:[%s203 + $0xa8] sm:$0xff]
        %v224 = vld [vmem:[%s203 + $0xb0] sm:$0xff]
        %v225 = vld [vmem:[%s203 + $0xc0] sm:$0xff]
        %v226 = vld [vmem:[%s203 + $0xc8] sm:$0xff]
        %v227 = vld [vmem:[%s203 + $0xd8] sm:$0xff]
        %v228 = vld [vmem:[%s203 + $0xe0] sm:$0xff]
        %v229 = vld [vmem:[%s203 + $0xf0] sm:$0xff]
        %v230 = vld [vmem:[%s203 + $0xf8] sm:$0xff]
        %v231 = vld [vmem:[%s203 + $0x108] sm:$0xff]
        %v232 = vld [vmem:[%s203 + $0x110] sm:$0xff]
        %v233 = vld [vmem:[%s203 + $0x120] sm:$0xff]
        %v234 = vld [vmem:[%s203 + $0x128] sm:$0xff]
        %v235 = vld [vmem:[%s203 + $0x138] sm:$0xff]
        %v236 = vld [vmem:[%s203 + $0x140] sm:$0xff]
        %v237 = vld [vmem:[%s203 + $0x150] sm:$0xff]
        %v238 = vld [vmem:[%s203 + $0x158] sm:$0xff]
        %v239 = vld [vmem:[%s203 + $0x168] sm:$0xff]
        %v240 = vld [vmem:[%s203 + $0x170] sm:$0xff]
        %v241 = vld [vmem:[%s1] sm:$0xf]
        %v242 = vld [vmem:[%s203 + $0x1] sm:$0xff]
        %v243 = vld [vmem:[%s203 + $0x9] sm:$0xff]
        %v244 = vld [vmem:[%s203 + $0x19] sm:$0xff]
        %v245 = vld [vmem:[%s203 + $0x21] sm:$0xff]
        %v246 = vld [vmem:[%s203 + $0x31] sm:$0xff]
        %v247 = vld [vmem:[%s203 + $0x39] sm:$0xff]
        %v248 = vld [vmem:[%s203 + $0x49] sm:$0xff]
        %v249 = vld [vmem:[%s203 + $0x51] sm:$0xff]
        %v250 = vld [vmem:[%s203 + $0x61] sm:$0xff]
        %v251 = vld [vmem:[%s203 + $0x69] sm:$0xff]
        %v252 = vld [vmem:[%s203 + $0x79] sm:$0xff]
        %v253 = vld [vmem:[%s203 + $0x81] sm:$0xff]
        %v254 = vld [vmem:[%s203 + $0x91] sm:$0xff]
        %v255 = vld [vmem:[%s203 + $0x99] sm:$0xff]
        %v256 = vld [vmem:[%s203 + $0xa9] sm:$0xff]
        %v257 = vld [vmem:[%s203 + $0xb1] sm:$0xff]
        %v258 = vld [vmem:[%s203 + $0xc1] sm:$0xff]
        %v259 = vld [vmem:[%s203 + $0xc9] sm:$0xff]
        %v260 = vld [vmem:[%s203 + $0xd9] sm:$0xff]
        %v261 = vld [vmem:[%s203 + $0xe1] sm:$0xff]
        %v262 = vld [vmem:[%s203 + $0xf1] sm:$0xff]
        %v263 = vld [vmem:[%s203 + $0xf9] sm:$0xff]
        %v264 = vld [vmem:[%s203 + $0x109] sm:$0xff]
        %v265 = vld [vmem:[%s203 + $0x111] sm:$0xff]
        %v266 = vld [vmem:[%s203 + $0x121] sm:$0xff]
        %v267 = vld [vmem:[%s203 + $0x129] sm:$0xff]
        %v268 = vld [vmem:[%s203 + $0x139] sm:$0xff]
        %v269 = vld [vmem:[%s203 + $0x141] sm:$0xff]
        %v270 = vld [vmem:[%s203 + $0x151] sm:$0xff]
        %v271 = vld [vmem:[%s203 + $0x159] sm:$0xff]
        %v272 = vld [vmem:[%s203 + $0x169] sm:$0xff]
        %v273 = vld [vmem:[%s203 + $0x171] sm:$0xff]
        %s274 = scalar_lea.vmem %s1, 4
        %v275 = vld [vmem:[%s274] sm:$0xf]
        %vm276 = vcmask 31744
        %v278 = vsel %vm276, %v242, 0
        %v281 = vsel %vm276, %v243, 0
        %v284 = vsel %vm276, %v244, 0
        %v287 = vsel %vm276, %v245, 0
        %v290 = vsel %vm276, %v246, 0
        %v293 = vsel %vm276, %v247, 0
        %v296 = vsel %vm276, %v248, 0
        %v299 = vsel %vm276, %v249, 0
        %v302 = vsel %vm276, %v250, 0
        %v305 = vsel %vm276, %v251, 0
        %v308 = vsel %vm276, %v252, 0
        %v311 = vsel %vm276, %v253, 0
        %v314 = vsel %vm276, %v254, 0
        %v317 = vsel %vm276, %v255, 0
        %v320 = vsel %vm276, %v256, 0
        %v323 = vsel %vm276, %v257, 0
        %v326 = vsel %vm276, %v258, 0
        %v329 = vsel %vm276, %v259, 0
        %v332 = vsel %vm276, %v260, 0
        %v335 = vsel %vm276, %v261, 0
        %v338 = vsel %vm276, %v262, 0
        %v341 = vsel %vm276, %v263, 0
        %v344 = vsel %vm276, %v264, 0
        %v347 = vsel %vm276, %v265, 0
        %v350 = vsel %vm276, %v266, 0
        %v353 = vsel %vm276, %v267, 0
        %v356 = vsel %vm276, %v268, 0
        %v359 = vsel %vm276, %v269, 0
        %v362 = vsel %vm276, %v270, 0
        %v365 = vsel %vm276, %v271, 0
        %v368 = vsel %vm276, %v272, 0
        %v371 = vsel %vm276, %v273, 0
        %vm373 = vcmask 1043456
        %v375 = vsel %vm373, %v275, 0
        %377 = vmatprep.subr.mxu0 0.0
        %378 = vmatpush1.msra.mxu0 %v375
        %379 = vmatprep.subr.mxu0 0.0
        %380 = vmatpush1.msra.mxu0 0.0
        %381 = vmatprep.subr.mxu0 0.0
        %382 = vmatpush1.msra.mxu0 0.0
        %383 = vmatprep.subr.mxu0 0.0
        %384 = vmatpush1.msra.mxu0 0.0
        %385 = vmatprep.subr.mxu0 0.0
        %386 = vmatpush1.msra.mxu0 0.0
        %387 = vmatprep.subr.mxu0 0.0
        %388 = vmatpush1.msra.mxu0 0.0
        %389 = vmatprep.subr.mxu0 0.0
        %390 = vmatpush1.msra.mxu0 0.0
        %391 = vmatprep.subr.mxu0 0.0
        %392 = vmatpush1.msra.mxu0 0.0
        %393 = vmatprep.subr.mxu0 0.0
        %394 = vmatpush1.msra.mxu0 0.0
        %395 = vmatprep.subr.mxu0 0.0
        %396 = vmatpush1.msra.mxu0 0.0
        %397 = vmatprep.subr.mxu0 0.0
        %398 = vmatpush1.msra.mxu0 0.0
        %399 = vmatprep.subr.mxu0 0.0
        %400 = vmatpush1.msra.mxu0 0.0
        %401 = vmatprep.subr.mxu0 0.0
        %402 = vmatpush1.msra.mxu0 0.0
        %403 = vmatprep.subr.mxu0 0.0
        %404 = vmatpush1.msra.mxu0 0.0
        %405 = vmatprep.subr.mxu0 0.0
        %406 = vmatpush1.msra.mxu0 0.0
        %407 = vmatprep.subr.mxu0 0.0
        %408 = vmatpush1.msra.mxu0 0.0
        %409 = vmatprep.subr.mxu0 0.0
        %410 = vmatpush1.msra.mxu0 0.0
        %411 = vmatprep.subr.mxu0 0.0
        %412 = vmatpush1.msra.mxu0 0.0
        %413 = vmatprep.subr.mxu0 0.0
        %414 = vmatpush1.msra.mxu0 0.0
        %415 = vmatprep.subr.mxu0 0.0
        %416 = vmatpush1.msra.mxu0 0.0
        %417 = vmatprep.subr.mxu0 0.0
        %418 = vmatpush1.msra.mxu0 0.0
        %419 = vmatprep.subr.mxu0 0.0
        %420 = vmatpush1.msra.mxu0 0.0
        %421 = vmatprep.subr.mxu0 0.0
        %422 = vmatpush1.msra.mxu0 0.0
        %423 = vmatprep.subr.mxu0 0.0
        %424 = vmatpush1.msra.mxu0 0.0
        %425 = vmatprep.subr.mxu0 0.0
        %426 = vmatpush1.msra.mxu0 0.0
        %427 = vmatprep.subr.mxu0 0.0
        %428 = vmatpush1.msra.mxu0 0.0
        %429 = vmatprep.subr.mxu0 0.0
        %430 = vmatpush1.msra.mxu0 0.0
        %431 = vmatprep.subr.mxu0 0.0
        %432 = vmatpush1.msra.mxu0 0.0
        %433 = vmatprep.subr.mxu0 0.0
        %434 = vmatpush1.msra.mxu0 0.0
        %435 = vmatprep.subr.mxu0 0.0
        %436 = vmatpush1.msra.mxu0 0.0
        %437 = vmatprep.subr.mxu0 0.0
        %438 = vmatpush1.msra.mxu0 0.0
        %439 = vmatprep.subr.mxu0 0.0
        %440 = vmatpush1.msra.mxu0 0.0
        %441 = vmatprep.mubr.f32.mxu0 0.0
        %442 = vmatmul.mubr.f32.gmra.mrb[0].mxu0 %v278
        %v443 = vpop.f32.mrb[0].mxu0
        %v444 = vadd.f32 0.0, %v443
        %v445 = vpop.f32.mrb[0].mxu0
        %446 = vmatprep.mubr.f32.mxu0 0.0
        %447 = vmatmul.mubr.f32.gmra.mrb[0].mxu0 %v281
        %v448 = vpop.f32.mrb[0].mxu0
        %v449 = vadd.f32 0.0, %v448
        %v450 = vpop.f32.mrb[0].mxu0
        %451 = vmatprep.mubr.f32.mxu0 0.0
        %452 = vmatmul.mubr.f32.gmra.mrb[0].mxu0 %v284
        %v453 = vpop.f32.mrb[0].mxu0
        %v454 = vadd.f32 0.0, %v453
        %v455 = vpop.f32.mrb[0].mxu0
        %456 = vmatprep.mubr.f32.mxu0 0.0
        %457 = vmatmul.mubr.f32.gmra.mrb[0].mxu0 %v287
        %v458 = vpop.f32.mrb[0].mxu0
        %v459 = vadd.f32 0.0, %v458
        %v460 = vpop.f32.mrb[0].mxu0
        %461 = vmatprep.mubr.f32.mxu0 0.0
        %462 = vmatmul.mubr.f32.gmra.mrb[0].mxu0 %v290
        %v463 = vpop.f32.mrb[0].mxu0
        %v464 = vadd.f32 0.0, %v463
        %v465 = vpop.f32.mrb[0].mxu0
        %466 = vmatprep.mubr.f32.mxu0 0.0
        %467 = vmatmul.mubr.f32.gmra.mrb[0].mxu0 %v293
        %v468 = vpop.f32.mrb[0].mxu0
        %v469 = vadd.f32 0.0, %v468
        %v470 = vpop.f32.mrb[0].mxu0
        %471 = vmatprep.mubr.f32.mxu0 0.0
        %472 = vmatmul.mubr.f32.gmra.mrb[0].mxu0 %v296
        %v473 = vpop.f32.mrb[0].mxu0
        %v474 = vadd.f32 0.0, %v473
        %v475 = vpop.f32.mrb[0].mxu0
        %476 = vmatprep.mubr.f32.mxu0 0.0
        %477 = vmatmul.mubr.f32.gmra.mrb[0].mxu0 %v299
        %v478 = vpop.f32.mrb[0].mxu0
        %v479 = vadd.f32 0.0, %v478
        %v480 = vpop.f32.mrb[0].mxu0
        %481 = vmatprep.mubr.f32.mxu0 0.0
        %482 = vmatmul.mubr.f32.gmra.mrb[0].mxu0 %v302
        %v483 = vpop.f32.mrb[0].mxu0
        %v484 = vadd.f32 0.0, %v483
        %v485 = vpop.f32.mrb[0].mxu0
        %486 = vmatprep.mubr.f32.mxu0 0.0
        %487 = vmatmul.mubr.f32.gmra.mrb[0].mxu0 %v305
        %v488 = vpop.f32.mrb[0].mxu0
        %v489 = vadd.f32 0.0, %v488
        %v490 = vpop.f32.mrb[0].mxu0
        %491 = vmatprep.mubr.f32.mxu0 0.0
        %492 = vmatmul.mubr.f32.gmra.mrb[0].mxu0 %v308
        %v493 = vpop.f32.mrb[0].mxu0
        %v494 = vadd.f32 0.0, %v493
        %v495 = vpop.f32.mrb[0].mxu0
        %496 = vmatprep.mubr.f32.mxu0 0.0
        %497 = vmatmul.mubr.f32.gmra.mrb[0].mxu0 %v311
        %v498 = vpop.f32.mrb[0].mxu0
        %v499 = vadd.f32 0.0, %v498
        %v500 = vpop.f32.mrb[0].mxu0
        %501 = vmatprep.mubr.f32.mxu0 0.0
        %502 = vmatmul.mubr.f32.gmra.mrb[0].mxu0 %v314
        %v503 = vpop.f32.mrb[0].mxu0
        %v504 = vadd.f32 0.0, %v503
        %v505 = vpop.f32.mrb[0].mxu0
        %506 = vmatprep.mubr.f32.mxu0 0.0
        %507 = vmatmul.mubr.f32.gmra.mrb[0].mxu0 %v317
        %v508 = vpop.f32.mrb[0].mxu0
        %v509 = vadd.f32 0.0, %v508
        %v510 = vpop.f32.mrb[0].mxu0
        %511 = vmatprep.mubr.f32.mxu0 0.0
        %512 = vmatmul.mubr.f32.gmra.mrb[0].mxu0 %v320
        %v513 = vpop.f32.mrb[0].mxu0
        %v514 = vadd.f32 0.0, %v513
        %v515 = vpop.f32.mrb[0].mxu0
        %516 = vmatprep.mubr.f32.mxu0 0.0
        %517 = vmatmul.mubr.f32.gmra.mrb[0].mxu0 %v323
        %v518 = vpop.f32.mrb[0].mxu0
        %v519 = vadd.f32 0.0, %v518
        %v520 = vpop.f32.mrb[0].mxu0
        %521 = vmatprep.mubr.f32.mxu0 0.0
        %522 = vmatmul.mubr.f32.gmra.mrb[0].mxu0 %v326
        %v523 = vpop.f32.mrb[0].mxu0
        %v524 = vadd.f32 0.0, %v523
        %v525 = vpop.f32.mrb[0].mxu0
        %526 = vmatprep.mubr.f32.mxu0 0.0
        %527 = vmatmul.mubr.f32.gmra.mrb[0].mxu0 %v329
        %v528 = vpop.f32.mrb[0].mxu0
        %v529 = vadd.f32 0.0, %v528
        %v530 = vpop.f32.mrb[0].mxu0
        %531 = vmatprep.mubr.f32.mxu0 0.0
        %532 = vmatmul.mubr.f32.gmra.mrb[0].mxu0 %v332
        %v533 = vpop.f32.mrb[0].mxu0
        %v534 = vadd.f32 0.0, %v533
        %v535 = vpop.f32.mrb[0].mxu0
        %536 = vmatprep.mubr.f32.mxu0 0.0
        %537 = vmatmul.mubr.f32.gmra.mrb[0].mxu0 %v335
        %v538 = vpop.f32.mrb[0].mxu0
        %v539 = vadd.f32 0.0, %v538
        %v540 = vpop.f32.mrb[0].mxu0
        %541 = vmatprep.mubr.f32.mxu0 0.0
        %542 = vmatmul.mubr.f32.gmra.mrb[0].mxu0 %v338
        %v543 = vpop.f32.mrb[0].mxu0
        %v544 = vadd.f32 0.0, %v543
        %v545 = vpop.f32.mrb[0].mxu0
        %546 = vmatprep.mubr.f32.mxu0 0.0
        %547 = vmatmul.mubr.f32.gmra.mrb[0].mxu0 %v341
        %v548 = vpop.f32.mrb[0].mxu0
        %v549 = vadd.f32 0.0, %v548
        %v550 = vpop.f32.mrb[0].mxu0
        %551 = vmatprep.mubr.f32.mxu0 0.0
        %552 = vmatmul.mubr.f32.gmra.mrb[0].mxu0 %v344
        %v553 = vpop.f32.mrb[0].mxu0
        %v554 = vadd.f32 0.0, %v553
        %v555 = vpop.f32.mrb[0].mxu0
        %556 = vmatprep.mubr.f32.mxu0 0.0
        %557 = vmatmul.mubr.f32.gmra.mrb[0].mxu0 %v347
        %v558 = vpop.f32.mrb[0].mxu0
        %v559 = vadd.f32 0.0, %v558
        %v560 = vpop.f32.mrb[0].mxu0
        %561 = vmatprep.mubr.f32.mxu0 0.0
        %562 = vmatmul.mubr.f32.gmra.mrb[0].mxu0 %v350
        %v563 = vpop.f32.mrb[0].mxu0
        %v564 = vadd.f32 0.0, %v563
        %v565 = vpop.f32.mrb[0].mxu0
        %566 = vmatprep.mubr.f32.mxu0 0.0
        %567 = vmatmul.mubr.f32.gmra.mrb[0].mxu0 %v353
        %v568 = vpop.f32.mrb[0].mxu0
        %v569 = vadd.f32 0.0, %v568
        %v570 = vpop.f32.mrb[0].mxu0
        %571 = vmatprep.mubr.f32.mxu0 0.0
        %572 = vmatmul.mubr.f32.gmra.mrb[0].mxu0 %v356
        %v573 = vpop.f32.mrb[0].mxu0
        %v574 = vadd.f32 0.0, %v573
        %v575 = vpop.f32.mrb[0].mxu0
        %576 = vmatprep.mubr.f32.mxu0 0.0
        %577 = vmatmul.mubr.f32.gmra.mrb[0].mxu0 %v359
        %v578 = vpop.f32.mrb[0].mxu0
        %v579 = vadd.f32 0.0, %v578
        %v580 = vpop.f32.mrb[0].mxu0
        %581 = vmatprep.mubr.f32.mxu0 0.0
        %582 = vmatmul.mubr.f32.gmra.mrb[0].mxu0 %v362
        %v583 = vpop.f32.mrb[0].mxu0
        %v584 = vadd.f32 0.0, %v583
        %v585 = vpop.f32.mrb[0].mxu0
        %586 = vmatprep.mubr.f32.mxu0 0.0
        %587 = vmatmul.mubr.f32.gmra.mrb[0].mxu0 %v365
        %v588 = vpop.f32.mrb[0].mxu0
        %v589 = vadd.f32 0.0, %v588
        %v590 = vpop.f32.mrb[0].mxu0
        %591 = vmatprep.mubr.f32.mxu0 0.0
        %592 = vmatmul.mubr.f32.gmra.mrb[0].mxu0 %v368
        %v593 = vpop.f32.mrb[0].mxu0
        %v594 = vadd.f32 0.0, %v593
        %v595 = vpop.f32.mrb[0].mxu0
        %596 = vmatprep.mubr.f32.mxu0 0.0
        %597 = vmatmul.mubr.f32.gmra.mrb[0].mxu0 %v371
        %v598 = vpop.f32.mrb[0].mxu0
        %v599 = vadd.f32 0.0, %v598
        %v600 = vpop.f32.mrb[0].mxu0
        %601 = vdwg.mxu0
        %v603 = vsel %vm276, %v209, 0
        %v606 = vsel %vm276, %v210, 0
        %v609 = vsel %vm276, %v211, 0
        %v612 = vsel %vm276, %v212, 0
        %v615 = vsel %vm276, %v213, 0
        %v618 = vsel %vm276, %v214, 0
        %v621 = vsel %vm276, %v215, 0
        %v624 = vsel %vm276, %v216, 0
        %v627 = vsel %vm276, %v217, 0
        %v630 = vsel %vm276, %v218, 0
        %v633 = vsel %vm276, %v219, 0
        %v636 = vsel %vm276, %v220, 0
        %v639 = vsel %vm276, %v221, 0
        %v642 = vsel %vm276, %v222, 0
        %v645 = vsel %vm276, %v223, 0
        %v648 = vsel %vm276, %v224, 0
        %v651 = vsel %vm276, %v225, 0
        %v654 = vsel %vm276, %v226, 0
        %v657 = vsel %vm276, %v227, 0
        %v660 = vsel %vm276, %v228, 0
        %v663 = vsel %vm276, %v229, 0
        %v666 = vsel %vm276, %v230, 0
        %v669 = vsel %vm276, %v231, 0
        %v672 = vsel %vm276, %v232, 0
        %v675 = vsel %vm276, %v233, 0
        %v678 = vsel %vm276, %v234, 0
        %v681 = vsel %vm276, %v235, 0
        %v684 = vsel %vm276, %v236, 0
        %v687 = vsel %vm276, %v237, 0
        %v690 = vsel %vm276, %v238, 0
        %v693 = vsel %vm276, %v239, 0
        %v696 = vsel %vm276, %v240, 0
        %v699 = vsel %vm373, %v241, 0
        %701 = vmatprep.subr.mxu0 0.0
        %702 = vmatpush1.msra.mxu0 %v699
        %703 = vmatprep.subr.mxu0 0.0
        %704 = vmatpush1.msra.mxu0 0.0
        %705 = vmatprep.subr.mxu0 0.0
        %706 = vmatpush1.msra.mxu0 0.0
        %707 = vmatprep.subr.mxu0 0.0
        %708 = vmatpush1.msra.mxu0 0.0
        %709 = vmatprep.subr.mxu0 0.0
        %710 = vmatpush1.msra.mxu0 0.0
        %711 = vmatprep.subr.mxu0 0.0
        %712 = vmatpush1.msra.mxu0 0.0
        %713 = vmatprep.subr.mxu0 0.0
        %714 = vmatpush1.msra.mxu0 0.0
        %715 = vmatprep.subr.mxu0 0.0
        %716 = vmatpush1.msra.mxu0 0.0
        %717 = vmatprep.subr.mxu0 0.0
        %718 = vmatpush1.msra.mxu0 0.0
        %719 = vmatprep.subr.mxu0 0.0
        %720 = vmatpush1.msra.mxu0 0.0
        %721 = vmatprep.subr.mxu0 0.0
        %722 = vmatpush1.msra.mxu0 0.0
        %723 = vmatprep.subr.mxu0 0.0
        %724 = vmatpush1.msra.mxu0 0.0
        %725 = vmatprep.subr.mxu0 0.0
        %726 = vmatpush1.msra.mxu0 0.0
        %727 = vmatprep.subr.mxu0 0.0
        %728 = vmatpush1.msra.mxu0 0.0
        %729 = vmatprep.subr.mxu0 0.0
        %730 = vmatpush1.msra.mxu0 0.0
        %731 = vmatprep.subr.mxu0 0.0
        %732 = vmatpush1.msra.mxu0 0.0
        %733 = vmatprep.subr.mxu0 0.0
        %734 = vmatpush1.msra.mxu0 0.0
        %735 = vmatprep.subr.mxu0 0.0
        %736 = vmatpush1.msra.mxu0 0.0
        %737 = vmatprep.subr.mxu0 0.0
        %738 = vmatpush1.msra.mxu0 0.0
        %739 = vmatprep.subr.mxu0 0.0
        %740 = vmatpush1.msra.mxu0 0.0
        %741 = vmatprep.subr.mxu0 0.0
        %742 = vmatpush1.msra.mxu0 0.0
        %743 = vmatprep.subr.mxu0 0.0
        %744 = vmatpush1.msra.mxu0 0.0
        %745 = vmatprep.subr.mxu0 0.0
        %746 = vmatpush1.msra.mxu0 0.0
        %747 = vmatprep.subr.mxu0 0.0
        %748 = vmatpush1.msra.mxu0 0.0
        %749 = vmatprep.subr.mxu0 0.0
        %750 = vmatpush1.msra.mxu0 0.0
        %751 = vmatprep.subr.mxu0 0.0
        %752 = vmatpush1.msra.mxu0 0.0
        %753 = vmatprep.subr.mxu0 0.0
        %754 = vmatpush1.msra.mxu0 0.0
        %755 = vmatprep.subr.mxu0 0.0
        %756 = vmatpush1.msra.mxu0 0.0
        %757 = vmatprep.subr.mxu0 0.0
        %758 = vmatpush1.msra.mxu0 0.0
        %759 = vmatprep.subr.mxu0 0.0
        %760 = vmatpush1.msra.mxu0 0.0
        %761 = vmatprep.subr.mxu0 0.0
        %762 = vmatpush1.msra.mxu0 0.0
        %763 = vmatprep.subr.mxu0 0.0
        %764 = vmatpush1.msra.mxu0 0.0
        %765 = vmatprep.mubr.f32.mxu0 0.0
        %766 = vmatmul.mubr.f32.gmra.mrb[0].mxu0 %v603
        %v767 = vpop.f32.mrb[0].mxu0
        %v768 = vadd.f32 %v444, %v767
        %v769 = vpop.f32.mrb[0].mxu0
        %770 = vmatprep.mubr.f32.mxu0 0.0
        %771 = vmatmul.mubr.f32.gmra.mrb[0].mxu0 %v606
        %v772 = vpop.f32.mrb[0].mxu0
        %v773 = vadd.f32 %v449, %v772
        %v774 = vpop.f32.mrb[0].mxu0
        %775 = vmatprep.mubr.f32.mxu0 0.0
        %776 = vmatmul.mubr.f32.gmra.mrb[0].mxu0 %v609
        %v777 = vpop.f32.mrb[0].mxu0
        %v778 = vadd.f32 %v454, %v777
        %v779 = vpop.f32.mrb[0].mxu0
        %780 = vmatprep.mubr.f32.mxu0 0.0
        %781 = vmatmul.mubr.f32.gmra.mrb[0].mxu0 %v612
        %v782 = vpop.f32.mrb[0].mxu0
        %v783 = vadd.f32 %v459, %v782
        %v784 = vpop.f32.mrb[0].mxu0
        %785 = vmatprep.mubr.f32.mxu0 0.0
        %786 = vmatmul.mubr.f32.gmra.mrb[0].mxu0 %v615
        %v787 = vpop.f32.mrb[0].mxu0
        %v788 = vadd.f32 %v464, %v787
        %v789 = vpop.f32.mrb[0].mxu0
        %790 = vmatprep.mubr.f32.mxu0 0.0
        %791 = vmatmul.mubr.f32.gmra.mrb[0].mxu0 %v618
        %v792 = vpop.f32.mrb[0].mxu0
        %v793 = vadd.f32 %v469, %v792
        %v794 = vpop.f32.mrb[0].mxu0
        %795 = vmatprep.mubr.f32.mxu0 0.0
        %796 = vmatmul.mubr.f32.gmra.mrb[0].mxu0 %v621
        %v797 = vpop.f32.mrb[0].mxu0
        %v798 = vadd.f32 %v474, %v797
        %v799 = vpop.f32.mrb[0].mxu0
        %800 = vmatprep.mubr.f32.mxu0 0.0
        %801 = vmatmul.mubr.f32.gmra.mrb[0].mxu0 %v624
        %v802 = vpop.f32.mrb[0].mxu0
        %v803 = vadd.f32 %v479, %v802
        %v804 = vpop.f32.mrb[0].mxu0
        %805 = vmatprep.mubr.f32.mxu0 0.0
        %806 = vmatmul.mubr.f32.gmra.mrb[0].mxu0 %v627
        %v807 = vpop.f32.mrb[0].mxu0
        %v808 = vadd.f32 %v484, %v807
        %v809 = vpop.f32.mrb[0].mxu0
        %810 = vmatprep.mubr.f32.mxu0 0.0
        %811 = vmatmul.mubr.f32.gmra.mrb[0].mxu0 %v630
        %v812 = vpop.f32.mrb[0].mxu0
        %v813 = vadd.f32 %v489, %v812
        %v814 = vpop.f32.mrb[0].mxu0
        %815 = vmatprep.mubr.f32.mxu0 0.0
        %816 = vmatmul.mubr.f32.gmra.mrb[0].mxu0 %v633
        %v817 = vpop.f32.mrb[0].mxu0
        %v818 = vadd.f32 %v494, %v817
        %v819 = vpop.f32.mrb[0].mxu0
        %820 = vmatprep.mubr.f32.mxu0 0.0
        %821 = vmatmul.mubr.f32.gmra.mrb[0].mxu0 %v636
        %v822 = vpop.f32.mrb[0].mxu0
        %v823 = vadd.f32 %v499, %v822
        %v824 = vpop.f32.mrb[0].mxu0
        %825 = vmatprep.mubr.f32.mxu0 0.0
        %826 = vmatmul.mubr.f32.gmra.mrb[0].mxu0 %v639
        %v827 = vpop.f32.mrb[0].mxu0
        %v828 = vadd.f32 %v504, %v827
        %v829 = vpop.f32.mrb[0].mxu0
        %830 = vmatprep.mubr.f32.mxu0 0.0
        %831 = vmatmul.mubr.f32.gmra.mrb[0].mxu0 %v642
        %v832 = vpop.f32.mrb[0].mxu0
        %v833 = vadd.f32 %v509, %v832
        %v834 = vpop.f32.mrb[0].mxu0
        %835 = vmatprep.mubr.f32.mxu0 0.0
        %836 = vmatmul.mubr.f32.gmra.mrb[0].mxu0 %v645
        %v837 = vpop.f32.mrb[0].mxu0
        %v838 = vadd.f32 %v514, %v837
        %v839 = vpop.f32.mrb[0].mxu0
        %840 = vmatprep.mubr.f32.mxu0 0.0
        %841 = vmatmul.mubr.f32.gmra.mrb[0].mxu0 %v648
        %v842 = vpop.f32.mrb[0].mxu0
        %v843 = vadd.f32 %v519, %v842
        %v844 = vpop.f32.mrb[0].mxu0
        %845 = vmatprep.mubr.f32.mxu0 0.0
        %846 = vmatmul.mubr.f32.gmra.mrb[0].mxu0 %v651
        %v847 = vpop.f32.mrb[0].mxu0
        %v848 = vadd.f32 %v524, %v847
        %v849 = vpop.f32.mrb[0].mxu0
        %850 = vmatprep.mubr.f32.mxu0 0.0
        %851 = vmatmul.mubr.f32.gmra.mrb[0].mxu0 %v654
        %v852 = vpop.f32.mrb[0].mxu0
        %v853 = vadd.f32 %v529, %v852
        %v854 = vpop.f32.mrb[0].mxu0
        %855 = vmatprep.mubr.f32.mxu0 0.0
        %856 = vmatmul.mubr.f32.gmra.mrb[0].mxu0 %v657
        %v857 = vpop.f32.mrb[0].mxu0
        %v858 = vadd.f32 %v534, %v857
        %v859 = vpop.f32.mrb[0].mxu0
        %860 = vmatprep.mubr.f32.mxu0 0.0
        %861 = vmatmul.mubr.f32.gmra.mrb[0].mxu0 %v660
        %v862 = vpop.f32.mrb[0].mxu0
        %v863 = vadd.f32 %v539, %v862
        %v864 = vpop.f32.mrb[0].mxu0
        %865 = vmatprep.mubr.f32.mxu0 0.0
        %866 = vmatmul.mubr.f32.gmra.mrb[0].mxu0 %v663
        %v867 = vpop.f32.mrb[0].mxu0
        %v868 = vadd.f32 %v544, %v867
        %v869 = vpop.f32.mrb[0].mxu0
        %870 = vmatprep.mubr.f32.mxu0 0.0
        %871 = vmatmul.mubr.f32.gmra.mrb[0].mxu0 %v666
        %v872 = vpop.f32.mrb[0].mxu0
        %v873 = vadd.f32 %v549, %v872
        %v874 = vpop.f32.mrb[0].mxu0
        %875 = vmatprep.mubr.f32.mxu0 0.0
        %876 = vmatmul.mubr.f32.gmra.mrb[0].mxu0 %v669
        %v877 = vpop.f32.mrb[0].mxu0
        %v878 = vadd.f32 %v554, %v877
        %v879 = vpop.f32.mrb[0].mxu0
        %880 = vmatprep.mubr.f32.mxu0 0.0
        %881 = vmatmul.mubr.f32.gmra.mrb[0].mxu0 %v672
        %v882 = vpop.f32.mrb[0].mxu0
        %v883 = vadd.f32 %v559, %v882
        %v884 = vpop.f32.mrb[0].mxu0
        %885 = vmatprep.mubr.f32.mxu0 0.0
        %886 = vmatmul.mubr.f32.gmra.mrb[0].mxu0 %v675
        %v887 = vpop.f32.mrb[0].mxu0
        %v888 = vadd.f32 %v564, %v887
        %v889 = vpop.f32.mrb[0].mxu0
        %890 = vmatprep.mubr.f32.mxu0 0.0
        %891 = vmatmul.mubr.f32.gmra.mrb[0].mxu0 %v678
        %v892 = vpop.f32.mrb[0].mxu0
        %v893 = vadd.f32 %v569, %v892
        %v894 = vpop.f32.mrb[0].mxu0
        %895 = vmatprep.mubr.f32.mxu0 0.0
        %896 = vmatmul.mubr.f32.gmra.mrb[0].mxu0 %v681
        %v897 = vpop.f32.mrb[0].mxu0
        %v898 = vadd.f32 %v574, %v897
        %v899 = vpop.f32.mrb[0].mxu0
        %900 = vmatprep.mubr.f32.mxu0 0.0
        %901 = vmatmul.mubr.f32.gmra.mrb[0].mxu0 %v684
        %v902 = vpop.f32.mrb[0].mxu0
        %v903 = vadd.f32 %v579, %v902
        %v904 = vpop.f32.mrb[0].mxu0
        %905 = vmatprep.mubr.f32.mxu0 0.0
        %906 = vmatmul.mubr.f32.gmra.mrb[0].mxu0 %v687
        %v907 = vpop.f32.mrb[0].mxu0
        %v908 = vadd.f32 %v584, %v907
        %v909 = vpop.f32.mrb[0].mxu0
        %910 = vmatprep.mubr.f32.mxu0 0.0
        %911 = vmatmul.mubr.f32.gmra.mrb[0].mxu0 %v690
        %v912 = vpop.f32.mrb[0].mxu0
        %v913 = vadd.f32 %v589, %v912
        %v914 = vpop.f32.mrb[0].mxu0
        %915 = vmatprep.mubr.f32.mxu0 0.0
        %916 = vmatmul.mubr.f32.gmra.mrb[0].mxu0 %v693
        %v917 = vpop.f32.mrb[0].mxu0
        %v918 = vadd.f32 %v594, %v917
        %v919 = vpop.f32.mrb[0].mxu0
        %920 = vmatprep.mubr.f32.mxu0 0.0
        %921 = vmatmul.mubr.f32.gmra.mrb[0].mxu0 %v696
        %v922 = vpop.f32.mrb[0].mxu0
        %v923 = vadd.f32 %v599, %v922
        %v924 = vpop.f32.mrb[0].mxu0
        %925 = vdwg.mxu0
        %v926 = vld [vmem:[%s203 + $0x2] sm:$0xff]
        %v927 = vld [vmem:[%s203 + $0xa] sm:$0xff]
        %v928 = vld [vmem:[%s203 + $0x1a] sm:$0xff]
        %v929 = vld [vmem:[%s203 + $0x22] sm:$0xff]
        %v930 = vld [vmem:[%s203 + $0x32] sm:$0xff]
        %v931 = vld [vmem:[%s203 + $0x3a] sm:$0xff]
        %v932 = vld [vmem:[%s203 + $0x4a] sm:$0xff]
        %v933 = vld [vmem:[%s203 + $0x52] sm:$0xff]
        %v934 = vld [vmem:[%s203 + $0x62] sm:$0xff]
        %v935 = vld [vmem:[%s203 + $0x6a] sm:$0xff]
        %v936 = vld [vmem:[%s203 + $0x7a] sm:$0xff]
        %v937 = vld [vmem:[%s203 + $0x82] sm:$0xff]
        %v938 = vld [vmem:[%s203 + $0x92] sm:$0xff]
        %v939 = vld [vmem:[%s203 + $0x9a] sm:$0xff]
        %v940 = vld [vmem:[%s203 + $0xaa] sm:$0xff]
        %v941 = vld [vmem:[%s203 + $0xb2] sm:$0xff]
        %v942 = vld [vmem:[%s203 + $0xc2] sm:$0xff]
        %v943 = vld [vmem:[%s203 + $0xca] sm:$0xff]
        %v944 = vld [vmem:[%s203 + $0xda] sm:$0xff]
        %v945 = vld [vmem:[%s203 + $0xe2] sm:$0xff]
        %v946 = vld [vmem:[%s203 + $0xf2] sm:$0xff]
        %v947 = vld [vmem:[%s203 + $0xfa] sm:$0xff]
        %v948 = vld [vmem:[%s203 + $0x10a] sm:$0xff]
        %v949 = vld [vmem:[%s203 + $0x112] sm:$0xff]
        %v950 = vld [vmem:[%s203 + $0x122] sm:$0xff]
        %v951 = vld [vmem:[%s203 + $0x12a] sm:$0xff]
        %v952 = vld [vmem:[%s203 + $0x13a] sm:$0xff]
        %v953 = vld [vmem:[%s203 + $0x142] sm:$0xff]
        %v954 = vld [vmem:[%s203 + $0x152] sm:$0xff]
        %v955 = vld [vmem:[%s203 + $0x15a] sm:$0xff]
        %v956 = vld [vmem:[%s203 + $0x16a] sm:$0xff]
        %v957 = vld [vmem:[%s203 + $0x172] sm:$0xff]
        %s958 = scalar_lea.vmem %s1, 8
        %v959 = vld [vmem:[%s958] sm:$0xf]
        %v961 = vsel %vm276, %v926, 0
        %v964 = vsel %vm276, %v927, 0
        %v967 = vsel %vm276, %v928, 0
        %v970 = vsel %vm276, %v929, 0
        %v973 = vsel %vm276, %v930, 0
        %v976 = vsel %vm276, %v931, 0
        %v979 = vsel %vm276, %v932, 0
        %v982 = vsel %vm276, %v933, 0
        %v985 = vsel %vm276, %v934, 0
        %v988 = vsel %vm276, %v935, 0
        %v991 = vsel %vm276, %v936, 0
        %v994 = vsel %vm276, %v937, 0
        %v997 = vsel %vm276, %v938, 0
        %v1000 = vsel %vm276, %v939, 0
        %v1003 = vsel %vm276, %v940, 0
        %v1006 = vsel %vm276, %v941, 0
        %v1009 = vsel %vm276, %v942, 0
        %v1012 = vsel %vm276, %v943, 0
        %v1015 = vsel %vm276, %v944, 0
        %v1018 = vsel %vm276, %v945, 0
        %v1021 = vsel %vm276, %v946, 0
        %v1024 = vsel %vm276, %v947, 0
        %v1027 = vsel %vm276, %v948, 0
        %v1030 = vsel %vm276, %v949, 0
        %v1033 = vsel %vm276, %v950, 0
        %v1036 = vsel %vm276, %v951, 0
        %v1039 = vsel %vm276, %v952, 0
        %v1042 = vsel %vm276, %v953, 0
        %v1045 = vsel %vm276, %v954, 0
        %v1048 = vsel %vm276, %v955, 0
        %v1051 = vsel %vm276, %v956, 0
        %v1054 = vsel %vm276, %v957, 0
        %v1057 = vsel %vm373, %v959, 0
        %1059 = vmatprep.subr.mxu0 0.0
        %1060 = vmatpush1.msra.mxu0 %v1057
        %1061 = vmatprep.subr.mxu0 0.0
        %1062 = vmatpush1.msra.mxu0 0.0
        %1063 = vmatprep.subr.mxu0 0.0
        %1064 = vmatpush1.msra.mxu0 0.0
        %1065 = vmatprep.subr.mxu0 0.0
        %1066 = vmatpush1.msra.mxu0 0.0
        %1067 = vmatprep.subr.mxu0 0.0
        %1068 = vmatpush1.msra.mxu0 0.0
        %1069 = vmatprep.subr.mxu0 0.0
        %1070 = vmatpush1.msra.mxu0 0.0
        %1071 = vmatprep.subr.mxu0 0.0
        %1072 = vmatpush1.msra.mxu0 0.0
        %1073 = vmatprep.subr.mxu0 0.0
        %1074 = vmatpush1.msra.mxu0 0.0
        %1075 = vmatprep.subr.mxu0 0.0
        %1076 = vmatpush1.msra.mxu0 0.0
        %1077 = vmatprep.subr.mxu0 0.0
        %1078 = vmatpush1.msra.mxu0 0.0
        %1079 = vmatprep.subr.mxu0 0.0
        %1080 = vmatpush1.msra.mxu0 0.0
        %1081 = vmatprep.subr.mxu0 0.0
        %1082 = vmatpush1.msra.mxu0 0.0
        %1083 = vmatprep.subr.mxu0 0.0
        %1084 = vmatpush1.msra.mxu0 0.0
        %1085 = vmatprep.subr.mxu0 0.0
        %1086 = vmatpush1.msra.mxu0 0.0
        %1087 = vmatprep.subr.mxu0 0.0
        %1088 = vmatpush1.msra.mxu0 0.0
        %1089 = vmatprep.subr.mxu0 0.0
        %1090 = vmatpush1.msra.mxu0 0.0
        %1091 = vmatprep.subr.mxu0 0.0
        %1092 = vmatpush1.msra.mxu0 0.0
        %1093 = vmatprep.subr.mxu0 0.0
        %1094 = vmatpush1.msra.mxu0 0.0
        %1095 = vmatprep.subr.mxu0 0.0
        %1096 = vmatpush1.msra.mxu0 0.0
        %1097 = vmatprep.subr.mxu0 0.0
        %1098 = vmatpush1.msra.mxu0 0.0
        %1099 = vmatprep.subr.mxu0 0.0
        %1100 = vmatpush1.msra.mxu0 0.0
        %1101 = vmatprep.subr.mxu0 0.0
        %1102 = vmatpush1.msra.mxu0 0.0
        %1103 = vmatprep.subr.mxu0 0.0
        %1104 = vmatpush1.msra.mxu0 0.0
        %1105 = vmatprep.subr.mxu0 0.0
        %1106 = vmatpush1.msra.mxu0 0.0
        %1107 = vmatprep.subr.mxu0 0.0
        %1108 = vmatpush1.msra.mxu0 0.0
        %1109 = vmatprep.subr.mxu0 0.0
        %1110 = vmatpush1.msra.mxu0 0.0
        %1111 = vmatprep.subr.mxu0 0.0
        %1112 = vmatpush1.msra.mxu0 0.0
        %1113 = vmatprep.subr.mxu0 0.0
        %1114 = vmatpush1.msra.mxu0 0.0
        %1115 = vmatprep.subr.mxu0 0.0
        %1116 = vmatpush1.msra.mxu0 0.0
        %1117 = vmatprep.subr.mxu0 0.0
        %1118 = vmatpush1.msra.mxu0 0.0
        %1119 = vmatprep.subr.mxu0 0.0
        %1120 = vmatpush1.msra.mxu0 0.0
        %1121 = vmatprep.subr.mxu0 0.0
        %1122 = vmatpush1.msra.mxu0 0.0
        %1123 = vmatprep.mubr.f32.mxu0 0.0
        %1124 = vmatmul.mubr.f32.gmra.mrb[0].mxu0 %v961
        %v1125 = vpop.f32.mrb[0].mxu0
        %v1126 = vadd.f32 0.0, %v1125
        %v1127 = vpop.f32.mrb[0].mxu0
        %1128 = vmatprep.mubr.f32.mxu0 0.0
        %1129 = vmatmul.mubr.f32.gmra.mrb[0].mxu0 %v964
        %v1130 = vpop.f32.mrb[0].mxu0
        %v1131 = vadd.f32 0.0, %v1130
        %v1132 = vpop.f32.mrb[0].mxu0
        %1133 = vmatprep.mubr.f32.mxu0 0.0
        %1134 = vmatmul.mubr.f32.gmra.mrb[0].mxu0 %v967
        %v1135 = vpop.f32.mrb[0].mxu0
        %v1136 = vadd.f32 0.0, %v1135
        %v1137 = vpop.f32.mrb[0].mxu0
        %1138 = vmatprep.mubr.f32.mxu0 0.0
        %1139 = vmatmul.mubr.f32.gmra.mrb[0].mxu0 %v970
        %v1140 = vpop.f32.mrb[0].mxu0
        %v1141 = vadd.f32 0.0, %v1140
        %v1142 = vpop.f32.mrb[0].mxu0
        %1143 = vmatprep.mubr.f32.mxu0 0.0
        %1144 = vmatmul.mubr.f32.gmra.mrb[0].mxu0 %v973
        %v1145 = vpop.f32.mrb[0].mxu0
        %v1146 = vadd.f32 0.0, %v1145
        %v1147 = vpop.f32.mrb[0].mxu0
        %1148 = vmatprep.mubr.f32.mxu0 0.0
        %1149 = vmatmul.mubr.f32.gmra.mrb[0].mxu0 %v976
        %v1150 = vpop.f32.mrb[0].mxu0
        %v1151 = vadd.f32 0.0, %v1150
        %v1152 = vpop.f32.mrb[0].mxu0
        %1153 = vmatprep.mubr.f32.mxu0 0.0
        %1154 = vmatmul.mubr.f32.gmra.mrb[0].mxu0 %v979
        %v1155 = vpop.f32.mrb[0].mxu0
        %v1156 = vadd.f32 0.0, %v1155
        %v1157 = vpop.f32.mrb[0].mxu0
        %1158 = vmatprep.mubr.f32.mxu0 0.0
        %1159 = vmatmul.mubr.f32.gmra.mrb[0].mxu0 %v982
        %v1160 = vpop.f32.mrb[0].mxu0
        %v1161 = vadd.f32 0.0, %v1160
        %v1162 = vpop.f32.mrb[0].mxu0
        %1163 = vmatprep.mubr.f32.mxu0 0.0
        %1164 = vmatmul.mubr.f32.gmra.mrb[0].mxu0 %v985
        %v1165 = vpop.f32.mrb[0].mxu0
        %v1166 = vadd.f32 0.0, %v1165
        %v1167 = vpop.f32.mrb[0].mxu0
        %1168 = vmatprep.mubr.f32.mxu0 0.0
        %1169 = vmatmul.mubr.f32.gmra.mrb[0].mxu0 %v988
        %v1170 = vpop.f32.mrb[0].mxu0
        %v1171 = vadd.f32 0.0, %v1170
        %v1172 = vpop.f32.mrb[0].mxu0
        %1173 = vmatprep.mubr.f32.mxu0 0.0
        %1174 = vmatmul.mubr.f32.gmra.mrb[0].mxu0 %v991
        %v1175 = vpop.f32.mrb[0].mxu0
        %v1176 = vadd.f32 0.0, %v1175
        %v1177 = vpop.f32.mrb[0].mxu0
        %1178 = vmatprep.mubr.f32.mxu0 0.0
        %1179 = vmatmul.mubr.f32.gmra.mrb[0].mxu0 %v994
        %v1180 = vpop.f32.mrb[0].mxu0
        %v1181 = vadd.f32 0.0, %v1180
        %v1182 = vpop.f32.mrb[0].mxu0
        %1183 = vmatprep.mubr.f32.mxu0 0.0
        %1184 = vmatmul.mubr.f32.gmra.mrb[0].mxu0 %v997
        %v1185 = vpop.f32.mrb[0].mxu0
        %v1186 = vadd.f32 0.0, %v1185
        %v1187 = vpop.f32.mrb[0].mxu0
        %1188 = vmatprep.mubr.f32.mxu0 0.0
        %1189 = vmatmul.mubr.f32.gmra.mrb[0].mxu0 %v1000
        %v1190 = vpop.f32.mrb[0].mxu0
        %v1191 = vadd.f32 0.0, %v1190
        %v1192 = vpop.f32.mrb[0].mxu0
        %1193 = vmatprep.mubr.f32.mxu0 0.0
        %1194 = vmatmul.mubr.f32.gmra.mrb[0].mxu0 %v1003
        %v1195 = vpop.f32.mrb[0].mxu0
        %v1196 = vadd.f32 0.0, %v1195
        %v1197 = vpop.f32.mrb[0].mxu0
        %1198 = vmatprep.mubr.f32.mxu0 0.0
        %1199 = vmatmul.mubr.f32.gmra.mrb[0].mxu0 %v1006
        %v1200 = vpop.f32.mrb[0].mxu0
        %v1201 = vadd.f32 0.0, %v1200
        %v1202 = vpop.f32.mrb[0].mxu0
        %1203 = vmatprep.mubr.f32.mxu0 0.0
        %1204 = vmatmul.mubr.f32.gmra.mrb[0].mxu0 %v1009
        %v1205 = vpop.f32.mrb[0].mxu0
        %v1206 = vadd.f32 0.0, %v1205
        %v1207 = vpop.f32.mrb[0].mxu0
        %1208 = vmatprep.mubr.f32.mxu0 0.0
        %1209 = vmatmul.mubr.f32.gmra.mrb[0].mxu0 %v1012
        %v1210 = vpop.f32.mrb[0].mxu0
        %v1211 = vadd.f32 0.0, %v1210
        %v1212 = vpop.f32.mrb[0].mxu0
        %1213 = vmatprep.mubr.f32.mxu0 0.0
        %1214 = vmatmul.mubr.f32.gmra.mrb[0].mxu0 %v1015
        %v1215 = vpop.f32.mrb[0].mxu0
        %v1216 = vadd.f32 0.0, %v1215
        %v1217 = vpop.f32.mrb[0].mxu0
        %1218 = vmatprep.mubr.f32.mxu0 0.0
        %1219 = vmatmul.mubr.f32.gmra.mrb[0].mxu0 %v1018
        %v1220 = vpop.f32.mrb[0].mxu0
        %v1221 = vadd.f32 0.0, %v1220
        %v1222 = vpop.f32.mrb[0].mxu0
        %1223 = vmatprep.mubr.f32.mxu0 0.0
        %1224 = vmatmul.mubr.f32.gmra.mrb[0].mxu0 %v1021
        %v1225 = vpop.f32.mrb[0].mxu0
        %v1226 = vadd.f32 0.0, %v1225
        %v1227 = vpop.f32.mrb[0].mxu0
        %1228 = vmatprep.mubr.f32.mxu0 0.0
        %1229 = vmatmul.mubr.f32.gmra.mrb[0].mxu0 %v1024
        %v1230 = vpop.f32.mrb[0].mxu0
        %v1231 = vadd.f32 0.0, %v1230
        %v1232 = vpop.f32.mrb[0].mxu0
        %1233 = vmatprep.mubr.f32.mxu0 0.0
        %1234 = vmatmul.mubr.f32.gmra.mrb[0].mxu0 %v1027
        %v1235 = vpop.f32.mrb[0].mxu0
        %v1236 = vadd.f32 0.0, %v1235
        %v1237 = vpop.f32.mrb[0].mxu0
        %1238 = vmatprep.mubr.f32.mxu0 0.0
        %1239 = vmatmul.mubr.f32.gmra.mrb[0].mxu0 %v1030
        %v1240 = vpop.f32.mrb[0].mxu0
        %v1241 = vadd.f32 0.0, %v1240
        %v1242 = vpop.f32.mrb[0].mxu0
        %1243 = vmatprep.mubr.f32.mxu0 0.0
        %1244 = vmatmul.mubr.f32.gmra.mrb[0].mxu0 %v1033
        %v1245 = vpop.f32.mrb[0].mxu0
        %v1246 = vadd.f32 0.0, %v1245
        %v1247 = vpop.f32.mrb[0].mxu0
        %1248 = vmatprep.mubr.f32.mxu0 0.0
        %1249 = vmatmul.mubr.f32.gmra.mrb[0].mxu0 %v1036
        %v1250 = vpop.f32.mrb[0].mxu0
        %v1251 = vadd.f32 0.0, %v1250
        %v1252 = vpop.f32.mrb[0].mxu0
        %1253 = vmatprep.mubr.f32.mxu0 0.0
        %1254 = vmatmul.mubr.f32.gmra.mrb[0].mxu0 %v1039
        %v1255 = vpop.f32.mrb[0].mxu0
        %v1256 = vadd.f32 0.0, %v1255
        %v1257 = vpop.f32.mrb[0].mxu0
        %1258 = vmatprep.mubr.f32.mxu0 0.0
        %1259 = vmatmul.mubr.f32.gmra.mrb[0].mxu0 %v1042
        %v1260 = vpop.f32.mrb[0].mxu0
        %v1261 = vadd.f32 0.0, %v1260
        %v1262 = vpop.f32.mrb[0].mxu0
        %1263 = vmatprep.mubr.f32.mxu0 0.0
        %1264 = vmatmul.mubr.f32.gmra.mrb[0].mxu0 %v1045
        %v1265 = vpop.f32.mrb[0].mxu0
        %v1266 = vadd.f32 0.0, %v1265
        %v1267 = vpop.f32.mrb[0].mxu0
        %1268 = vmatprep.mubr.f32.mxu0 0.0
        %1269 = vmatmul.mubr.f32.gmra.mrb[0].mxu0 %v1048
        %v1270 = vpop.f32.mrb[0].mxu0
        %v1271 = vadd.f32 0.0, %v1270
        %v1272 = vpop.f32.mrb[0].mxu0
        %1273 = vmatprep.mubr.f32.mxu0 0.0
        %1274 = vmatmul.mubr.f32.gmra.mrb[0].mxu0 %v1051
        %v1275 = vpop.f32.mrb[0].mxu0
        %v1276 = vadd.f32 0.0, %v1275
        %v1277 = vpop.f32.mrb[0].mxu0
        %1278 = vmatprep.mubr.f32.mxu0 0.0
        %1279 = vmatmul.mubr.f32.gmra.mrb[0].mxu0 %v1054
        %v1280 = vpop.f32.mrb[0].mxu0
        %v1281 = vadd.f32 0.0, %v1280
        %v1282 = vpop.f32.mrb[0].mxu0
        %1283 = vdwg.mxu0
        %v1284 = vadd.f32 %v768, %v1126
        %v1285 = vadd.f32 %v773, %v1131
        %v1286 = vadd.f32 %v778, %v1136
        %v1287 = vadd.f32 %v783, %v1141
        %v1288 = vadd.f32 %v788, %v1146
        %v1289 = vadd.f32 %v793, %v1151
        %v1290 = vadd.f32 %v798, %v1156
        %v1291 = vadd.f32 %v803, %v1161
        %v1292 = vadd.f32 %v808, %v1166
        %v1293 = vadd.f32 %v813, %v1171
        %v1294 = vadd.f32 %v818, %v1176
        %v1295 = vadd.f32 %v823, %v1181
        %v1296 = vadd.f32 %v828, %v1186
        %v1297 = vadd.f32 %v833, %v1191
        %v1298 = vadd.f32 %v838, %v1196
        %v1299 = vadd.f32 %v843, %v1201
        %v1300 = vadd.f32 %v848, %v1206
        %v1301 = vadd.f32 %v853, %v1211
        %v1302 = vadd.f32 %v858, %v1216
        %v1303 = vadd.f32 %v863, %v1221
        %v1304 = vadd.f32 %v868, %v1226
        %v1305 = vadd.f32 %v873, %v1231
        %v1306 = vadd.f32 %v878, %v1236
        %v1307 = vadd.f32 %v883, %v1241
        %v1308 = vadd.f32 %v888, %v1246
        %v1309 = vadd.f32 %v893, %v1251
        %v1310 = vadd.f32 %v898, %v1256
        %v1311 = vadd.f32 %v903, %v1261
        %v1312 = vadd.f32 %v908, %v1266
        %v1313 = vadd.f32 %v913, %v1271
        %v1314 = vadd.f32 %v918, %v1276
        %v1315 = vadd.f32 %v923, %v1281
        %s1316 = scalar_lea.vmem %s203, 24
        %v1317 = vld [vmem:[%s1316] sm:$0xff]
        %v1318 = vld [vmem:[%s1316 + $0x8] sm:$0xff]
        %v1319 = vld [vmem:[%s1316 + $0x18] sm:$0xff]
        %v1320 = vld [vmem:[%s1316 + $0x20] sm:$0xff]
        %v1321 = vld [vmem:[%s1316 + $0x30] sm:$0xff]
        %v1322 = vld [vmem:[%s1316 + $0x38] sm:$0xff]
        %v1323 = vld [vmem:[%s1316 + $0x48] sm:$0xff]
        %v1324 = vld [vmem:[%s1316 + $0x50] sm:$0xff]
        %v1325 = vld [vmem:[%s1316 + $0x60] sm:$0xff]
        %v1326 = vld [vmem:[%s1316 + $0x68] sm:$0xff]
        %v1327 = vld [vmem:[%s1316 + $0x78] sm:$0xff]
        %v1328 = vld [vmem:[%s1316 + $0x80] sm:$0xff]
        %v1329 = vld [vmem:[%s1316 + $0x90] sm:$0xff]
        %v1330 = vld [vmem:[%s1316 + $0x98] sm:$0xff]
        %v1331 = vld [vmem:[%s1316 + $0xa8] sm:$0xff]
        %v1332 = vld [vmem:[%s1316 + $0xb0] sm:$0xff]
        %v1333 = vld [vmem:[%s1316 + $0xc0] sm:$0xff]
        %v1334 = vld [vmem:[%s1316 + $0xc8] sm:$0xff]
        %v1335 = vld [vmem:[%s1316 + $0xd8] sm:$0xff]
        %v1336 = vld [vmem:[%s1316 + $0xe0] sm:$0xff]
        %v1337 = vld [vmem:[%s1316 + $0xf0] sm:$0xff]
        %v1338 = vld [vmem:[%s1316 + $0xf8] sm:$0xff]
        %v1339 = vld [vmem:[%s1316 + $0x108] sm:$0xff]
        %v1340 = vld [vmem:[%s1316 + $0x110] sm:$0xff]
        %v1341 = vld [vmem:[%s1316 + $0x120] sm:$0xff]
        %v1342 = vld [vmem:[%s1316 + $0x128] sm:$0xff]
        %v1343 = vld [vmem:[%s1316 + $0x138] sm:$0xff]
        %v1344 = vld [vmem:[%s1316 + $0x140] sm:$0xff]
        %v1345 = vld [vmem:[%s1316 + $0x150] sm:$0xff]
        %v1346 = vld [vmem:[%s1316 + $0x158] sm:$0xff]
        %v1347 = vld [vmem:[%s1316 + $0x168] sm:$0xff]
        %v1348 = vld [vmem:[%s1316 + $0x170] sm:$0xff]
        %s1349 = scalar_lea.vmem %s1, 12
        %v1350 = vld [vmem:[%s1349] sm:$0xf]
        %v1352 = vsel %vm276, %v1317, 0
        %v1355 = vsel %vm276, %v1318, 0
        %v1358 = vsel %vm276, %v1319, 0
        %v1361 = vsel %vm276, %v1320, 0
        %v1364 = vsel %vm276, %v1321, 0
        %v1367 = vsel %vm276, %v1322, 0
        %v1370 = vsel %vm276, %v1323, 0
        %v1373 = vsel %vm276, %v1324, 0
        %v1376 = vsel %vm276, %v1325, 0
        %v1379 = vsel %vm276, %v1326, 0
        %v1382 = vsel %vm276, %v1327, 0
        %v1385 = vsel %vm276, %v1328, 0
        %v1388 = vsel %vm276, %v1329, 0
        %v1391 = vsel %vm276, %v1330, 0
        %v1394 = vsel %vm276, %v1331, 0
        %v1397 = vsel %vm276, %v1332, 0
        %v1400 = vsel %vm276, %v1333, 0
        %v1403 = vsel %vm276, %v1334, 0
        %v1406 = vsel %vm276, %v1335, 0
        %v1409 = vsel %vm276, %v1336, 0
        %v1412 = vsel %vm276, %v1337, 0
        %v1415 = vsel %vm276, %v1338, 0
        %v1418 = vsel %vm276, %v1339, 0
        %v1421 = vsel %vm276, %v1340, 0
        %v1424 = vsel %vm276, %v1341, 0
        %v1427 = vsel %vm276, %v1342, 0
        %v1430 = vsel %vm276, %v1343, 0
        %v1433 = vsel %vm276, %v1344, 0
        %v1436 = vsel %vm276, %v1345, 0
        %v1439 = vsel %vm276, %v1346, 0
        %v1442 = vsel %vm276, %v1347, 0
        %v1445 = vsel %vm276, %v1348, 0
        %v1448 = vsel %vm373, %v1350, 0
        %1450 = vmatprep.subr.mxu0 0.0
        %1451 = vmatpush1.msra.mxu0 %v1448
        %1452 = vmatprep.subr.mxu0 0.0
        %1453 = vmatpush1.msra.mxu0 0.0
        %1454 = vmatprep.subr.mxu0 0.0
        %1455 = vmatpush1.msra.mxu0 0.0
        %1456 = vmatprep.subr.mxu0 0.0
        %1457 = vmatpush1.msra.mxu0 0.0
        %1458 = vmatprep.subr.mxu0 0.0
        %1459 = vmatpush1.msra.mxu0 0.0
        %1460 = vmatprep.subr.mxu0 0.0
        %1461 = vmatpush1.msra.mxu0 0.0
        %1462 = vmatprep.subr.mxu0 0.0
        %1463 = vmatpush1.msra.mxu0 0.0
        %1464 = vmatprep.subr.mxu0 0.0
        %1465 = vmatpush1.msra.mxu0 0.0
        %1466 = vmatprep.subr.mxu0 0.0
        %1467 = vmatpush1.msra.mxu0 0.0
        %1468 = vmatprep.subr.mxu0 0.0
        %1469 = vmatpush1.msra.mxu0 0.0
        %1470 = vmatprep.subr.mxu0 0.0
        %1471 = vmatpush1.msra.mxu0 0.0
        %1472 = vmatprep.subr.mxu0 0.0
        %1473 = vmatpush1.msra.mxu0 0.0
        %1474 = vmatprep.subr.mxu0 0.0
        %1475 = vmatpush1.msra.mxu0 0.0
        %1476 = vmatprep.subr.mxu0 0.0
        %1477 = vmatpush1.msra.mxu0 0.0
        %1478 = vmatprep.subr.mxu0 0.0
        %1479 = vmatpush1.msra.mxu0 0.0
        %1480 = vmatprep.subr.mxu0 0.0
        %1481 = vmatpush1.msra.mxu0 0.0
        %1482 = vmatprep.subr.mxu0 0.0
        %1483 = vmatpush1.msra.mxu0 0.0
        %1484 = vmatprep.subr.mxu0 0.0
        %1485 = vmatpush1.msra.mxu0 0.0
        %1486 = vmatprep.subr.mxu0 0.0
        %1487 = vmatpush1.msra.mxu0 0.0
        %1488 = vmatprep.subr.mxu0 0.0
        %1489 = vmatpush1.msra.mxu0 0.0
        %1490 = vmatprep.subr.mxu0 0.0
        %1491 = vmatpush1.msra.mxu0 0.0
        %1492 = vmatprep.subr.mxu0 0.0
        %1493 = vmatpush1.msra.mxu0 0.0
        %1494 = vmatprep.subr.mxu0 0.0
        %1495 = vmatpush1.msra.mxu0 0.0
        %1496 = vmatprep.subr.mxu0 0.0
        %1497 = vmatpush1.msra.mxu0 0.0
        %1498 = vmatprep.subr.mxu0 0.0
        %1499 = vmatpush1.msra.mxu0 0.0
        %1500 = vmatprep.subr.mxu0 0.0
        %1501 = vmatpush1.msra.mxu0 0.0
        %1502 = vmatprep.subr.mxu0 0.0
        %1503 = vmatpush1.msra.mxu0 0.0
        %1504 = vmatprep.subr.mxu0 0.0
        %1505 = vmatpush1.msra.mxu0 0.0
        %1506 = vmatprep.subr.mxu0 0.0
        %1507 = vmatpush1.msra.mxu0 0.0
        %1508 = vmatprep.subr.mxu0 0.0
        %1509 = vmatpush1.msra.mxu0 0.0
        %1510 = vmatprep.subr.mxu0 0.0
        %1511 = vmatpush1.msra.mxu0 0.0
        %1512 = vmatprep.subr.mxu0 0.0
        %1513 = vmatpush1.msra.mxu0 0.0
        %1514 = vmatprep.mubr.f32.mxu0 0.0
        %1515 = vmatmul.mubr.f32.gmra.mrb[0].mxu0 %v1352
        %v1516 = vpop.f32.mrb[0].mxu0
        %v1517 = vadd.f32 0.0, %v1516
        %v1518 = vpop.f32.mrb[0].mxu0
        %1519 = vmatprep.mubr.f32.mxu0 0.0
        %1520 = vmatmul.mubr.f32.gmra.mrb[0].mxu0 %v1355
        %v1521 = vpop.f32.mrb[0].mxu0
        %v1522 = vadd.f32 0.0, %v1521
        %v1523 = vpop.f32.mrb[0].mxu0
        %1524 = vmatprep.mubr.f32.mxu0 0.0
        %1525 = vmatmul.mubr.f32.gmra.mrb[0].mxu0 %v1358
        %v1526 = vpop.f32.mrb[0].mxu0
        %v1527 = vadd.f32 0.0, %v1526
        %v1528 = vpop.f32.mrb[0].mxu0
        %1529 = vmatprep.mubr.f32.mxu0 0.0
        %1530 = vmatmul.mubr.f32.gmra.mrb[0].mxu0 %v1361
        %v1531 = vpop.f32.mrb[0].mxu0
        %v1532 = vadd.f32 0.0, %v1531
        %v1533 = vpop.f32.mrb[0].mxu0
        %1534 = vmatprep.mubr.f32.mxu0 0.0
        %1535 = vmatmul.mubr.f32.gmra.mrb[0].mxu0 %v1364
        %v1536 = vpop.f32.mrb[0].mxu0
        %v1537 = vadd.f32 0.0, %v1536
        %v1538 = vpop.f32.mrb[0].mxu0
        %1539 = vmatprep.mubr.f32.mxu0 0.0
        %1540 = vmatmul.mubr.f32.gmra.mrb[0].mxu0 %v1367
        %v1541 = vpop.f32.mrb[0].mxu0
        %v1542 = vadd.f32 0.0, %v1541
        %v1543 = vpop.f32.mrb[0].mxu0
        %1544 = vmatprep.mubr.f32.mxu0 0.0
        %1545 = vmatmul.mubr.f32.gmra.mrb[0].mxu0 %v1370
        %v1546 = vpop.f32.mrb[0].mxu0
        %v1547 = vadd.f32 0.0, %v1546
        %v1548 = vpop.f32.mrb[0].mxu0
        %1549 = vmatprep.mubr.f32.mxu0 0.0
        %1550 = vmatmul.mubr.f32.gmra.mrb[0].mxu0 %v1373
        %v1551 = vpop.f32.mrb[0].mxu0
        %v1552 = vadd.f32 0.0, %v1551
        %v1553 = vpop.f32.mrb[0].mxu0
        %1554 = vmatprep.mubr.f32.mxu0 0.0
        %1555 = vmatmul.mubr.f32.gmra.mrb[0].mxu0 %v1376
        %v1556 = vpop.f32.mrb[0].mxu0
        %v1557 = vadd.f32 0.0, %v1556
        %v1558 = vpop.f32.mrb[0].mxu0
        %1559 = vmatprep.mubr.f32.mxu0 0.0
        %1560 = vmatmul.mubr.f32.gmra.mrb[0].mxu0 %v1379
        %v1561 = vpop.f32.mrb[0].mxu0
        %v1562 = vadd.f32 0.0, %v1561
        %v1563 = vpop.f32.mrb[0].mxu0
        %1564 = vmatprep.mubr.f32.mxu0 0.0
        %1565 = vmatmul.mubr.f32.gmra.mrb[0].mxu0 %v1382
        %v1566 = vpop.f32.mrb[0].mxu0
        %v1567 = vadd.f32 0.0, %v1566
        %v1568 = vpop.f32.mrb[0].mxu0
        %1569 = vmatprep.mubr.f32.mxu0 0.0
        %1570 = vmatmul.mubr.f32.gmra.mrb[0].mxu0 %v1385
        %v1571 = vpop.f32.mrb[0].mxu0
        %v1572 = vadd.f32 0.0, %v1571
        %v1573 = vpop.f32.mrb[0].mxu0
        %1574 = vmatprep.mubr.f32.mxu0 0.0
        %1575 = vmatmul.mubr.f32.gmra.mrb[0].mxu0 %v1388
        %v1576 = vpop.f32.mrb[0].mxu0
        %v1577 = vadd.f32 0.0, %v1576
        %v1578 = vpop.f32.mrb[0].mxu0
        %1579 = vmatprep.mubr.f32.mxu0 0.0
        %1580 = vmatmul.mubr.f32.gmra.mrb[0].mxu0 %v1391
        %v1581 = vpop.f32.mrb[0].mxu0
        %v1582 = vadd.f32 0.0, %v1581
        %v1583 = vpop.f32.mrb[0].mxu0
        %1584 = vmatprep.mubr.f32.mxu0 0.0
        %1585 = vmatmul.mubr.f32.gmra.mrb[0].mxu0 %v1394
        %v1586 = vpop.f32.mrb[0].mxu0
        %v1587 = vadd.f32 0.0, %v1586
        %v1588 = vpop.f32.mrb[0].mxu0
        %1589 = vmatprep.mubr.f32.mxu0 0.0
        %1590 = vmatmul.mubr.f32.gmra.mrb[0].mxu0 %v1397
        %v1591 = vpop.f32.mrb[0].mxu0
        %v1592 = vadd.f32 0.0, %v1591
        %v1593 = vpop.f32.mrb[0].mxu0
        %1594 = vmatprep.mubr.f32.mxu0 0.0
        %1595 = vmatmul.mubr.f32.gmra.mrb[0].mxu0 %v1400
        %v1596 = vpop.f32.mrb[0].mxu0
        %v1597 = vadd.f32 0.0, %v1596
        %v1598 = vpop.f32.mrb[0].mxu0
        %1599 = vmatprep.mubr.f32.mxu0 0.0
        %1600 = vmatmul.mubr.f32.gmra.mrb[0].mxu0 %v1403
        %v1601 = vpop.f32.mrb[0].mxu0
        %v1602 = vadd.f32 0.0, %v1601
        %v1603 = vpop.f32.mrb[0].mxu0
        %1604 = vmatprep.mubr.f32.mxu0 0.0
        %1605 = vmatmul.mubr.f32.gmra.mrb[0].mxu0 %v1406
        %v1606 = vpop.f32.mrb[0].mxu0
        %v1607 = vadd.f32 0.0, %v1606
        %v1608 = vpop.f32.mrb[0].mxu0
        %1609 = vmatprep.mubr.f32.mxu0 0.0
        %1610 = vmatmul.mubr.f32.gmra.mrb[0].mxu0 %v1409
        %v1611 = vpop.f32.mrb[0].mxu0
        %v1612 = vadd.f32 0.0, %v1611
        %v1613 = vpop.f32.mrb[0].mxu0
        %1614 = vmatprep.mubr.f32.mxu0 0.0
        %1615 = vmatmul.mubr.f32.gmra.mrb[0].mxu0 %v1412
        %v1616 = vpop.f32.mrb[0].mxu0
        %v1617 = vadd.f32 0.0, %v1616
        %v1618 = vpop.f32.mrb[0].mxu0
        %1619 = vmatprep.mubr.f32.mxu0 0.0
        %1620 = vmatmul.mubr.f32.gmra.mrb[0].mxu0 %v1415
        %v1621 = vpop.f32.mrb[0].mxu0
        %v1622 = vadd.f32 0.0, %v1621
        %v1623 = vpop.f32.mrb[0].mxu0
        %1624 = vmatprep.mubr.f32.mxu0 0.0
        %1625 = vmatmul.mubr.f32.gmra.mrb[0].mxu0 %v1418
        %v1626 = vpop.f32.mrb[0].mxu0
        %v1627 = vadd.f32 0.0, %v1626
        %v1628 = vpop.f32.mrb[0].mxu0
        %1629 = vmatprep.mubr.f32.mxu0 0.0
        %1630 = vmatmul.mubr.f32.gmra.mrb[0].mxu0 %v1421
        %v1631 = vpop.f32.mrb[0].mxu0
        %v1632 = vadd.f32 0.0, %v1631
        %v1633 = vpop.f32.mrb[0].mxu0
        %1634 = vmatprep.mubr.f32.mxu0 0.0
        %1635 = vmatmul.mubr.f32.gmra.mrb[0].mxu0 %v1424
        %v1636 = vpop.f32.mrb[0].mxu0
        %v1637 = vadd.f32 0.0, %v1636
        %v1638 = vpop.f32.mrb[0].mxu0
        %1639 = vmatprep.mubr.f32.mxu0 0.0
        %1640 = vmatmul.mubr.f32.gmra.mrb[0].mxu0 %v1427
        %v1641 = vpop.f32.mrb[0].mxu0
        %v1642 = vadd.f32 0.0, %v1641
        %v1643 = vpop.f32.mrb[0].mxu0
        %1644 = vmatprep.mubr.f32.mxu0 0.0
        %1645 = vmatmul.mubr.f32.gmra.mrb[0].mxu0 %v1430
        %v1646 = vpop.f32.mrb[0].mxu0
        %v1647 = vadd.f32 0.0, %v1646
        %v1648 = vpop.f32.mrb[0].mxu0
        %1649 = vmatprep.mubr.f32.mxu0 0.0
        %1650 = vmatmul.mubr.f32.gmra.mrb[0].mxu0 %v1433
        %v1651 = vpop.f32.mrb[0].mxu0
        %v1652 = vadd.f32 0.0, %v1651
        %v1653 = vpop.f32.mrb[0].mxu0
        %1654 = vmatprep.mubr.f32.mxu0 0.0
        %1655 = vmatmul.mubr.f32.gmra.mrb[0].mxu0 %v1436
        %v1656 = vpop.f32.mrb[0].mxu0
        %v1657 = vadd.f32 0.0, %v1656
        %v1658 = vpop.f32.mrb[0].mxu0
        %1659 = vmatprep.mubr.f32.mxu0 0.0
        %1660 = vmatmul.mubr.f32.gmra.mrb[0].mxu0 %v1439
        %v1661 = vpop.f32.mrb[0].mxu0
        %v1662 = vadd.f32 0.0, %v1661
        %v1663 = vpop.f32.mrb[0].mxu0
        %1664 = vmatprep.mubr.f32.mxu0 0.0
        %1665 = vmatmul.mubr.f32.gmra.mrb[0].mxu0 %v1442
        %v1666 = vpop.f32.mrb[0].mxu0
        %v1667 = vadd.f32 0.0, %v1666
        %v1668 = vpop.f32.mrb[0].mxu0
        %1669 = vmatprep.mubr.f32.mxu0 0.0
        %1670 = vmatmul.mubr.f32.gmra.mrb[0].mxu0 %v1445
        %v1671 = vpop.f32.mrb[0].mxu0
        %v1672 = vadd.f32 0.0, %v1671
        %v1673 = vpop.f32.mrb[0].mxu0
        %1674 = vdwg.mxu0
        %v1675 = vadd.f32 %v1284, %v1517
        %v1676 = vadd.f32 %v1285, %v1522
        %v1677 = vadd.f32 %v1286, %v1527
        %v1678 = vadd.f32 %v1287, %v1532
        %v1679 = vadd.f32 %v1288, %v1537
        %v1680 = vadd.f32 %v1289, %v1542
        %v1681 = vadd.f32 %v1290, %v1547
        %v1682 = vadd.f32 %v1291, %v1552
        %v1683 = vadd.f32 %v1292, %v1557
        %v1684 = vadd.f32 %v1293, %v1562
        %v1685 = vadd.f32 %v1294, %v1567
        %v1686 = vadd.f32 %v1295, %v1572
        %v1687 = vadd.f32 %v1296, %v1577
        %v1688 = vadd.f32 %v1297, %v1582
        %v1689 = vadd.f32 %v1298, %v1587
        %v1690 = vadd.f32 %v1299, %v1592
        %v1691 = vadd.f32 %v1300, %v1597
        %v1692 = vadd.f32 %v1301, %v1602
        %v1693 = vadd.f32 %v1302, %v1607
        %v1694 = vadd.f32 %v1303, %v1612
        %v1695 = vadd.f32 %v1304, %v1617
        %v1696 = vadd.f32 %v1305, %v1622
        %v1697 = vadd.f32 %v1306, %v1627
        %v1698 = vadd.f32 %v1307, %v1632
        %v1699 = vadd.f32 %v1308, %v1637
        %v1700 = vadd.f32 %v1309, %v1642
        %v1701 = vadd.f32 %v1310, %v1647
        %v1702 = vadd.f32 %v1311, %v1652
        %v1703 = vadd.f32 %v1312, %v1657
        %v1704 = vadd.f32 %v1313, %v1662
        %v1705 = vadd.f32 %v1314, %v1667
        %v1706 = vadd.f32 %v1315, %v1672
        %v1707 = vld [vmem:[%s1316 + $0x1] sm:$0xff]
        %v1708 = vld [vmem:[%s1316 + $0x9] sm:$0xff]
        %v1709 = vld [vmem:[%s1316 + $0x19] sm:$0xff]
        %v1710 = vld [vmem:[%s1316 + $0x21] sm:$0xff]
        %v1711 = vld [vmem:[%s1316 + $0x31] sm:$0xff]
        %v1712 = vld [vmem:[%s1316 + $0x39] sm:$0xff]
        %v1713 = vld [vmem:[%s1316 + $0x49] sm:$0xff]
        %v1714 = vld [vmem:[%s1316 + $0x51] sm:$0xff]
        %v1715 = vld [vmem:[%s1316 + $0x61] sm:$0xff]
        %v1716 = vld [vmem:[%s1316 + $0x69] sm:$0xff]
        %v1717 = vld [vmem:[%s1316 + $0x79] sm:$0xff]
        %v1718 = vld [vmem:[%s1316 + $0x81] sm:$0xff]
        %v1719 = vld [vmem:[%s1316 + $0x91] sm:$0xff]
        %v1720 = vld [vmem:[%s1316 + $0x99] sm:$0xff]
        %v1721 = vld [vmem:[%s1316 + $0xa9] sm:$0xff]
        %v1722 = vld [vmem:[%s1316 + $0xb1] sm:$0xff]
        %v1723 = vld [vmem:[%s1316 + $0xc1] sm:$0xff]
        %v1724 = vld [vmem:[%s1316 + $0xc9] sm:$0xff]
        %v1725 = vld [vmem:[%s1316 + $0xd9] sm:$0xff]
        %v1726 = vld [vmem:[%s1316 + $0xe1] sm:$0xff]
        %v1727 = vld [vmem:[%s1316 + $0xf1] sm:$0xff]
        %v1728 = vld [vmem:[%s1316 + $0xf9] sm:$0xff]
        %v1729 = vld [vmem:[%s1316 + $0x109] sm:$0xff]
        %v1730 = vld [vmem:[%s1316 + $0x111] sm:$0xff]
        %v1731 = vld [vmem:[%s1316 + $0x121] sm:$0xff]
        %v1732 = vld [vmem:[%s1316 + $0x129] sm:$0xff]
        %v1733 = vld [vmem:[%s1316 + $0x139] sm:$0xff]
        %v1734 = vld [vmem:[%s1316 + $0x141] sm:$0xff]
        %v1735 = vld [vmem:[%s1316 + $0x151] sm:$0xff]
        %v1736 = vld [vmem:[%s1316 + $0x159] sm:$0xff]
        %v1737 = vld [vmem:[%s1316 + $0x169] sm:$0xff]
        %v1738 = vld [vmem:[%s1316 + $0x171] sm:$0xff]
        %s1739 = scalar_lea.vmem %s1, 16
        %v1740 = vld [vmem:[%s1739] sm:$0xf]
        %v1742 = vsel %vm276, %v1707, 0
        %v1745 = vsel %vm276, %v1708, 0
        %v1748 = vsel %vm276, %v1709, 0
        %v1751 = vsel %vm276, %v1710, 0
        %v1754 = vsel %vm276, %v1711, 0
        %v1757 = vsel %vm276, %v1712, 0
        %v1760 = vsel %vm276, %v1713, 0
        %v1763 = vsel %vm276, %v1714, 0
        %v1766 = vsel %vm276, %v1715, 0
        %v1769 = vsel %vm276, %v1716, 0
        %v1772 = vsel %vm276, %v1717, 0
        %v1775 = vsel %vm276, %v1718, 0
        %v1778 = vsel %vm276, %v1719, 0
        %v1781 = vsel %vm276, %v1720, 0
        %v1784 = vsel %vm276, %v1721, 0
        %v1787 = vsel %vm276, %v1722, 0
        %v1790 = vsel %vm276, %v1723, 0
        %v1793 = vsel %vm276, %v1724, 0
        %v1796 = vsel %vm276, %v1725, 0
        %v1799 = vsel %vm276, %v1726, 0
        %v1802 = vsel %vm276, %v1727, 0
        %v1805 = vsel %vm276, %v1728, 0
        %v1808 = vsel %vm276, %v1729, 0
        %v1811 = vsel %vm276, %v1730, 0
        %v1814 = vsel %vm276, %v1731, 0
        %v1817 = vsel %vm276, %v1732, 0
        %v1820 = vsel %vm276, %v1733, 0
        %v1823 = vsel %vm276, %v1734, 0
        %v1826 = vsel %vm276, %v1735, 0
        %v1829 = vsel %vm276, %v1736, 0
        %v1832 = vsel %vm276, %v1737, 0
        %v1835 = vsel %vm276, %v1738, 0
        %v1838 = vsel %vm373, %v1740, 0
        %1840 = vmatprep.subr.mxu0 0.0
        %1841 = vmatpush1.msra.mxu0 %v1838
        %1842 = vmatprep.subr.mxu0 0.0
        %1843 = vmatpush1.msra.mxu0 0.0
        %1844 = vmatprep.subr.mxu0 0.0
        %1845 = vmatpush1.msra.mxu0 0.0
        %1846 = vmatprep.subr.mxu0 0.0
        %1847 = vmatpush1.msra.mxu0 0.0
        %1848 = vmatprep.subr.mxu0 0.0
        %1849 = vmatpush1.msra.mxu0 0.0
        %1850 = vmatprep.subr.mxu0 0.0
        %1851 = vmatpush1.msra.mxu0 0.0
        %1852 = vmatprep.subr.mxu0 0.0
        %1853 = vmatpush1.msra.mxu0 0.0
        %1854 = vmatprep.subr.mxu0 0.0
        %1855 = vmatpush1.msra.mxu0 0.0
        %1856 = vmatprep.subr.mxu0 0.0
        %1857 = vmatpush1.msra.mxu0 0.0
        %1858 = vmatprep.subr.mxu0 0.0
        %1859 = vmatpush1.msra.mxu0 0.0
        %1860 = vmatprep.subr.mxu0 0.0
        %1861 = vmatpush1.msra.mxu0 0.0
        %1862 = vmatprep.subr.mxu0 0.0
        %1863 = vmatpush1.msra.mxu0 0.0
        %1864 = vmatprep.subr.mxu0 0.0
        %1865 = vmatpush1.msra.mxu0 0.0
        %1866 = vmatprep.subr.mxu0 0.0
        %1867 = vmatpush1.msra.mxu0 0.0
        %1868 = vmatprep.subr.mxu0 0.0
        %1869 = vmatpush1.msra.mxu0 0.0
        %1870 = vmatprep.subr.mxu0 0.0
        %1871 = vmatpush1.msra.mxu0 0.0
        %1872 = vmatprep.subr.mxu0 0.0
        %1873 = vmatpush1.msra.mxu0 0.0
        %1874 = vmatprep.subr.mxu0 0.0
        %1875 = vmatpush1.msra.mxu0 0.0
        %1876 = vmatprep.subr.mxu0 0.0
        %1877 = vmatpush1.msra.mxu0 0.0
        %1878 = vmatprep.subr.mxu0 0.0
        %1879 = vmatpush1.msra.mxu0 0.0
        %1880 = vmatprep.subr.mxu0 0.0
        %1881 = vmatpush1.msra.mxu0 0.0
        %1882 = vmatprep.subr.mxu0 0.0
        %1883 = vmatpush1.msra.mxu0 0.0
        %1884 = vmatprep.subr.mxu0 0.0
        %1885 = vmatpush1.msra.mxu0 0.0
        %1886 = vmatprep.subr.mxu0 0.0
        %1887 = vmatpush1.msra.mxu0 0.0
        %1888 = vmatprep.subr.mxu0 0.0
        %1889 = vmatpush1.msra.mxu0 0.0
        %1890 = vmatprep.subr.mxu0 0.0
        %1891 = vmatpush1.msra.mxu0 0.0
        %1892 = vmatprep.subr.mxu0 0.0
        %1893 = vmatpush1.msra.mxu0 0.0
        %1894 = vmatprep.subr.mxu0 0.0
        %1895 = vmatpush1.msra.mxu0 0.0
        %1896 = vmatprep.subr.mxu0 0.0
        %1897 = vmatpush1.msra.mxu0 0.0
        %1898 = vmatprep.subr.mxu0 0.0
        %1899 = vmatpush1.msra.mxu0 0.0
        %1900 = vmatprep.subr.mxu0 0.0
        %1901 = vmatpush1.msra.mxu0 0.0
        %1902 = vmatprep.subr.mxu0 0.0
        %1903 = vmatpush1.msra.mxu0 0.0
        %1904 = vmatprep.mubr.f32.mxu0 0.0
        %1905 = vmatmul.mubr.f32.gmra.mrb[0].mxu0 %v1742
        %v1906 = vpop.f32.mrb[0].mxu0
        %v1907 = vadd.f32 0.0, %v1906
        %v1908 = vpop.f32.mrb[0].mxu0
        %1909 = vmatprep.mubr.f32.mxu0 0.0
        %1910 = vmatmul.mubr.f32.gmra.mrb[0].mxu0 %v1745
        %v1911 = vpop.f32.mrb[0].mxu0
        %v1912 = vadd.f32 0.0, %v1911
        %v1913 = vpop.f32.mrb[0].mxu0
        %1914 = vmatprep.mubr.f32.mxu0 0.0
        %1915 = vmatmul.mubr.f32.gmra.mrb[0].mxu0 %v1748
        %v1916 = vpop.f32.mrb[0].mxu0
        %v1917 = vadd.f32 0.0, %v1916
        %v1918 = vpop.f32.mrb[0].mxu0
        %1919 = vmatprep.mubr.f32.mxu0 0.0
        %1920 = vmatmul.mubr.f32.gmra.mrb[0].mxu0 %v1751
        %v1921 = vpop.f32.mrb[0].mxu0
        %v1922 = vadd.f32 0.0, %v1921
        %v1923 = vpop.f32.mrb[0].mxu0
        %1924 = vmatprep.mubr.f32.mxu0 0.0
        %1925 = vmatmul.mubr.f32.gmra.mrb[0].mxu0 %v1754
        %v1926 = vpop.f32.mrb[0].mxu0
        %v1927 = vadd.f32 0.0, %v1926
        %v1928 = vpop.f32.mrb[0].mxu0
        %1929 = vmatprep.mubr.f32.mxu0 0.0
        %1930 = vmatmul.mubr.f32.gmra.mrb[0].mxu0 %v1757
        %v1931 = vpop.f32.mrb[0].mxu0
        %v1932 = vadd.f32 0.0, %v1931
        %v1933 = vpop.f32.mrb[0].mxu0
        %1934 = vmatprep.mubr.f32.mxu0 0.0
        %1935 = vmatmul.mubr.f32.gmra.mrb[0].mxu0 %v1760
        %v1936 = vpop.f32.mrb[0].mxu0
        %v1937 = vadd.f32 0.0, %v1936
        %v1938 = vpop.f32.mrb[0].mxu0
        %1939 = vmatprep.mubr.f32.mxu0 0.0
        %1940 = vmatmul.mubr.f32.gmra.mrb[0].mxu0 %v1763
        %v1941 = vpop.f32.mrb[0].mxu0
        %v1942 = vadd.f32 0.0, %v1941
        %v1943 = vpop.f32.mrb[0].mxu0
        %1944 = vmatprep.mubr.f32.mxu0 0.0
        %1945 = vmatmul.mubr.f32.gmra.mrb[0].mxu0 %v1766
        %v1946 = vpop.f32.mrb[0].mxu0
        %v1947 = vadd.f32 0.0, %v1946
        %v1948 = vpop.f32.mrb[0].mxu0
        %1949 = vmatprep.mubr.f32.mxu0 0.0
        %1950 = vmatmul.mubr.f32.gmra.mrb[0].mxu0 %v1769
        %v1951 = vpop.f32.mrb[0].mxu0
        %v1952 = vadd.f32 0.0, %v1951
        %v1953 = vpop.f32.mrb[0].mxu0
        %1954 = vmatprep.mubr.f32.mxu0 0.0
        %1955 = vmatmul.mubr.f32.gmra.mrb[0].mxu0 %v1772
        %v1956 = vpop.f32.mrb[0].mxu0
        %v1957 = vadd.f32 0.0, %v1956
        %v1958 = vpop.f32.mrb[0].mxu0
        %1959 = vmatprep.mubr.f32.mxu0 0.0
        %1960 = vmatmul.mubr.f32.gmra.mrb[0].mxu0 %v1775
        %v1961 = vpop.f32.mrb[0].mxu0
        %v1962 = vadd.f32 0.0, %v1961
        %v1963 = vpop.f32.mrb[0].mxu0
        %1964 = vmatprep.mubr.f32.mxu0 0.0
        %1965 = vmatmul.mubr.f32.gmra.mrb[0].mxu0 %v1778
        %v1966 = vpop.f32.mrb[0].mxu0
        %v1967 = vadd.f32 0.0, %v1966
        %v1968 = vpop.f32.mrb[0].mxu0
        %1969 = vmatprep.mubr.f32.mxu0 0.0
        %1970 = vmatmul.mubr.f32.gmra.mrb[0].mxu0 %v1781
        %v1971 = vpop.f32.mrb[0].mxu0
        %v1972 = vadd.f32 0.0, %v1971
        %v1973 = vpop.f32.mrb[0].mxu0
        %1974 = vmatprep.mubr.f32.mxu0 0.0
        %1975 = vmatmul.mubr.f32.gmra.mrb[0].mxu0 %v1784
        %v1976 = vpop.f32.mrb[0].mxu0
        %v1977 = vadd.f32 0.0, %v1976
        %v1978 = vpop.f32.mrb[0].mxu0
        %1979 = vmatprep.mubr.f32.mxu0 0.0
        %1980 = vmatmul.mubr.f32.gmra.mrb[0].mxu0 %v1787
        %v1981 = vpop.f32.mrb[0].mxu0
        %v1982 = vadd.f32 0.0, %v1981
        %v1983 = vpop.f32.mrb[0].mxu0
        %1984 = vmatprep.mubr.f32.mxu0 0.0
        %1985 = vmatmul.mubr.f32.gmra.mrb[0].mxu0 %v1790
        %v1986 = vpop.f32.mrb[0].mxu0
        %v1987 = vadd.f32 0.0, %v1986
        %v1988 = vpop.f32.mrb[0].mxu0
        %1989 = vmatprep.mubr.f32.mxu0 0.0
        %1990 = vmatmul.mubr.f32.gmra.mrb[0].mxu0 %v1793
        %v1991 = vpop.f32.mrb[0].mxu0
        %v1992 = vadd.f32 0.0, %v1991
        %v1993 = vpop.f32.mrb[0].mxu0
        %1994 = vmatprep.mubr.f32.mxu0 0.0
        %1995 = vmatmul.mubr.f32.gmra.mrb[0].mxu0 %v1796
        %v1996 = vpop.f32.mrb[0].mxu0
        %v1997 = vadd.f32 0.0, %v1996
        %v1998 = vpop.f32.mrb[0].mxu0
        %1999 = vmatprep.mubr.f32.mxu0 0.0
        %2000 = vmatmul.mubr.f32.gmra.mrb[0].mxu0 %v1799
        %v2001 = vpop.f32.mrb[0].mxu0
        %v2002 = vadd.f32 0.0, %v2001
        %v2003 = vpop.f32.mrb[0].mxu0
        %2004 = vmatprep.mubr.f32.mxu0 0.0
        %2005 = vmatmul.mubr.f32.gmra.mrb[0].mxu0 %v1802
        %v2006 = vpop.f32.mrb[0].mxu0
        %v2007 = vadd.f32 0.0, %v2006
        %v2008 = vpop.f32.mrb[0].mxu0
        %2009 = vmatprep.mubr.f32.mxu0 0.0
        %2010 = vmatmul.mubr.f32.gmra.mrb[0].mxu0 %v1805
        %v2011 = vpop.f32.mrb[0].mxu0
        %v2012 = vadd.f32 0.0, %v2011
        %v2013 = vpop.f32.mrb[0].mxu0
        %2014 = vmatprep.mubr.f32.mxu0 0.0
        %2015 = vmatmul.mubr.f32.gmra.mrb[0].mxu0 %v1808
        %v2016 = vpop.f32.mrb[0].mxu0
        %v2017 = vadd.f32 0.0, %v2016
        %v2018 = vpop.f32.mrb[0].mxu0
        %2019 = vmatprep.mubr.f32.mxu0 0.0
        %2020 = vmatmul.mubr.f32.gmra.mrb[0].mxu0 %v1811
        %v2021 = vpop.f32.mrb[0].mxu0
        %v2022 = vadd.f32 0.0, %v2021
        %v2023 = vpop.f32.mrb[0].mxu0
        %2024 = vmatprep.mubr.f32.mxu0 0.0
        %2025 = vmatmul.mubr.f32.gmra.mrb[0].mxu0 %v1814
        %v2026 = vpop.f32.mrb[0].mxu0
        %v2027 = vadd.f32 0.0, %v2026
        %v2028 = vpop.f32.mrb[0].mxu0
        %2029 = vmatprep.mubr.f32.mxu0 0.0
        %2030 = vmatmul.mubr.f32.gmra.mrb[0].mxu0 %v1817
        %v2031 = vpop.f32.mrb[0].mxu0
        %v2032 = vadd.f32 0.0, %v2031
        %v2033 = vpop.f32.mrb[0].mxu0
        %2034 = vmatprep.mubr.f32.mxu0 0.0
        %2035 = vmatmul.mubr.f32.gmra.mrb[0].mxu0 %v1820
        %v2036 = vpop.f32.mrb[0].mxu0
        %v2037 = vadd.f32 0.0, %v2036
        %v2038 = vpop.f32.mrb[0].mxu0
        %2039 = vmatprep.mubr.f32.mxu0 0.0
        %2040 = vmatmul.mubr.f32.gmra.mrb[0].mxu0 %v1823
        %v2041 = vpop.f32.mrb[0].mxu0
        %v2042 = vadd.f32 0.0, %v2041
        %v2043 = vpop.f32.mrb[0].mxu0
        %2044 = vmatprep.mubr.f32.mxu0 0.0
        %2045 = vmatmul.mubr.f32.gmra.mrb[0].mxu0 %v1826
        %v2046 = vpop.f32.mrb[0].mxu0
        %v2047 = vadd.f32 0.0, %v2046
        %v2048 = vpop.f32.mrb[0].mxu0
        %2049 = vmatprep.mubr.f32.mxu0 0.0
        %2050 = vmatmul.mubr.f32.gmra.mrb[0].mxu0 %v1829
        %v2051 = vpop.f32.mrb[0].mxu0
        %v2052 = vadd.f32 0.0, %v2051
        %v2053 = vpop.f32.mrb[0].mxu0
        %2054 = vmatprep.mubr.f32.mxu0 0.0
        %2055 = vmatmul.mubr.f32.gmra.mrb[0].mxu0 %v1832
        %v2056 = vpop.f32.mrb[0].mxu0
        %v2057 = vadd.f32 0.0, %v2056
        %v2058 = vpop.f32.mrb[0].mxu0
        %2059 = vmatprep.mubr.f32.mxu0 0.0
        %2060 = vmatmul.mubr.f32.gmra.mrb[0].mxu0 %v1835
        %v2061 = vpop.f32.mrb[0].mxu0
        %v2062 = vadd.f32 0.0, %v2061
        %v2063 = vpop.f32.mrb[0].mxu0
        %2064 = vdwg.mxu0
        %v2065 = vadd.f32 %v1675, %v1907
        %v2066 = vadd.f32 %v1676, %v1912
        %v2067 = vadd.f32 %v1677, %v1917
        %v2068 = vadd.f32 %v1678, %v1922
        %v2069 = vadd.f32 %v1679, %v1927
        %v2070 = vadd.f32 %v1680, %v1932
        %v2071 = vadd.f32 %v1681, %v1937
        %v2072 = vadd.f32 %v1682, %v1942
        %v2073 = vadd.f32 %v1683, %v1947
        %v2074 = vadd.f32 %v1684, %v1952
        %v2075 = vadd.f32 %v1685, %v1957
        %v2076 = vadd.f32 %v1686, %v1962
        %v2077 = vadd.f32 %v1687, %v1967
        %v2078 = vadd.f32 %v1688, %v1972
        %v2079 = vadd.f32 %v1689, %v1977
        %v2080 = vadd.f32 %v1690, %v1982
        %v2081 = vadd.f32 %v1691, %v1987
        %v2082 = vadd.f32 %v1692, %v1992
        %v2083 = vadd.f32 %v1693, %v1997
        %v2084 = vadd.f32 %v1694, %v2002
        %v2085 = vadd.f32 %v1695, %v2007
        %v2086 = vadd.f32 %v1696, %v2012
        %v2087 = vadd.f32 %v1697, %v2017
        %v2088 = vadd.f32 %v1698, %v2022
        %v2089 = vadd.f32 %v1699, %v2027
        %v2090 = vadd.f32 %v1700, %v2032
        %v2091 = vadd.f32 %v1701, %v2037
        %v2092 = vadd.f32 %v1702, %v2042
        %v2093 = vadd.f32 %v1703, %v2047
        %v2094 = vadd.f32 %v1704, %v2052
        %v2095 = vadd.f32 %v1705, %v2057
        %v2096 = vadd.f32 %v1706, %v2062
        %v2097 = vld [vmem:[%s1316 + $0x2] sm:$0xff]
        %v2098 = vld [vmem:[%s1316 + $0xa] sm:$0xff]
        %v2099 = vld [vmem:[%s1316 + $0x1a] sm:$0xff]
        %v2100 = vld [vmem:[%s1316 + $0x22] sm:$0xff]
        %v2101 = vld [vmem:[%s1316 + $0x32] sm:$0xff]
        %v2102 = vld [vmem:[%s1316 + $0x3a] sm:$0xff]
        %v2103 = vld [vmem:[%s1316 + $0x4a] sm:$0xff]
        %v2104 = vld [vmem:[%s1316 + $0x52] sm:$0xff]
        %v2105 = vld [vmem:[%s1316 + $0x62] sm:$0xff]
        %v2106 = vld [vmem:[%s1316 + $0x6a] sm:$0xff]
        %v2107 = vld [vmem:[%s1316 + $0x7a] sm:$0xff]
        %v2108 = vld [vmem:[%s1316 + $0x82] sm:$0xff]
        %v2109 = vld [vmem:[%s1316 + $0x92] sm:$0xff]
        %v2110 = vld [vmem:[%s1316 + $0x9a] sm:$0xff]
        %v2111 = vld [vmem:[%s1316 + $0xaa] sm:$0xff]
        %v2112 = vld [vmem:[%s1316 + $0xb2] sm:$0xff]
        %v2113 = vld [vmem:[%s1316 + $0xc2] sm:$0xff]
        %v2114 = vld [vmem:[%s1316 + $0xca] sm:$0xff]
        %v2115 = vld [vmem:[%s1316 + $0xda] sm:$0xff]
        %v2116 = vld [vmem:[%s1316 + $0xe2] sm:$0xff]
        %v2117 = vld [vmem:[%s1316 + $0xf2] sm:$0xff]
        %v2118 = vld [vmem:[%s1316 + $0xfa] sm:$0xff]
        %v2119 = vld [vmem:[%s1316 + $0x10a] sm:$0xff]
        %v2120 = vld [vmem:[%s1316 + $0x112] sm:$0xff]
        %v2121 = vld [vmem:[%s1316 + $0x122] sm:$0xff]
        %v2122 = vld [vmem:[%s1316 + $0x12a] sm:$0xff]
        %v2123 = vld [vmem:[%s1316 + $0x13a] sm:$0xff]
        %v2124 = vld [vmem:[%s1316 + $0x142] sm:$0xff]
        %v2125 = vld [vmem:[%s1316 + $0x152] sm:$0xff]
        %v2126 = vld [vmem:[%s1316 + $0x15a] sm:$0xff]
        %v2127 = vld [vmem:[%s1316 + $0x16a] sm:$0xff]
        %v2128 = vld [vmem:[%s1316 + $0x172] sm:$0xff]
        %s2129 = scalar_lea.vmem %s1, 20
        %v2130 = vld [vmem:[%s2129] sm:$0xf]
        %v2132 = vsel %vm276, %v2097, 0
        %v2135 = vsel %vm276, %v2098, 0
        %v2138 = vsel %vm276, %v2099, 0
        %v2141 = vsel %vm276, %v2100, 0
        %v2144 = vsel %vm276, %v2101, 0
        %v2147 = vsel %vm276, %v2102, 0
        %v2150 = vsel %vm276, %v2103, 0
        %v2153 = vsel %vm276, %v2104, 0
        %v2156 = vsel %vm276, %v2105, 0
        %v2159 = vsel %vm276, %v2106, 0
        %v2162 = vsel %vm276, %v2107, 0
        %v2165 = vsel %vm276, %v2108, 0
        %v2168 = vsel %vm276, %v2109, 0
        %v2171 = vsel %vm276, %v2110, 0
        %v2174 = vsel %vm276, %v2111, 0
        %v2177 = vsel %vm276, %v2112, 0
        %v2180 = vsel %vm276, %v2113, 0
        %v2183 = vsel %vm276, %v2114, 0
        %v2186 = vsel %vm276, %v2115, 0
        %v2189 = vsel %vm276, %v2116, 0
        %v2192 = vsel %vm276, %v2117, 0
        %v2195 = vsel %vm276, %v2118, 0
        %v2198 = vsel %vm276, %v2119, 0
        %v2201 = vsel %vm276, %v2120, 0
        %v2204 = vsel %vm276, %v2121, 0
        %v2207 = vsel %vm276, %v2122, 0
        %v2210 = vsel %vm276, %v2123, 0
        %v2213 = vsel %vm276, %v2124, 0
        %v2216 = vsel %vm276, %v2125, 0
        %v2219 = vsel %vm276, %v2126, 0
        %v2222 = vsel %vm276, %v2127, 0
        %v2225 = vsel %vm276, %v2128, 0
        %v2228 = vsel %vm373, %v2130, 0
        %2230 = vmatprep.subr.mxu0 0.0
        %2231 = vmatpush1.msra.mxu0 %v2228
        %2232 = vmatprep.subr.mxu0 0.0
        %2233 = vmatpush1.msra.mxu0 0.0
        %2234 = vmatprep.subr.mxu0 0.0
        %2235 = vmatpush1.msra.mxu0 0.0
        %2236 = vmatprep.subr.mxu0 0.0
        %2237 = vmatpush1.msra.mxu0 0.0
        %2238 = vmatprep.subr.mxu0 0.0
        %2239 = vmatpush1.msra.mxu0 0.0
        %2240 = vmatprep.subr.mxu0 0.0
        %2241 = vmatpush1.msra.mxu0 0.0
        %2242 = vmatprep.subr.mxu0 0.0
        %2243 = vmatpush1.msra.mxu0 0.0
        %2244 = vmatprep.subr.mxu0 0.0
        %2245 = vmatpush1.msra.mxu0 0.0
        %2246 = vmatprep.subr.mxu0 0.0
        %2247 = vmatpush1.msra.mxu0 0.0
        %2248 = vmatprep.subr.mxu0 0.0
        %2249 = vmatpush1.msra.mxu0 0.0
        %2250 = vmatprep.subr.mxu0 0.0
        %2251 = vmatpush1.msra.mxu0 0.0
        %2252 = vmatprep.subr.mxu0 0.0
        %2253 = vmatpush1.msra.mxu0 0.0
        %2254 = vmatprep.subr.mxu0 0.0
        %2255 = vmatpush1.msra.mxu0 0.0
        %2256 = vmatprep.subr.mxu0 0.0
        %2257 = vmatpush1.msra.mxu0 0.0
        %2258 = vmatprep.subr.mxu0 0.0
        %2259 = vmatpush1.msra.mxu0 0.0
        %2260 = vmatprep.subr.mxu0 0.0
        %2261 = vmatpush1.msra.mxu0 0.0
        %2262 = vmatprep.subr.mxu0 0.0
        %2263 = vmatpush1.msra.mxu0 0.0
        %2264 = vmatprep.subr.mxu0 0.0
        %2265 = vmatpush1.msra.mxu0 0.0
        %2266 = vmatprep.subr.mxu0 0.0
        %2267 = vmatpush1.msra.mxu0 0.0
        %2268 = vmatprep.subr.mxu0 0.0
        %2269 = vmatpush1.msra.mxu0 0.0
        %2270 = vmatprep.subr.mxu0 0.0
        %2271 = vmatpush1.msra.mxu0 0.0
        %2272 = vmatprep.subr.mxu0 0.0
        %2273 = vmatpush1.msra.mxu0 0.0
        %2274 = vmatprep.subr.mxu0 0.0
        %2275 = vmatpush1.msra.mxu0 0.0
        %2276 = vmatprep.subr.mxu0 0.0
        %2277 = vmatpush1.msra.mxu0 0.0
        %2278 = vmatprep.subr.mxu0 0.0
        %2279 = vmatpush1.msra.mxu0 0.0
        %2280 = vmatprep.subr.mxu0 0.0
        %2281 = vmatpush1.msra.mxu0 0.0
        %2282 = vmatprep.subr.mxu0 0.0
        %2283 = vmatpush1.msra.mxu0 0.0
        %2284 = vmatprep.subr.mxu0 0.0
        %2285 = vmatpush1.msra.mxu0 0.0
        %2286 = vmatprep.subr.mxu0 0.0
        %2287 = vmatpush1.msra.mxu0 0.0
        %2288 = vmatprep.subr.mxu0 0.0
        %2289 = vmatpush1.msra.mxu0 0.0
        %2290 = vmatprep.subr.mxu0 0.0
        %2291 = vmatpush1.msra.mxu0 0.0
        %2292 = vmatprep.subr.mxu0 0.0
        %2293 = vmatpush1.msra.mxu0 0.0
        %2294 = vmatprep.mubr.f32.mxu0 0.0
        %2295 = vmatmul.mubr.f32.gmra.mrb[0].mxu0 %v2132
        %v2296 = vpop.f32.mrb[0].mxu0
        %v2297 = vadd.f32 0.0, %v2296
        %v2298 = vpop.f32.mrb[0].mxu0
        %2299 = vmatprep.mubr.f32.mxu0 0.0
        %2300 = vmatmul.mubr.f32.gmra.mrb[0].mxu0 %v2135
        %v2301 = vpop.f32.mrb[0].mxu0
        %v2302 = vadd.f32 0.0, %v2301
        %v2303 = vpop.f32.mrb[0].mxu0
        %2304 = vmatprep.mubr.f32.mxu0 0.0
        %2305 = vmatmul.mubr.f32.gmra.mrb[0].mxu0 %v2138
        %v2306 = vpop.f32.mrb[0].mxu0
        %v2307 = vadd.f32 0.0, %v2306
        %v2308 = vpop.f32.mrb[0].mxu0
        %2309 = vmatprep.mubr.f32.mxu0 0.0
        %2310 = vmatmul.mubr.f32.gmra.mrb[0].mxu0 %v2141
        %v2311 = vpop.f32.mrb[0].mxu0
        %v2312 = vadd.f32 0.0, %v2311
        %v2313 = vpop.f32.mrb[0].mxu0
        %2314 = vmatprep.mubr.f32.mxu0 0.0
        %2315 = vmatmul.mubr.f32.gmra.mrb[0].mxu0 %v2144
        %v2316 = vpop.f32.mrb[0].mxu0
        %v2317 = vadd.f32 0.0, %v2316
        %v2318 = vpop.f32.mrb[0].mxu0
        %2319 = vmatprep.mubr.f32.mxu0 0.0
        %2320 = vmatmul.mubr.f32.gmra.mrb[0].mxu0 %v2147
        %v2321 = vpop.f32.mrb[0].mxu0
        %v2322 = vadd.f32 0.0, %v2321
        %v2323 = vpop.f32.mrb[0].mxu0
        %2324 = vmatprep.mubr.f32.mxu0 0.0
        %2325 = vmatmul.mubr.f32.gmra.mrb[0].mxu0 %v2150
        %v2326 = vpop.f32.mrb[0].mxu0
        %v2327 = vadd.f32 0.0, %v2326
        %v2328 = vpop.f32.mrb[0].mxu0
        %2329 = vmatprep.mubr.f32.mxu0 0.0
        %2330 = vmatmul.mubr.f32.gmra.mrb[0].mxu0 %v2153
        %v2331 = vpop.f32.mrb[0].mxu0
        %v2332 = vadd.f32 0.0, %v2331
        %v2333 = vpop.f32.mrb[0].mxu0
        %2334 = vmatprep.mubr.f32.mxu0 0.0
        %2335 = vmatmul.mubr.f32.gmra.mrb[0].mxu0 %v2156
        %v2336 = vpop.f32.mrb[0].mxu0
        %v2337 = vadd.f32 0.0, %v2336
        %v2338 = vpop.f32.mrb[0].mxu0
        %2339 = vmatprep.mubr.f32.mxu0 0.0
        %2340 = vmatmul.mubr.f32.gmra.mrb[0].mxu0 %v2159
        %v2341 = vpop.f32.mrb[0].mxu0
        %v2342 = vadd.f32 0.0, %v2341
        %v2343 = vpop.f32.mrb[0].mxu0
        %2344 = vmatprep.mubr.f32.mxu0 0.0
        %2345 = vmatmul.mubr.f32.gmra.mrb[0].mxu0 %v2162
        %v2346 = vpop.f32.mrb[0].mxu0
        %v2347 = vadd.f32 0.0, %v2346
        %v2348 = vpop.f32.mrb[0].mxu0
        %2349 = vmatprep.mubr.f32.mxu0 0.0
        %2350 = vmatmul.mubr.f32.gmra.mrb[0].mxu0 %v2165
        %v2351 = vpop.f32.mrb[0].mxu0
        %v2352 = vadd.f32 0.0, %v2351
        %v2353 = vpop.f32.mrb[0].mxu0
        %2354 = vmatprep.mubr.f32.mxu0 0.0
        %2355 = vmatmul.mubr.f32.gmra.mrb[0].mxu0 %v2168
        %v2356 = vpop.f32.mrb[0].mxu0
        %v2357 = vadd.f32 0.0, %v2356
        %v2358 = vpop.f32.mrb[0].mxu0
        %2359 = vmatprep.mubr.f32.mxu0 0.0
        %2360 = vmatmul.mubr.f32.gmra.mrb[0].mxu0 %v2171
        %v2361 = vpop.f32.mrb[0].mxu0
        %v2362 = vadd.f32 0.0, %v2361
        %v2363 = vpop.f32.mrb[0].mxu0
        %2364 = vmatprep.mubr.f32.mxu0 0.0
        %2365 = vmatmul.mubr.f32.gmra.mrb[0].mxu0 %v2174
        %v2366 = vpop.f32.mrb[0].mxu0
        %v2367 = vadd.f32 0.0, %v2366
        %v2368 = vpop.f32.mrb[0].mxu0
        %2369 = vmatprep.mubr.f32.mxu0 0.0
        %2370 = vmatmul.mubr.f32.gmra.mrb[0].mxu0 %v2177
        %v2371 = vpop.f32.mrb[0].mxu0
        %v2372 = vadd.f32 0.0, %v2371
        %v2373 = vpop.f32.mrb[0].mxu0
        %2374 = vmatprep.mubr.f32.mxu0 0.0
        %2375 = vmatmul.mubr.f32.gmra.mrb[0].mxu0 %v2180
        %v2376 = vpop.f32.mrb[0].mxu0
        %v2377 = vadd.f32 0.0, %v2376
        %v2378 = vpop.f32.mrb[0].mxu0
        %2379 = vmatprep.mubr.f32.mxu0 0.0
        %2380 = vmatmul.mubr.f32.gmra.mrb[0].mxu0 %v2183
        %v2381 = vpop.f32.mrb[0].mxu0
        %v2382 = vadd.f32 0.0, %v2381
        %v2383 = vpop.f32.mrb[0].mxu0
        %2384 = vmatprep.mubr.f32.mxu0 0.0
        %2385 = vmatmul.mubr.f32.gmra.mrb[0].mxu0 %v2186
        %v2386 = vpop.f32.mrb[0].mxu0
        %v2387 = vadd.f32 0.0, %v2386
        %v2388 = vpop.f32.mrb[0].mxu0
        %2389 = vmatprep.mubr.f32.mxu0 0.0
        %2390 = vmatmul.mubr.f32.gmra.mrb[0].mxu0 %v2189
        %v2391 = vpop.f32.mrb[0].mxu0
        %v2392 = vadd.f32 0.0, %v2391
        %v2393 = vpop.f32.mrb[0].mxu0
        %2394 = vmatprep.mubr.f32.mxu0 0.0
        %2395 = vmatmul.mubr.f32.gmra.mrb[0].mxu0 %v2192
        %v2396 = vpop.f32.mrb[0].mxu0
        %v2397 = vadd.f32 0.0, %v2396
        %v2398 = vpop.f32.mrb[0].mxu0
        %2399 = vmatprep.mubr.f32.mxu0 0.0
        %2400 = vmatmul.mubr.f32.gmra.mrb[0].mxu0 %v2195
        %v2401 = vpop.f32.mrb[0].mxu0
        %v2402 = vadd.f32 0.0, %v2401
        %v2403 = vpop.f32.mrb[0].mxu0
        %2404 = vmatprep.mubr.f32.mxu0 0.0
        %2405 = vmatmul.mubr.f32.gmra.mrb[0].mxu0 %v2198
        %v2406 = vpop.f32.mrb[0].mxu0
        %v2407 = vadd.f32 0.0, %v2406
        %v2408 = vpop.f32.mrb[0].mxu0
        %2409 = vmatprep.mubr.f32.mxu0 0.0
        %2410 = vmatmul.mubr.f32.gmra.mrb[0].mxu0 %v2201
        %v2411 = vpop.f32.mrb[0].mxu0
        %v2412 = vadd.f32 0.0, %v2411
        %v2413 = vpop.f32.mrb[0].mxu0
        %2414 = vmatprep.mubr.f32.mxu0 0.0
        %2415 = vmatmul.mubr.f32.gmra.mrb[0].mxu0 %v2204
        %v2416 = vpop.f32.mrb[0].mxu0
        %v2417 = vadd.f32 0.0, %v2416
        %v2418 = vpop.f32.mrb[0].mxu0
        %2419 = vmatprep.mubr.f32.mxu0 0.0
        %2420 = vmatmul.mubr.f32.gmra.mrb[0].mxu0 %v2207
        %v2421 = vpop.f32.mrb[0].mxu0
        %v2422 = vadd.f32 0.0, %v2421
        %v2423 = vpop.f32.mrb[0].mxu0
        %2424 = vmatprep.mubr.f32.mxu0 0.0
        %2425 = vmatmul.mubr.f32.gmra.mrb[0].mxu0 %v2210
        %v2426 = vpop.f32.mrb[0].mxu0
        %v2427 = vadd.f32 0.0, %v2426
        %v2428 = vpop.f32.mrb[0].mxu0
        %2429 = vmatprep.mubr.f32.mxu0 0.0
        %2430 = vmatmul.mubr.f32.gmra.mrb[0].mxu0 %v2213
        %v2431 = vpop.f32.mrb[0].mxu0
        %v2432 = vadd.f32 0.0, %v2431
        %v2433 = vpop.f32.mrb[0].mxu0
        %2434 = vmatprep.mubr.f32.mxu0 0.0
        %2435 = vmatmul.mubr.f32.gmra.mrb[0].mxu0 %v2216
        %v2436 = vpop.f32.mrb[0].mxu0
        %v2437 = vadd.f32 0.0, %v2436
        %v2438 = vpop.f32.mrb[0].mxu0
        %2439 = vmatprep.mubr.f32.mxu0 0.0
        %2440 = vmatmul.mubr.f32.gmra.mrb[0].mxu0 %v2219
        %v2441 = vpop.f32.mrb[0].mxu0
        %v2442 = vadd.f32 0.0, %v2441
        %v2443 = vpop.f32.mrb[0].mxu0
        %2444 = vmatprep.mubr.f32.mxu0 0.0
        %2445 = vmatmul.mubr.f32.gmra.mrb[0].mxu0 %v2222
        %v2446 = vpop.f32.mrb[0].mxu0
        %v2447 = vadd.f32 0.0, %v2446
        %v2448 = vpop.f32.mrb[0].mxu0
        %2449 = vmatprep.mubr.f32.mxu0 0.0
        %2450 = vmatmul.mubr.f32.gmra.mrb[0].mxu0 %v2225
        %v2451 = vpop.f32.mrb[0].mxu0
        %v2452 = vadd.f32 0.0, %v2451
        %v2453 = vpop.f32.mrb[0].mxu0
        %2454 = vdwg.mxu0
        %v2455 = vadd.f32 %v2065, %v2297
        %v2456 = vadd.f32 %v2066, %v2302
        %v2457 = vadd.f32 %v2067, %v2307
        %v2458 = vadd.f32 %v2068, %v2312
        %v2459 = vadd.f32 %v2069, %v2317
        %v2460 = vadd.f32 %v2070, %v2322
        %v2461 = vadd.f32 %v2071, %v2327
        %v2462 = vadd.f32 %v2072, %v2332
        %v2463 = vadd.f32 %v2073, %v2337
        %v2464 = vadd.f32 %v2074, %v2342
        %v2465 = vadd.f32 %v2075, %v2347
        %v2466 = vadd.f32 %v2076, %v2352
        %v2467 = vadd.f32 %v2077, %v2357
        %v2468 = vadd.f32 %v2078, %v2362
        %v2469 = vadd.f32 %v2079, %v2367
        %v2470 = vadd.f32 %v2080, %v2372
        %v2471 = vadd.f32 %v2081, %v2377
        %v2472 = vadd.f32 %v2082, %v2382
        %v2473 = vadd.f32 %v2083, %v2387
        %v2474 = vadd.f32 %v2084, %v2392
        %v2475 = vadd.f32 %v2085, %v2397
        %v2476 = vadd.f32 %v2086, %v2402
        %v2477 = vadd.f32 %v2087, %v2407
        %v2478 = vadd.f32 %v2088, %v2412
        %v2479 = vadd.f32 %v2089, %v2417
        %v2480 = vadd.f32 %v2090, %v2422
        %v2481 = vadd.f32 %v2091, %v2427
        %v2482 = vadd.f32 %v2092, %v2432
        %v2483 = vadd.f32 %v2093, %v2437
        %v2484 = vadd.f32 %v2094, %v2442
        %v2485 = vadd.f32 %v2095, %v2447
        %v2486 = vadd.f32 %v2096, %v2452
        %s2487 = scalar_lea.vmem %s203, 48
        %v2488 = vld [vmem:[%s2487] sm:$0xff]
        %v2489 = vld [vmem:[%s2487 + $0x8] sm:$0xff]
        %v2490 = vld [vmem:[%s2487 + $0x18] sm:$0xff]
        %v2491 = vld [vmem:[%s2487 + $0x20] sm:$0xff]
        %v2492 = vld [vmem:[%s2487 + $0x30] sm:$0xff]
        %v2493 = vld [vmem:[%s2487 + $0x38] sm:$0xff]
        %v2494 = vld [vmem:[%s2487 + $0x48] sm:$0xff]
        %v2495 = vld [vmem:[%s2487 + $0x50] sm:$0xff]
        %v2496 = vld [vmem:[%s2487 + $0x60] sm:$0xff]
        %v2497 = vld [vmem:[%s2487 + $0x68] sm:$0xff]
        %v2498 = vld [vmem:[%s2487 + $0x78] sm:$0xff]
        %v2499 = vld [vmem:[%s2487 + $0x80] sm:$0xff]
        %v2500 = vld [vmem:[%s2487 + $0x90] sm:$0xff]
        %v2501 = vld [vmem:[%s2487 + $0x98] sm:$0xff]
        %v2502 = vld [vmem:[%s2487 + $0xa8] sm:$0xff]
        %v2503 = vld [vmem:[%s2487 + $0xb0] sm:$0xff]
        %v2504 = vld [vmem:[%s2487 + $0xc0] sm:$0xff]
        %v2505 = vld [vmem:[%s2487 + $0xc8] sm:$0xff]
        %v2506 = vld [vmem:[%s2487 + $0xd8] sm:$0xff]
        %v2507 = vld [vmem:[%s2487 + $0xe0] sm:$0xff]
        %v2508 = vld [vmem:[%s2487 + $0xf0] sm:$0xff]
        %v2509 = vld [vmem:[%s2487 + $0xf8] sm:$0xff]
        %v2510 = vld [vmem:[%s2487 + $0x108] sm:$0xff]
        %v2511 = vld [vmem:[%s2487 + $0x110] sm:$0xff]
        %v2512 = vld [vmem:[%s2487 + $0x120] sm:$0xff]
        %v2513 = vld [vmem:[%s2487 + $0x128] sm:$0xff]
        %v2514 = vld [vmem:[%s2487 + $0x138] sm:$0xff]
        %v2515 = vld [vmem:[%s2487 + $0x140] sm:$0xff]
        %v2516 = vld [vmem:[%s2487 + $0x150] sm:$0xff]
        %v2517 = vld [vmem:[%s2487 + $0x158] sm:$0xff]
        %v2518 = vld [vmem:[%s2487 + $0x168] sm:$0xff]
        %v2519 = vld [vmem:[%s2487 + $0x170] sm:$0xff]
        %s2520 = scalar_lea.vmem %s1, 24
        %v2521 = vld [vmem:[%s2520] sm:$0xf]
        %v2523 = vsel %vm276, %v2488, 0
        %v2526 = vsel %vm276, %v2489, 0
        %v2529 = vsel %vm276, %v2490, 0
        %v2532 = vsel %vm276, %v2491, 0
        %v2535 = vsel %vm276, %v2492, 0
        %v2538 = vsel %vm276, %v2493, 0
        %v2541 = vsel %vm276, %v2494, 0
        %v2544 = vsel %vm276, %v2495, 0
        %v2547 = vsel %vm276, %v2496, 0
        %v2550 = vsel %vm276, %v2497, 0
        %v2553 = vsel %vm276, %v2498, 0
        %v2556 = vsel %vm276, %v2499, 0
        %v2559 = vsel %vm276, %v2500, 0
        %v2562 = vsel %vm276, %v2501, 0
        %v2565 = vsel %vm276, %v2502, 0
        %v2568 = vsel %vm276, %v2503, 0
        %v2571 = vsel %vm276, %v2504, 0
        %v2574 = vsel %vm276, %v2505, 0
        %v2577 = vsel %vm276, %v2506, 0
        %v2580 = vsel %vm276, %v2507, 0
        %v2583 = vsel %vm276, %v2508, 0
        %v2586 = vsel %vm276, %v2509, 0
        %v2589 = vsel %vm276, %v2510, 0
        %v2592 = vsel %vm276, %v2511, 0
        %v2595 = vsel %vm276, %v2512, 0
        %v2598 = vsel %vm276, %v2513, 0
        %v2601 = vsel %vm276, %v2514, 0
        %v2604 = vsel %vm276, %v2515, 0
        %v2607 = vsel %vm276, %v2516, 0
        %v2610 = vsel %vm276, %v2517, 0
        %v2613 = vsel %vm276, %v2518, 0
        %v2616 = vsel %vm276, %v2519, 0
        %v2619 = vsel %vm373, %v2521, 0
        %2621 = vmatprep.subr.mxu0 0.0
        %2622 = vmatpush1.msra.mxu0 %v2619
        %2623 = vmatprep.subr.mxu0 0.0
        %2624 = vmatpush1.msra.mxu0 0.0
        %2625 = vmatprep.subr.mxu0 0.0
        %2626 = vmatpush1.msra.mxu0 0.0
        %2627 = vmatprep.subr.mxu0 0.0
        %2628 = vmatpush1.msra.mxu0 0.0
        %2629 = vmatprep.subr.mxu0 0.0
        %2630 = vmatpush1.msra.mxu0 0.0
        %2631 = vmatprep.subr.mxu0 0.0
        %2632 = vmatpush1.msra.mxu0 0.0
        %2633 = vmatprep.subr.mxu0 0.0
        %2634 = vmatpush1.msra.mxu0 0.0
        %2635 = vmatprep.subr.mxu0 0.0
        %2636 = vmatpush1.msra.mxu0 0.0
        %2637 = vmatprep.subr.mxu0 0.0
        %2638 = vmatpush1.msra.mxu0 0.0
        %2639 = vmatprep.subr.mxu0 0.0
        %2640 = vmatpush1.msra.mxu0 0.0
        %2641 = vmatprep.subr.mxu0 0.0
        %2642 = vmatpush1.msra.mxu0 0.0
        %2643 = vmatprep.subr.mxu0 0.0
        %2644 = vmatpush1.msra.mxu0 0.0
        %2645 = vmatprep.subr.mxu0 0.0
        %2646 = vmatpush1.msra.mxu0 0.0
        %2647 = vmatprep.subr.mxu0 0.0
        %2648 = vmatpush1.msra.mxu0 0.0
        %2649 = vmatprep.subr.mxu0 0.0
        %2650 = vmatpush1.msra.mxu0 0.0
        %2651 = vmatprep.subr.mxu0 0.0
        %2652 = vmatpush1.msra.mxu0 0.0
        %2653 = vmatprep.subr.mxu0 0.0
        %2654 = vmatpush1.msra.mxu0 0.0
        %2655 = vmatprep.subr.mxu0 0.0
        %2656 = vmatpush1.msra.mxu0 0.0
        %2657 = vmatprep.subr.mxu0 0.0
        %2658 = vmatpush1.msra.mxu0 0.0
        %2659 = vmatprep.subr.mxu0 0.0
        %2660 = vmatpush1.msra.mxu0 0.0
        %2661 = vmatprep.subr.mxu0 0.0
        %2662 = vmatpush1.msra.mxu0 0.0
        %2663 = vmatprep.subr.mxu0 0.0
        %2664 = vmatpush1.msra.mxu0 0.0
        %2665 = vmatprep.subr.mxu0 0.0
        %2666 = vmatpush1.msra.mxu0 0.0
        %2667 = vmatprep.subr.mxu0 0.0
        %2668 = vmatpush1.msra.mxu0 0.0
        %2669 = vmatprep.subr.mxu0 0.0
        %2670 = vmatpush1.msra.mxu0 0.0
        %2671 = vmatprep.subr.mxu0 0.0
        %2672 = vmatpush1.msra.mxu0 0.0
        %2673 = vmatprep.subr.mxu0 0.0
        %2674 = vmatpush1.msra.mxu0 0.0
        %2675 = vmatprep.subr.mxu0 0.0
        %2676 = vmatpush1.msra.mxu0 0.0
        %2677 = vmatprep.subr.mxu0 0.0
        %2678 = vmatpush1.msra.mxu0 0.0
        %2679 = vmatprep.subr.mxu0 0.0
        %2680 = vmatpush1.msra.mxu0 0.0
        %2681 = vmatprep.subr.mxu0 0.0
        %2682 = vmatpush1.msra.mxu0 0.0
        %2683 = vmatprep.subr.mxu0 0.0
        %2684 = vmatpush1.msra.mxu0 0.0
        %2685 = vmatprep.mubr.f32.mxu0 0.0
        %2686 = vmatmul.mubr.f32.gmra.mrb[0].mxu0 %v2523
        %v2687 = vpop.f32.mrb[0].mxu0
        %v2688 = vadd.f32 0.0, %v2687
        %v2689 = vpop.f32.mrb[0].mxu0
        %2690 = vmatprep.mubr.f32.mxu0 0.0
        %2691 = vmatmul.mubr.f32.gmra.mrb[0].mxu0 %v2526
        %v2692 = vpop.f32.mrb[0].mxu0
        %v2693 = vadd.f32 0.0, %v2692
        %v2694 = vpop.f32.mrb[0].mxu0
        %2695 = vmatprep.mubr.f32.mxu0 0.0
        %2696 = vmatmul.mubr.f32.gmra.mrb[0].mxu0 %v2529
        %v2697 = vpop.f32.mrb[0].mxu0
        %v2698 = vadd.f32 0.0, %v2697
        %v2699 = vpop.f32.mrb[0].mxu0
        %2700 = vmatprep.mubr.f32.mxu0 0.0
        %2701 = vmatmul.mubr.f32.gmra.mrb[0].mxu0 %v2532
        %v2702 = vpop.f32.mrb[0].mxu0
        %v2703 = vadd.f32 0.0, %v2702
        %v2704 = vpop.f32.mrb[0].mxu0
        %2705 = vmatprep.mubr.f32.mxu0 0.0
        %2706 = vmatmul.mubr.f32.gmra.mrb[0].mxu0 %v2535
        %v2707 = vpop.f32.mrb[0].mxu0
        %v2708 = vadd.f32 0.0, %v2707
        %v2709 = vpop.f32.mrb[0].mxu0
        %2710 = vmatprep.mubr.f32.mxu0 0.0
        %2711 = vmatmul.mubr.f32.gmra.mrb[0].mxu0 %v2538
        %v2712 = vpop.f32.mrb[0].mxu0
        %v2713 = vadd.f32 0.0, %v2712
        %v2714 = vpop.f32.mrb[0].mxu0
        %2715 = vmatprep.mubr.f32.mxu0 0.0
        %2716 = vmatmul.mubr.f32.gmra.mrb[0].mxu0 %v2541
        %v2717 = vpop.f32.mrb[0].mxu0
        %v2718 = vadd.f32 0.0, %v2717
        %v2719 = vpop.f32.mrb[0].mxu0
        %2720 = vmatprep.mubr.f32.mxu0 0.0
        %2721 = vmatmul.mubr.f32.gmra.mrb[0].mxu0 %v2544
        %v2722 = vpop.f32.mrb[0].mxu0
        %v2723 = vadd.f32 0.0, %v2722
        %v2724 = vpop.f32.mrb[0].mxu0
        %2725 = vmatprep.mubr.f32.mxu0 0.0
        %2726 = vmatmul.mubr.f32.gmra.mrb[0].mxu0 %v2547
        %v2727 = vpop.f32.mrb[0].mxu0
        %v2728 = vadd.f32 0.0, %v2727
        %v2729 = vpop.f32.mrb[0].mxu0
        %2730 = vmatprep.mubr.f32.mxu0 0.0
        %2731 = vmatmul.mubr.f32.gmra.mrb[0].mxu0 %v2550
        %v2732 = vpop.f32.mrb[0].mxu0
        %v2733 = vadd.f32 0.0, %v2732
        %v2734 = vpop.f32.mrb[0].mxu0
        %2735 = vmatprep.mubr.f32.mxu0 0.0
        %2736 = vmatmul.mubr.f32.gmra.mrb[0].mxu0 %v2553
        %v2737 = vpop.f32.mrb[0].mxu0
        %v2738 = vadd.f32 0.0, %v2737
        %v2739 = vpop.f32.mrb[0].mxu0
        %2740 = vmatprep.mubr.f32.mxu0 0.0
        %2741 = vmatmul.mubr.f32.gmra.mrb[0].mxu0 %v2556
        %v2742 = vpop.f32.mrb[0].mxu0
        %v2743 = vadd.f32 0.0, %v2742
        %v2744 = vpop.f32.mrb[0].mxu0
        %2745 = vmatprep.mubr.f32.mxu0 0.0
        %2746 = vmatmul.mubr.f32.gmra.mrb[0].mxu0 %v2559
        %v2747 = vpop.f32.mrb[0].mxu0
        %v2748 = vadd.f32 0.0, %v2747
        %v2749 = vpop.f32.mrb[0].mxu0
        %2750 = vmatprep.mubr.f32.mxu0 0.0
        %2751 = vmatmul.mubr.f32.gmra.mrb[0].mxu0 %v2562
        %v2752 = vpop.f32.mrb[0].mxu0
        %v2753 = vadd.f32 0.0, %v2752
        %v2754 = vpop.f32.mrb[0].mxu0
        %2755 = vmatprep.mubr.f32.mxu0 0.0
        %2756 = vmatmul.mubr.f32.gmra.mrb[0].mxu0 %v2565
        %v2757 = vpop.f32.mrb[0].mxu0
        %v2758 = vadd.f32 0.0, %v2757
        %v2759 = vpop.f32.mrb[0].mxu0
        %2760 = vmatprep.mubr.f32.mxu0 0.0
        %2761 = vmatmul.mubr.f32.gmra.mrb[0].mxu0 %v2568
        %v2762 = vpop.f32.mrb[0].mxu0
        %v2763 = vadd.f32 0.0, %v2762
        %v2764 = vpop.f32.mrb[0].mxu0
        %2765 = vmatprep.mubr.f32.mxu0 0.0
        %2766 = vmatmul.mubr.f32.gmra.mrb[0].mxu0 %v2571
        %v2767 = vpop.f32.mrb[0].mxu0
        %v2768 = vadd.f32 0.0, %v2767
        %v2769 = vpop.f32.mrb[0].mxu0
        %2770 = vmatprep.mubr.f32.mxu0 0.0
        %2771 = vmatmul.mubr.f32.gmra.mrb[0].mxu0 %v2574
        %v2772 = vpop.f32.mrb[0].mxu0
        %v2773 = vadd.f32 0.0, %v2772
        %v2774 = vpop.f32.mrb[0].mxu0
        %2775 = vmatprep.mubr.f32.mxu0 0.0
        %2776 = vmatmul.mubr.f32.gmra.mrb[0].mxu0 %v2577
        %v2777 = vpop.f32.mrb[0].mxu0
        %v2778 = vadd.f32 0.0, %v2777
        %v2779 = vpop.f32.mrb[0].mxu0
        %2780 = vmatprep.mubr.f32.mxu0 0.0
        %2781 = vmatmul.mubr.f32.gmra.mrb[0].mxu0 %v2580
        %v2782 = vpop.f32.mrb[0].mxu0
        %v2783 = vadd.f32 0.0, %v2782
        %v2784 = vpop.f32.mrb[0].mxu0
        %2785 = vmatprep.mubr.f32.mxu0 0.0
        %2786 = vmatmul.mubr.f32.gmra.mrb[0].mxu0 %v2583
        %v2787 = vpop.f32.mrb[0].mxu0
        %v2788 = vadd.f32 0.0, %v2787
        %v2789 = vpop.f32.mrb[0].mxu0
        %2790 = vmatprep.mubr.f32.mxu0 0.0
        %2791 = vmatmul.mubr.f32.gmra.mrb[0].mxu0 %v2586
        %v2792 = vpop.f32.mrb[0].mxu0
        %v2793 = vadd.f32 0.0, %v2792
        %v2794 = vpop.f32.mrb[0].mxu0
        %2795 = vmatprep.mubr.f32.mxu0 0.0
        %2796 = vmatmul.mubr.f32.gmra.mrb[0].mxu0 %v2589
        %v2797 = vpop.f32.mrb[0].mxu0
        %v2798 = vadd.f32 0.0, %v2797
        %v2799 = vpop.f32.mrb[0].mxu0
        %2800 = vmatprep.mubr.f32.mxu0 0.0
        %2801 = vmatmul.mubr.f32.gmra.mrb[0].mxu0 %v2592
        %v2802 = vpop.f32.mrb[0].mxu0
        %v2803 = vadd.f32 0.0, %v2802
        %v2804 = vpop.f32.mrb[0].mxu0
        %2805 = vmatprep.mubr.f32.mxu0 0.0
        %2806 = vmatmul.mubr.f32.gmra.mrb[0].mxu0 %v2595
        %v2807 = vpop.f32.mrb[0].mxu0
        %v2808 = vadd.f32 0.0, %v2807
        %v2809 = vpop.f32.mrb[0].mxu0
        %2810 = vmatprep.mubr.f32.mxu0 0.0
        %2811 = vmatmul.mubr.f32.gmra.mrb[0].mxu0 %v2598
        %v2812 = vpop.f32.mrb[0].mxu0
        %v2813 = vadd.f32 0.0, %v2812
        %v2814 = vpop.f32.mrb[0].mxu0
        %2815 = vmatprep.mubr.f32.mxu0 0.0
        %2816 = vmatmul.mubr.f32.gmra.mrb[0].mxu0 %v2601
        %v2817 = vpop.f32.mrb[0].mxu0
        %v2818 = vadd.f32 0.0, %v2817
        %v2819 = vpop.f32.mrb[0].mxu0
        %2820 = vmatprep.mubr.f32.mxu0 0.0
        %2821 = vmatmul.mubr.f32.gmra.mrb[0].mxu0 %v2604
        %v2822 = vpop.f32.mrb[0].mxu0
        %v2823 = vadd.f32 0.0, %v2822
        %v2824 = vpop.f32.mrb[0].mxu0
        %2825 = vmatprep.mubr.f32.mxu0 0.0
        %2826 = vmatmul.mubr.f32.gmra.mrb[0].mxu0 %v2607
        %v2827 = vpop.f32.mrb[0].mxu0
        %v2828 = vadd.f32 0.0, %v2827
        %v2829 = vpop.f32.mrb[0].mxu0
        %2830 = vmatprep.mubr.f32.mxu0 0.0
        %2831 = vmatmul.mubr.f32.gmra.mrb[0].mxu0 %v2610
        %v2832 = vpop.f32.mrb[0].mxu0
        %v2833 = vadd.f32 0.0, %v2832
        %v2834 = vpop.f32.mrb[0].mxu0
        %2835 = vmatprep.mubr.f32.mxu0 0.0
        %2836 = vmatmul.mubr.f32.gmra.mrb[0].mxu0 %v2613
        %v2837 = vpop.f32.mrb[0].mxu0
        %v2838 = vadd.f32 0.0, %v2837
        %v2839 = vpop.f32.mrb[0].mxu0
        %2840 = vmatprep.mubr.f32.mxu0 0.0
        %2841 = vmatmul.mubr.f32.gmra.mrb[0].mxu0 %v2616
        %v2842 = vpop.f32.mrb[0].mxu0
        %v2843 = vadd.f32 0.0, %v2842
        %v2844 = vpop.f32.mrb[0].mxu0
        %2845 = vdwg.mxu0
        %v2846 = vadd.f32 %v2455, %v2688
        %v2847 = vadd.f32 %v2456, %v2693
        %v2848 = vadd.f32 %v2457, %v2698
        %v2849 = vadd.f32 %v2458, %v2703
        %v2850 = vadd.f32 %v2459, %v2708
        %v2851 = vadd.f32 %v2460, %v2713
        %v2852 = vadd.f32 %v2461, %v2718
        %v2853 = vadd.f32 %v2462, %v2723
        %v2854 = vadd.f32 %v2463, %v2728
        %v2855 = vadd.f32 %v2464, %v2733
        %v2856 = vadd.f32 %v2465, %v2738
        %v2857 = vadd.f32 %v2466, %v2743
        %v2858 = vadd.f32 %v2467, %v2748
        %v2859 = vadd.f32 %v2468, %v2753
        %v2860 = vadd.f32 %v2469, %v2758
        %v2861 = vadd.f32 %v2470, %v2763
        %v2862 = vadd.f32 %v2471, %v2768
        %v2863 = vadd.f32 %v2472, %v2773
        %v2864 = vadd.f32 %v2473, %v2778
        %v2865 = vadd.f32 %v2474, %v2783
        %v2866 = vadd.f32 %v2475, %v2788
        %v2867 = vadd.f32 %v2476, %v2793
        %v2868 = vadd.f32 %v2477, %v2798
        %v2869 = vadd.f32 %v2478, %v2803
        %v2870 = vadd.f32 %v2479, %v2808
        %v2871 = vadd.f32 %v2480, %v2813
        %v2872 = vadd.f32 %v2481, %v2818
        %v2873 = vadd.f32 %v2482, %v2823
        %v2874 = vadd.f32 %v2483, %v2828
        %v2875 = vadd.f32 %v2484, %v2833
        %v2876 = vadd.f32 %v2485, %v2838
        %v2877 = vadd.f32 %v2486, %v2843
        %v2878 = vld [vmem:[%s2487 + $0x1] sm:$0xff]
        %v2879 = vld [vmem:[%s2487 + $0x9] sm:$0xff]
        %v2880 = vld [vmem:[%s2487 + $0x19] sm:$0xff]
        %v2881 = vld [vmem:[%s2487 + $0x21] sm:$0xff]
        %v2882 = vld [vmem:[%s2487 + $0x31] sm:$0xff]
        %v2883 = vld [vmem:[%s2487 + $0x39] sm:$0xff]
        %v2884 = vld [vmem:[%s2487 + $0x49] sm:$0xff]
        %v2885 = vld [vmem:[%s2487 + $0x51] sm:$0xff]
        %v2886 = vld [vmem:[%s2487 + $0x61] sm:$0xff]
        %v2887 = vld [vmem:[%s2487 + $0x69] sm:$0xff]
        %v2888 = vld [vmem:[%s2487 + $0x79] sm:$0xff]
        %v2889 = vld [vmem:[%s2487 + $0x81] sm:$0xff]
        %v2890 = vld [vmem:[%s2487 + $0x91] sm:$0xff]
        %v2891 = vld [vmem:[%s2487 + $0x99] sm:$0xff]
        %v2892 = vld [vmem:[%s2487 + $0xa9] sm:$0xff]
        %v2893 = vld [vmem:[%s2487 + $0xb1] sm:$0xff]
        %v2894 = vld [vmem:[%s2487 + $0xc1] sm:$0xff]
        %v2895 = vld [vmem:[%s2487 + $0xc9] sm:$0xff]
        %v2896 = vld [vmem:[%s2487 + $0xd9] sm:$0xff]
        %v2897 = vld [vmem:[%s2487 + $0xe1] sm:$0xff]
        %v2898 = vld [vmem:[%s2487 + $0xf1] sm:$0xff]
        %v2899 = vld [vmem:[%s2487 + $0xf9] sm:$0xff]
        %v2900 = vld [vmem:[%s2487 + $0x109] sm:$0xff]
        %v2901 = vld [vmem:[%s2487 + $0x111] sm:$0xff]
        %v2902 = vld [vmem:[%s2487 + $0x121] sm:$0xff]
        %v2903 = vld [vmem:[%s2487 + $0x129] sm:$0xff]
        %v2904 = vld [vmem:[%s2487 + $0x139] sm:$0xff]
        %v2905 = vld [vmem:[%s2487 + $0x141] sm:$0xff]
        %v2906 = vld [vmem:[%s2487 + $0x151] sm:$0xff]
        %v2907 = vld [vmem:[%s2487 + $0x159] sm:$0xff]
        %v2908 = vld [vmem:[%s2487 + $0x169] sm:$0xff]
        %v2909 = vld [vmem:[%s2487 + $0x171] sm:$0xff]
        %s2910 = scalar_lea.vmem %s1, 28
        %v2911 = vld [vmem:[%s2910] sm:$0xf]
        %v2913 = vsel %vm276, %v2878, 0
        %v2916 = vsel %vm276, %v2879, 0
        %v2919 = vsel %vm276, %v2880, 0
        %v2922 = vsel %vm276, %v2881, 0
        %v2925 = vsel %vm276, %v2882, 0
        %v2928 = vsel %vm276, %v2883, 0
        %v2931 = vsel %vm276, %v2884, 0
        %v2934 = vsel %vm276, %v2885, 0
        %v2937 = vsel %vm276, %v2886, 0
        %v2940 = vsel %vm276, %v2887, 0
        %v2943 = vsel %vm276, %v2888, 0
        %v2946 = vsel %vm276, %v2889, 0
        %v2949 = vsel %vm276, %v2890, 0
        %v2952 = vsel %vm276, %v2891, 0
        %v2955 = vsel %vm276, %v2892, 0
        %v2958 = vsel %vm276, %v2893, 0
        %v2961 = vsel %vm276, %v2894, 0
        %v2964 = vsel %vm276, %v2895, 0
        %v2967 = vsel %vm276, %v2896, 0
        %v2970 = vsel %vm276, %v2897, 0
        %v2973 = vsel %vm276, %v2898, 0
        %v2976 = vsel %vm276, %v2899, 0
        %v2979 = vsel %vm276, %v2900, 0
        %v2982 = vsel %vm276, %v2901, 0
        %v2985 = vsel %vm276, %v2902, 0
        %v2988 = vsel %vm276, %v2903, 0
        %v2991 = vsel %vm276, %v2904, 0
        %v2994 = vsel %vm276, %v2905, 0
        %v2997 = vsel %vm276, %v2906, 0
        %v3000 = vsel %vm276, %v2907, 0
        %v3003 = vsel %vm276, %v2908, 0
        %v3006 = vsel %vm276, %v2909, 0
        %v3009 = vsel %vm373, %v2911, 0
        %3011 = vmatprep.subr.mxu0 0.0
        %3012 = vmatpush1.msra.mxu0 %v3009
        %3013 = vmatprep.subr.mxu0 0.0
        %3014 = vmatpush1.msra.mxu0 0.0
        %3015 = vmatprep.subr.mxu0 0.0
        %3016 = vmatpush1.msra.mxu0 0.0
        %3017 = vmatprep.subr.mxu0 0.0
        %3018 = vmatpush1.msra.mxu0 0.0
        %3019 = vmatprep.subr.mxu0 0.0
        %3020 = vmatpush1.msra.mxu0 0.0
        %3021 = vmatprep.subr.mxu0 0.0
        %3022 = vmatpush1.msra.mxu0 0.0
        %3023 = vmatprep.subr.mxu0 0.0
        %3024 = vmatpush1.msra.mxu0 0.0
        %3025 = vmatprep.subr.mxu0 0.0
        %3026 = vmatpush1.msra.mxu0 0.0
        %3027 = vmatprep.subr.mxu0 0.0
        %3028 = vmatpush1.msra.mxu0 0.0
        %3029 = vmatprep.subr.mxu0 0.0
        %3030 = vmatpush1.msra.mxu0 0.0
        %3031 = vmatprep.subr.mxu0 0.0
        %3032 = vmatpush1.msra.mxu0 0.0
        %3033 = vmatprep.subr.mxu0 0.0
        %3034 = vmatpush1.msra.mxu0 0.0
        %3035 = vmatprep.subr.mxu0 0.0
        %3036 = vmatpush1.msra.mxu0 0.0
        %3037 = vmatprep.subr.mxu0 0.0
        %3038 = vmatpush1.msra.mxu0 0.0
        %3039 = vmatprep.subr.mxu0 0.0
        %3040 = vmatpush1.msra.mxu0 0.0
        %3041 = vmatprep.subr.mxu0 0.0
        %3042 = vmatpush1.msra.mxu0 0.0
        %3043 = vmatprep.subr.mxu0 0.0
        %3044 = vmatpush1.msra.mxu0 0.0
        %3045 = vmatprep.subr.mxu0 0.0
        %3046 = vmatpush1.msra.mxu0 0.0
        %3047 = vmatprep.subr.mxu0 0.0
        %3048 = vmatpush1.msra.mxu0 0.0
        %3049 = vmatprep.subr.mxu0 0.0
        %3050 = vmatpush1.msra.mxu0 0.0
        %3051 = vmatprep.subr.mxu0 0.0
        %3052 = vmatpush1.msra.mxu0 0.0
        %3053 = vmatprep.subr.mxu0 0.0
        %3054 = vmatpush1.msra.mxu0 0.0
        %3055 = vmatprep.subr.mxu0 0.0
        %3056 = vmatpush1.msra.mxu0 0.0
        %3057 = vmatprep.subr.mxu0 0.0
        %3058 = vmatpush1.msra.mxu0 0.0
        %3059 = vmatprep.subr.mxu0 0.0
        %3060 = vmatpush1.msra.mxu0 0.0
        %3061 = vmatprep.subr.mxu0 0.0
        %3062 = vmatpush1.msra.mxu0 0.0
        %3063 = vmatprep.subr.mxu0 0.0
        %3064 = vmatpush1.msra.mxu0 0.0
        %3065 = vmatprep.subr.mxu0 0.0
        %3066 = vmatpush1.msra.mxu0 0.0
        %3067 = vmatprep.subr.mxu0 0.0
        %3068 = vmatpush1.msra.mxu0 0.0
        %3069 = vmatprep.subr.mxu0 0.0
        %3070 = vmatpush1.msra.mxu0 0.0
        %3071 = vmatprep.subr.mxu0 0.0
        %3072 = vmatpush1.msra.mxu0 0.0
        %3073 = vmatprep.subr.mxu0 0.0
        %3074 = vmatpush1.msra.mxu0 0.0
        %3075 = vmatprep.mubr.f32.mxu0 0.0
        %3076 = vmatmul.mubr.f32.gmra.mrb[0].mxu0 %v2913
        %v3077 = vpop.f32.mrb[0].mxu0
        %v3078 = vadd.f32 0.0, %v3077
        %v3079 = vpop.f32.mrb[0].mxu0
        %3080 = vmatprep.mubr.f32.mxu0 0.0
        %3081 = vmatmul.mubr.f32.gmra.mrb[0].mxu0 %v2916
        %v3082 = vpop.f32.mrb[0].mxu0
        %v3083 = vadd.f32 0.0, %v3082
        %v3084 = vpop.f32.mrb[0].mxu0
        %3085 = vmatprep.mubr.f32.mxu0 0.0
        %3086 = vmatmul.mubr.f32.gmra.mrb[0].mxu0 %v2919
        %v3087 = vpop.f32.mrb[0].mxu0
        %v3088 = vadd.f32 0.0, %v3087
        %v3089 = vpop.f32.mrb[0].mxu0
        %3090 = vmatprep.mubr.f32.mxu0 0.0
        %3091 = vmatmul.mubr.f32.gmra.mrb[0].mxu0 %v2922
        %v3092 = vpop.f32.mrb[0].mxu0
        %v3093 = vadd.f32 0.0, %v3092
        %v3094 = vpop.f32.mrb[0].mxu0
        %3095 = vmatprep.mubr.f32.mxu0 0.0
        %3096 = vmatmul.mubr.f32.gmra.mrb[0].mxu0 %v2925
        %v3097 = vpop.f32.mrb[0].mxu0
        %v3098 = vadd.f32 0.0, %v3097
        %v3099 = vpop.f32.mrb[0].mxu0
        %3100 = vmatprep.mubr.f32.mxu0 0.0
        %3101 = vmatmul.mubr.f32.gmra.mrb[0].mxu0 %v2928
        %v3102 = vpop.f32.mrb[0].mxu0
        %v3103 = vadd.f32 0.0, %v3102
        %v3104 = vpop.f32.mrb[0].mxu0
        %3105 = vmatprep.mubr.f32.mxu0 0.0
        %3106 = vmatmul.mubr.f32.gmra.mrb[0].mxu0 %v2931
        %v3107 = vpop.f32.mrb[0].mxu0
        %v3108 = vadd.f32 0.0, %v3107
        %v3109 = vpop.f32.mrb[0].mxu0
        %3110 = vmatprep.mubr.f32.mxu0 0.0
        %3111 = vmatmul.mubr.f32.gmra.mrb[0].mxu0 %v2934
        %v3112 = vpop.f32.mrb[0].mxu0
        %v3113 = vadd.f32 0.0, %v3112
        %v3114 = vpop.f32.mrb[0].mxu0
        %3115 = vmatprep.mubr.f32.mxu0 0.0
        %3116 = vmatmul.mubr.f32.gmra.mrb[0].mxu0 %v2937
        %v3117 = vpop.f32.mrb[0].mxu0
        %v3118 = vadd.f32 0.0, %v3117
        %v3119 = vpop.f32.mrb[0].mxu0
        %3120 = vmatprep.mubr.f32.mxu0 0.0
        %3121 = vmatmul.mubr.f32.gmra.mrb[0].mxu0 %v2940
        %v3122 = vpop.f32.mrb[0].mxu0
        %v3123 = vadd.f32 0.0, %v3122
        %v3124 = vpop.f32.mrb[0].mxu0
        %3125 = vmatprep.mubr.f32.mxu0 0.0
        %3126 = vmatmul.mubr.f32.gmra.mrb[0].mxu0 %v2943
        %v3127 = vpop.f32.mrb[0].mxu0
        %v3128 = vadd.f32 0.0, %v3127
        %v3129 = vpop.f32.mrb[0].mxu0
        %3130 = vmatprep.mubr.f32.mxu0 0.0
        %3131 = vmatmul.mubr.f32.gmra.mrb[0].mxu0 %v2946
        %v3132 = vpop.f32.mrb[0].mxu0
        %v3133 = vadd.f32 0.0, %v3132
        %v3134 = vpop.f32.mrb[0].mxu0
        %3135 = vmatprep.mubr.f32.mxu0 0.0
        %3136 = vmatmul.mubr.f32.gmra.mrb[0].mxu0 %v2949
        %v3137 = vpop.f32.mrb[0].mxu0
        %v3138 = vadd.f32 0.0, %v3137
        %v3139 = vpop.f32.mrb[0].mxu0
        %3140 = vmatprep.mubr.f32.mxu0 0.0
        %3141 = vmatmul.mubr.f32.gmra.mrb[0].mxu0 %v2952
        %v3142 = vpop.f32.mrb[0].mxu0
        %v3143 = vadd.f32 0.0, %v3142
        %v3144 = vpop.f32.mrb[0].mxu0
        %3145 = vmatprep.mubr.f32.mxu0 0.0
        %3146 = vmatmul.mubr.f32.gmra.mrb[0].mxu0 %v2955
        %v3147 = vpop.f32.mrb[0].mxu0
        %v3148 = vadd.f32 0.0, %v3147
        %v3149 = vpop.f32.mrb[0].mxu0
        %3150 = vmatprep.mubr.f32.mxu0 0.0
        %3151 = vmatmul.mubr.f32.gmra.mrb[0].mxu0 %v2958
        %v3152 = vpop.f32.mrb[0].mxu0
        %v3153 = vadd.f32 0.0, %v3152
        %v3154 = vpop.f32.mrb[0].mxu0
        %3155 = vmatprep.mubr.f32.mxu0 0.0
        %3156 = vmatmul.mubr.f32.gmra.mrb[0].mxu0 %v2961
        %v3157 = vpop.f32.mrb[0].mxu0
        %v3158 = vadd.f32 0.0, %v3157
        %v3159 = vpop.f32.mrb[0].mxu0
        %3160 = vmatprep.mubr.f32.mxu0 0.0
        %3161 = vmatmul.mubr.f32.gmra.mrb[0].mxu0 %v2964
        %v3162 = vpop.f32.mrb[0].mxu0
        %v3163 = vadd.f32 0.0, %v3162
        %v3164 = vpop.f32.mrb[0].mxu0
        %3165 = vmatprep.mubr.f32.mxu0 0.0
        %3166 = vmatmul.mubr.f32.gmra.mrb[0].mxu0 %v2967
        %v3167 = vpop.f32.mrb[0].mxu0
        %v3168 = vadd.f32 0.0, %v3167
        %v3169 = vpop.f32.mrb[0].mxu0
        %3170 = vmatprep.mubr.f32.mxu0 0.0
        %3171 = vmatmul.mubr.f32.gmra.mrb[0].mxu0 %v2970
        %v3172 = vpop.f32.mrb[0].mxu0
        %v3173 = vadd.f32 0.0, %v3172
        %v3174 = vpop.f32.mrb[0].mxu0
        %3175 = vmatprep.mubr.f32.mxu0 0.0
        %3176 = vmatmul.mubr.f32.gmra.mrb[0].mxu0 %v2973
        %v3177 = vpop.f32.mrb[0].mxu0
        %v3178 = vadd.f32 0.0, %v3177
        %v3179 = vpop.f32.mrb[0].mxu0
        %3180 = vmatprep.mubr.f32.mxu0 0.0
        %3181 = vmatmul.mubr.f32.gmra.mrb[0].mxu0 %v2976
        %v3182 = vpop.f32.mrb[0].mxu0
        %v3183 = vadd.f32 0.0, %v3182
        %v3184 = vpop.f32.mrb[0].mxu0
        %3185 = vmatprep.mubr.f32.mxu0 0.0
        %3186 = vmatmul.mubr.f32.gmra.mrb[0].mxu0 %v2979
        %v3187 = vpop.f32.mrb[0].mxu0
        %v3188 = vadd.f32 0.0, %v3187
        %v3189 = vpop.f32.mrb[0].mxu0
        %3190 = vmatprep.mubr.f32.mxu0 0.0
        %3191 = vmatmul.mubr.f32.gmra.mrb[0].mxu0 %v2982
        %v3192 = vpop.f32.mrb[0].mxu0
        %v3193 = vadd.f32 0.0, %v3192
        %v3194 = vpop.f32.mrb[0].mxu0
        %3195 = vmatprep.mubr.f32.mxu0 0.0
        %3196 = vmatmul.mubr.f32.gmra.mrb[0].mxu0 %v2985
        %v3197 = vpop.f32.mrb[0].mxu0
        %v3198 = vadd.f32 0.0, %v3197
        %v3199 = vpop.f32.mrb[0].mxu0
        %3200 = vmatprep.mubr.f32.mxu0 0.0
        %3201 = vmatmul.mubr.f32.gmra.mrb[0].mxu0 %v2988
        %v3202 = vpop.f32.mrb[0].mxu0
        %v3203 = vadd.f32 0.0, %v3202
        %v3204 = vpop.f32.mrb[0].mxu0
        %3205 = vmatprep.mubr.f32.mxu0 0.0
        %3206 = vmatmul.mubr.f32.gmra.mrb[0].mxu0 %v2991
        %v3207 = vpop.f32.mrb[0].mxu0
        %v3208 = vadd.f32 0.0, %v3207
        %v3209 = vpop.f32.mrb[0].mxu0
        %3210 = vmatprep.mubr.f32.mxu0 0.0
        %3211 = vmatmul.mubr.f32.gmra.mrb[0].mxu0 %v2994
        %v3212 = vpop.f32.mrb[0].mxu0
        %v3213 = vadd.f32 0.0, %v3212
        %v3214 = vpop.f32.mrb[0].mxu0
        %3215 = vmatprep.mubr.f32.mxu0 0.0
        %3216 = vmatmul.mubr.f32.gmra.mrb[0].mxu0 %v2997
        %v3217 = vpop.f32.mrb[0].mxu0
        %v3218 = vadd.f32 0.0, %v3217
        %v3219 = vpop.f32.mrb[0].mxu0
        %3220 = vmatprep.mubr.f32.mxu0 0.0
        %3221 = vmatmul.mubr.f32.gmra.mrb[0].mxu0 %v3000
        %v3222 = vpop.f32.mrb[0].mxu0
        %v3223 = vadd.f32 0.0, %v3222
        %v3224 = vpop.f32.mrb[0].mxu0
        %3225 = vmatprep.mubr.f32.mxu0 0.0
        %3226 = vmatmul.mubr.f32.gmra.mrb[0].mxu0 %v3003
        %v3227 = vpop.f32.mrb[0].mxu0
        %v3228 = vadd.f32 0.0, %v3227
        %v3229 = vpop.f32.mrb[0].mxu0
        %3230 = vmatprep.mubr.f32.mxu0 0.0
        %3231 = vmatmul.mubr.f32.gmra.mrb[0].mxu0 %v3006
        %v3232 = vpop.f32.mrb[0].mxu0
        %v3233 = vadd.f32 0.0, %v3232
        %v3234 = vpop.f32.mrb[0].mxu0
        %3235 = vdwg.mxu0
        %v3236 = vadd.f32 %v2846, %v3078
        %v3237 = vadd.f32 %v2847, %v3083
        %v3238 = vadd.f32 %v2848, %v3088
        %v3239 = vadd.f32 %v2849, %v3093
        %v3240 = vadd.f32 %v2850, %v3098
        %v3241 = vadd.f32 %v2851, %v3103
        %v3242 = vadd.f32 %v2852, %v3108
        %v3243 = vadd.f32 %v2853, %v3113
        %v3244 = vadd.f32 %v2854, %v3118
        %v3245 = vadd.f32 %v2855, %v3123
        %v3246 = vadd.f32 %v2856, %v3128
        %v3247 = vadd.f32 %v2857, %v3133
        %v3248 = vadd.f32 %v2858, %v3138
        %v3249 = vadd.f32 %v2859, %v3143
        %v3250 = vadd.f32 %v2860, %v3148
        %v3251 = vadd.f32 %v2861, %v3153
        %v3252 = vadd.f32 %v2862, %v3158
        %v3253 = vadd.f32 %v2863, %v3163
        %v3254 = vadd.f32 %v2864, %v3168
        %v3255 = vadd.f32 %v2865, %v3173
        %v3256 = vadd.f32 %v2866, %v3178
        %v3257 = vadd.f32 %v2867, %v3183
        %v3258 = vadd.f32 %v2868, %v3188
        %v3259 = vadd.f32 %v2869, %v3193
        %v3260 = vadd.f32 %v2870, %v3198
        %v3261 = vadd.f32 %v2871, %v3203
        %v3262 = vadd.f32 %v2872, %v3208
        %v3263 = vadd.f32 %v2873, %v3213
        %v3264 = vadd.f32 %v2874, %v3218
        %v3265 = vadd.f32 %v2875, %v3223
        %v3266 = vadd.f32 %v2876, %v3228
        %v3267 = vadd.f32 %v2877, %v3233
        %v3268 = vld [vmem:[%s2487 + $0x2] sm:$0xff]
        %v3269 = vld [vmem:[%s2487 + $0xa] sm:$0xff]
        %v3270 = vld [vmem:[%s2487 + $0x1a] sm:$0xff]
        %v3271 = vld [vmem:[%s2487 + $0x22] sm:$0xff]
        %v3272 = vld [vmem:[%s2487 + $0x32] sm:$0xff]
        %v3273 = vld [vmem:[%s2487 + $0x3a] sm:$0xff]
        %v3274 = vld [vmem:[%s2487 + $0x4a] sm:$0xff]
        %v3275 = vld [vmem:[%s2487 + $0x52] sm:$0xff]
        %v3276 = vld [vmem:[%s2487 + $0x62] sm:$0xff]
        %v3277 = vld [vmem:[%s2487 + $0x6a] sm:$0xff]
        %v3278 = vld [vmem:[%s2487 + $0x7a] sm:$0xff]
        %v3279 = vld [vmem:[%s2487 + $0x82] sm:$0xff]
        %v3280 = vld [vmem:[%s2487 + $0x92] sm:$0xff]
        %v3281 = vld [vmem:[%s2487 + $0x9a] sm:$0xff]
        %v3282 = vld [vmem:[%s2487 + $0xaa] sm:$0xff]
        %v3283 = vld [vmem:[%s2487 + $0xb2] sm:$0xff]
        %v3284 = vld [vmem:[%s2487 + $0xc2] sm:$0xff]
        %v3285 = vld [vmem:[%s2487 + $0xca] sm:$0xff]
        %v3286 = vld [vmem:[%s2487 + $0xda] sm:$0xff]
        %v3287 = vld [vmem:[%s2487 + $0xe2] sm:$0xff]
        %v3288 = vld [vmem:[%s2487 + $0xf2] sm:$0xff]
        %v3289 = vld [vmem:[%s2487 + $0xfa] sm:$0xff]
        %v3290 = vld [vmem:[%s2487 + $0x10a] sm:$0xff]
        %v3291 = vld [vmem:[%s2487 + $0x112] sm:$0xff]
        %v3292 = vld [vmem:[%s2487 + $0x122] sm:$0xff]
        %v3293 = vld [vmem:[%s2487 + $0x12a] sm:$0xff]
        %v3294 = vld [vmem:[%s2487 + $0x13a] sm:$0xff]
        %v3295 = vld [vmem:[%s2487 + $0x142] sm:$0xff]
        %v3296 = vld [vmem:[%s2487 + $0x152] sm:$0xff]
        %v3297 = vld [vmem:[%s2487 + $0x15a] sm:$0xff]
        %v3298 = vld [vmem:[%s2487 + $0x16a] sm:$0xff]
        %v3299 = vld [vmem:[%s2487 + $0x172] sm:$0xff]
        %s3300 = scalar_lea.vmem %s1, 32
        %v3301 = vld [vmem:[%s3300] sm:$0xf]
        %v3303 = vsel %vm276, %v3268, 0
        %v3306 = vsel %vm276, %v3269, 0
        %v3309 = vsel %vm276, %v3270, 0
        %v3312 = vsel %vm276, %v3271, 0
        %v3315 = vsel %vm276, %v3272, 0
        %v3318 = vsel %vm276, %v3273, 0
        %v3321 = vsel %vm276, %v3274, 0
        %v3324 = vsel %vm276, %v3275, 0
        %v3327 = vsel %vm276, %v3276, 0
        %v3330 = vsel %vm276, %v3277, 0
        %v3333 = vsel %vm276, %v3278, 0
        %v3336 = vsel %vm276, %v3279, 0
        %v3339 = vsel %vm276, %v3280, 0
        %v3342 = vsel %vm276, %v3281, 0
        %v3345 = vsel %vm276, %v3282, 0
        %v3348 = vsel %vm276, %v3283, 0
        %v3351 = vsel %vm276, %v3284, 0
        %v3354 = vsel %vm276, %v3285, 0
        %v3357 = vsel %vm276, %v3286, 0
        %v3360 = vsel %vm276, %v3287, 0
        %v3363 = vsel %vm276, %v3288, 0
        %v3366 = vsel %vm276, %v3289, 0
        %v3369 = vsel %vm276, %v3290, 0
        %v3372 = vsel %vm276, %v3291, 0
        %v3375 = vsel %vm276, %v3292, 0
        %v3378 = vsel %vm276, %v3293, 0
        %v3381 = vsel %vm276, %v3294, 0
        %v3384 = vsel %vm276, %v3295, 0
        %v3387 = vsel %vm276, %v3296, 0
        %v3390 = vsel %vm276, %v3297, 0
        %v3393 = vsel %vm276, %v3298, 0
        %v3396 = vsel %vm276, %v3299, 0
        %v3399 = vsel %vm373, %v3301, 0
        %3401 = vmatprep.subr.mxu0 0.0
        %3402 = vmatpush1.msra.mxu0 %v3399
        %3403 = vmatprep.subr.mxu0 0.0
        %3404 = vmatpush1.msra.mxu0 0.0
        %3405 = vmatprep.subr.mxu0 0.0
        %3406 = vmatpush1.msra.mxu0 0.0
        %3407 = vmatprep.subr.mxu0 0.0
        %3408 = vmatpush1.msra.mxu0 0.0
        %3409 = vmatprep.subr.mxu0 0.0
        %3410 = vmatpush1.msra.mxu0 0.0
        %3411 = vmatprep.subr.mxu0 0.0
        %3412 = vmatpush1.msra.mxu0 0.0
        %3413 = vmatprep.subr.mxu0 0.0
        %3414 = vmatpush1.msra.mxu0 0.0
        %3415 = vmatprep.subr.mxu0 0.0
        %3416 = vmatpush1.msra.mxu0 0.0
        %3417 = vmatprep.subr.mxu0 0.0
        %3418 = vmatpush1.msra.mxu0 0.0
        %3419 = vmatprep.subr.mxu0 0.0
        %3420 = vmatpush1.msra.mxu0 0.0
        %3421 = vmatprep.subr.mxu0 0.0
        %3422 = vmatpush1.msra.mxu0 0.0
        %3423 = vmatprep.subr.mxu0 0.0
        %3424 = vmatpush1.msra.mxu0 0.0
        %3425 = vmatprep.subr.mxu0 0.0
        %3426 = vmatpush1.msra.mxu0 0.0
        %3427 = vmatprep.subr.mxu0 0.0
        %3428 = vmatpush1.msra.mxu0 0.0
        %3429 = vmatprep.subr.mxu0 0.0
        %3430 = vmatpush1.msra.mxu0 0.0
        %3431 = vmatprep.subr.mxu0 0.0
        %3432 = vmatpush1.msra.mxu0 0.0
        %3433 = vmatprep.subr.mxu0 0.0
        %3434 = vmatpush1.msra.mxu0 0.0
        %3435 = vmatprep.subr.mxu0 0.0
        %3436 = vmatpush1.msra.mxu0 0.0
        %3437 = vmatprep.subr.mxu0 0.0
        %3438 = vmatpush1.msra.mxu0 0.0
        %3439 = vmatprep.subr.mxu0 0.0
        %3440 = vmatpush1.msra.mxu0 0.0
        %3441 = vmatprep.subr.mxu0 0.0
        %3442 = vmatpush1.msra.mxu0 0.0
        %3443 = vmatprep.subr.mxu0 0.0
        %3444 = vmatpush1.msra.mxu0 0.0
        %3445 = vmatprep.subr.mxu0 0.0
        %3446 = vmatpush1.msra.mxu0 0.0
        %3447 = vmatprep.subr.mxu0 0.0
        %3448 = vmatpush1.msra.mxu0 0.0
        %3449 = vmatprep.subr.mxu0 0.0
        %3450 = vmatpush1.msra.mxu0 0.0
        %3451 = vmatprep.subr.mxu0 0.0
        %3452 = vmatpush1.msra.mxu0 0.0
        %3453 = vmatprep.subr.mxu0 0.0
        %3454 = vmatpush1.msra.mxu0 0.0
        %3455 = vmatprep.subr.mxu0 0.0
        %3456 = vmatpush1.msra.mxu0 0.0
        %3457 = vmatprep.subr.mxu0 0.0
        %3458 = vmatpush1.msra.mxu0 0.0
        %3459 = vmatprep.subr.mxu0 0.0
        %3460 = vmatpush1.msra.mxu0 0.0
        %3461 = vmatprep.subr.mxu0 0.0
        %3462 = vmatpush1.msra.mxu0 0.0
        %3463 = vmatprep.subr.mxu0 0.0
        %3464 = vmatpush1.msra.mxu0 0.0
        %3465 = vmatprep.mubr.f32.mxu0 0.0
        %3466 = vmatmul.mubr.f32.gmra.mrb[0].mxu0 %v3303
        %v3467 = vpop.f32.mrb[0].mxu0
        %v3468 = vadd.f32 0.0, %v3467
        %v3469 = vpop.f32.mrb[0].mxu0
        %3470 = vmatprep.mubr.f32.mxu0 0.0
        %3471 = vmatmul.mubr.f32.gmra.mrb[0].mxu0 %v3306
        %v3472 = vpop.f32.mrb[0].mxu0
        %v3473 = vadd.f32 0.0, %v3472
        %v3474 = vpop.f32.mrb[0].mxu0
        %3475 = vmatprep.mubr.f32.mxu0 0.0
        %3476 = vmatmul.mubr.f32.gmra.mrb[0].mxu0 %v3309
        %v3477 = vpop.f32.mrb[0].mxu0
        %v3478 = vadd.f32 0.0, %v3477
        %v3479 = vpop.f32.mrb[0].mxu0
        %3480 = vmatprep.mubr.f32.mxu0 0.0
        %3481 = vmatmul.mubr.f32.gmra.mrb[0].mxu0 %v3312
        %v3482 = vpop.f32.mrb[0].mxu0
        %v3483 = vadd.f32 0.0, %v3482
        %v3484 = vpop.f32.mrb[0].mxu0
        %3485 = vmatprep.mubr.f32.mxu0 0.0
        %3486 = vmatmul.mubr.f32.gmra.mrb[0].mxu0 %v3315
        %v3487 = vpop.f32.mrb[0].mxu0
        %v3488 = vadd.f32 0.0, %v3487
        %v3489 = vpop.f32.mrb[0].mxu0
        %3490 = vmatprep.mubr.f32.mxu0 0.0
        %3491 = vmatmul.mubr.f32.gmra.mrb[0].mxu0 %v3318
        %v3492 = vpop.f32.mrb[0].mxu0
        %v3493 = vadd.f32 0.0, %v3492
        %v3494 = vpop.f32.mrb[0].mxu0
        %3495 = vmatprep.mubr.f32.mxu0 0.0
        %3496 = vmatmul.mubr.f32.gmra.mrb[0].mxu0 %v3321
        %v3497 = vpop.f32.mrb[0].mxu0
        %v3498 = vadd.f32 0.0, %v3497
        %v3499 = vpop.f32.mrb[0].mxu0
        %3500 = vmatprep.mubr.f32.mxu0 0.0
        %3501 = vmatmul.mubr.f32.gmra.mrb[0].mxu0 %v3324
        %v3502 = vpop.f32.mrb[0].mxu0
        %v3503 = vadd.f32 0.0, %v3502
        %v3504 = vpop.f32.mrb[0].mxu0
        %3505 = vmatprep.mubr.f32.mxu0 0.0
        %3506 = vmatmul.mubr.f32.gmra.mrb[0].mxu0 %v3327
        %v3507 = vpop.f32.mrb[0].mxu0
        %v3508 = vadd.f32 0.0, %v3507
        %v3509 = vpop.f32.mrb[0].mxu0
        %3510 = vmatprep.mubr.f32.mxu0 0.0
        %3511 = vmatmul.mubr.f32.gmra.mrb[0].mxu0 %v3330
        %v3512 = vpop.f32.mrb[0].mxu0
        %v3513 = vadd.f32 0.0, %v3512
        %v3514 = vpop.f32.mrb[0].mxu0
        %3515 = vmatprep.mubr.f32.mxu0 0.0
        %3516 = vmatmul.mubr.f32.gmra.mrb[0].mxu0 %v3333
        %v3517 = vpop.f32.mrb[0].mxu0
        %v3518 = vadd.f32 0.0, %v3517
        %v3519 = vpop.f32.mrb[0].mxu0
        %3520 = vmatprep.mubr.f32.mxu0 0.0
        %3521 = vmatmul.mubr.f32.gmra.mrb[0].mxu0 %v3336
        %v3522 = vpop.f32.mrb[0].mxu0
        %v3523 = vadd.f32 0.0, %v3522
        %v3524 = vpop.f32.mrb[0].mxu0
        %3525 = vmatprep.mubr.f32.mxu0 0.0
        %3526 = vmatmul.mubr.f32.gmra.mrb[0].mxu0 %v3339
        %v3527 = vpop.f32.mrb[0].mxu0
        %v3528 = vadd.f32 0.0, %v3527
        %v3529 = vpop.f32.mrb[0].mxu0
        %3530 = vmatprep.mubr.f32.mxu0 0.0
        %3531 = vmatmul.mubr.f32.gmra.mrb[0].mxu0 %v3342
        %v3532 = vpop.f32.mrb[0].mxu0
        %v3533 = vadd.f32 0.0, %v3532
        %v3534 = vpop.f32.mrb[0].mxu0
        %3535 = vmatprep.mubr.f32.mxu0 0.0
        %3536 = vmatmul.mubr.f32.gmra.mrb[0].mxu0 %v3345
        %v3537 = vpop.f32.mrb[0].mxu0
        %v3538 = vadd.f32 0.0, %v3537
        %v3539 = vpop.f32.mrb[0].mxu0
        %3540 = vmatprep.mubr.f32.mxu0 0.0
        %3541 = vmatmul.mubr.f32.gmra.mrb[0].mxu0 %v3348
        %v3542 = vpop.f32.mrb[0].mxu0
        %v3543 = vadd.f32 0.0, %v3542
        %v3544 = vpop.f32.mrb[0].mxu0
        %3545 = vmatprep.mubr.f32.mxu0 0.0
        %3546 = vmatmul.mubr.f32.gmra.mrb[0].mxu0 %v3351
        %v3547 = vpop.f32.mrb[0].mxu0
        %v3548 = vadd.f32 0.0, %v3547
        %v3549 = vpop.f32.mrb[0].mxu0
        %3550 = vmatprep.mubr.f32.mxu0 0.0
        %3551 = vmatmul.mubr.f32.gmra.mrb[0].mxu0 %v3354
        %v3552 = vpop.f32.mrb[0].mxu0
        %v3553 = vadd.f32 0.0, %v3552
        %v3554 = vpop.f32.mrb[0].mxu0
        %3555 = vmatprep.mubr.f32.mxu0 0.0
        %3556 = vmatmul.mubr.f32.gmra.mrb[0].mxu0 %v3357
        %v3557 = vpop.f32.mrb[0].mxu0
        %v3558 = vadd.f32 0.0, %v3557
        %v3559 = vpop.f32.mrb[0].mxu0
        %3560 = vmatprep.mubr.f32.mxu0 0.0
        %3561 = vmatmul.mubr.f32.gmra.mrb[0].mxu0 %v3360
        %v3562 = vpop.f32.mrb[0].mxu0
        %v3563 = vadd.f32 0.0, %v3562
        %v3564 = vpop.f32.mrb[0].mxu0
        %3565 = vmatprep.mubr.f32.mxu0 0.0
        %3566 = vmatmul.mubr.f32.gmra.mrb[0].mxu0 %v3363
        %v3567 = vpop.f32.mrb[0].mxu0
        %v3568 = vadd.f32 0.0, %v3567
        %v3569 = vpop.f32.mrb[0].mxu0
        %3570 = vmatprep.mubr.f32.mxu0 0.0
        %3571 = vmatmul.mubr.f32.gmra.mrb[0].mxu0 %v3366
        %v3572 = vpop.f32.mrb[0].mxu0
        %v3573 = vadd.f32 0.0, %v3572
        %v3574 = vpop.f32.mrb[0].mxu0
        %3575 = vmatprep.mubr.f32.mxu0 0.0
        %3576 = vmatmul.mubr.f32.gmra.mrb[0].mxu0 %v3369
        %v3577 = vpop.f32.mrb[0].mxu0
        %v3578 = vadd.f32 0.0, %v3577
        %v3579 = vpop.f32.mrb[0].mxu0
        %3580 = vmatprep.mubr.f32.mxu0 0.0
        %3581 = vmatmul.mubr.f32.gmra.mrb[0].mxu0 %v3372
        %v3582 = vpop.f32.mrb[0].mxu0
        %v3583 = vadd.f32 0.0, %v3582
        %v3584 = vpop.f32.mrb[0].mxu0
        %3585 = vmatprep.mubr.f32.mxu0 0.0
        %3586 = vmatmul.mubr.f32.gmra.mrb[0].mxu0 %v3375
        %v3587 = vpop.f32.mrb[0].mxu0
        %v3588 = vadd.f32 0.0, %v3587
        %v3589 = vpop.f32.mrb[0].mxu0
        %3590 = vmatprep.mubr.f32.mxu0 0.0
        %3591 = vmatmul.mubr.f32.gmra.mrb[0].mxu0 %v3378
        %v3592 = vpop.f32.mrb[0].mxu0
        %v3593 = vadd.f32 0.0, %v3592
        %v3594 = vpop.f32.mrb[0].mxu0
        %3595 = vmatprep.mubr.f32.mxu0 0.0
        %3596 = vmatmul.mubr.f32.gmra.mrb[0].mxu0 %v3381
        %v3597 = vpop.f32.mrb[0].mxu0
        %v3598 = vadd.f32 0.0, %v3597
        %v3599 = vpop.f32.mrb[0].mxu0
        %3600 = vmatprep.mubr.f32.mxu0 0.0
        %3601 = vmatmul.mubr.f32.gmra.mrb[0].mxu0 %v3384
        %v3602 = vpop.f32.mrb[0].mxu0
        %v3603 = vadd.f32 0.0, %v3602
        %v3604 = vpop.f32.mrb[0].mxu0
        %3605 = vmatprep.mubr.f32.mxu0 0.0
        %3606 = vmatmul.mubr.f32.gmra.mrb[0].mxu0 %v3387
        %v3607 = vpop.f32.mrb[0].mxu0
        %v3608 = vadd.f32 0.0, %v3607
        %v3609 = vpop.f32.mrb[0].mxu0
        %3610 = vmatprep.mubr.f32.mxu0 0.0
        %3611 = vmatmul.mubr.f32.gmra.mrb[0].mxu0 %v3390
        %v3612 = vpop.f32.mrb[0].mxu0
        %v3613 = vadd.f32 0.0, %v3612
        %v3614 = vpop.f32.mrb[0].mxu0
        %3615 = vmatprep.mubr.f32.mxu0 0.0
        %3616 = vmatmul.mubr.f32.gmra.mrb[0].mxu0 %v3393
        %v3617 = vpop.f32.mrb[0].mxu0
        %v3618 = vadd.f32 0.0, %v3617
        %v3619 = vpop.f32.mrb[0].mxu0
        %3620 = vmatprep.mubr.f32.mxu0 0.0
        %3621 = vmatmul.mubr.f32.gmra.mrb[0].mxu0 %v3396
        %v3622 = vpop.f32.mrb[0].mxu0
        %v3623 = vadd.f32 0.0, %v3622
        %v3624 = vpop.f32.mrb[0].mxu0
        %3625 = vdwg.mxu0
        %v3626 = vadd.f32 %v3236, %v3468
        %v3627 = vadd.f32 %v3237, %v3473
        %v3628 = vadd.f32 %v3238, %v3478
        %v3629 = vadd.f32 %v3239, %v3483
        %v3630 = vadd.f32 %v3240, %v3488
        %v3631 = vadd.f32 %v3241, %v3493
        %v3632 = vadd.f32 %v3242, %v3498
        %v3633 = vadd.f32 %v3243, %v3503
        %v3634 = vadd.f32 %v3244, %v3508
        %v3635 = vadd.f32 %v3245, %v3513
        %v3636 = vadd.f32 %v3246, %v3518
        %v3637 = vadd.f32 %v3247, %v3523
        %v3638 = vadd.f32 %v3248, %v3528
        %v3639 = vadd.f32 %v3249, %v3533
        %v3640 = vadd.f32 %v3250, %v3538
        %v3641 = vadd.f32 %v3251, %v3543
        %v3642 = vadd.f32 %v3252, %v3548
        %v3643 = vadd.f32 %v3253, %v3553
        %v3644 = vadd.f32 %v3254, %v3558
        %v3645 = vadd.f32 %v3255, %v3563
        %v3646 = vadd.f32 %v3256, %v3568
        %v3647 = vadd.f32 %v3257, %v3573
        %v3648 = vadd.f32 %v3258, %v3578
        %v3649 = vadd.f32 %v3259, %v3583
        %v3650 = vadd.f32 %v3260, %v3588
        %v3651 = vadd.f32 %v3261, %v3593
        %v3652 = vadd.f32 %v3262, %v3598
        %v3653 = vadd.f32 %v3263, %v3603
        %v3654 = vadd.f32 %v3264, %v3608
        %v3655 = vadd.f32 %v3265, %v3613
        %v3656 = vadd.f32 %v3266, %v3618
        %v3657 = vadd.f32 %v3267, %v3623
        %v3658 = vld [vmem:[%s2] sm:$0x1]
        %v3660 = vlaneseq
        %v3661 = vshrl.u32 %v3660, 7
        %v3662 = vsub.s32 0, %v3661
        %v3663 = vrot.slane %v3658, %v3662
        %v3665 = vadd.f32 %v3626, %v3663
        %v3666 = vadd.f32 %v3627, %v3663
        %v3667 = vadd.f32 %v3628, %v3663
        %v3668 = vadd.f32 %v3629, %v3663
        %v3669 = vadd.f32 %v3630, %v3663
        %v3670 = vadd.f32 %v3631, %v3663
        %v3671 = vadd.f32 %v3632, %v3663
        %v3672 = vadd.f32 %v3633, %v3663
        %v3673 = vadd.f32 %v3634, %v3663
        %v3674 = vadd.f32 %v3635, %v3663
        %v3675 = vadd.f32 %v3636, %v3663
        %v3676 = vadd.f32 %v3637, %v3663
        %v3677 = vadd.f32 %v3638, %v3663
        %v3678 = vadd.f32 %v3639, %v3663
        %v3679 = vadd.f32 %v3640, %v3663
        %v3680 = vadd.f32 %v3641, %v3663
        %v3681 = vadd.f32 %v3642, %v3663
        %v3682 = vadd.f32 %v3643, %v3663
        %v3683 = vadd.f32 %v3644, %v3663
        %v3684 = vadd.f32 %v3645, %v3663
        %v3685 = vadd.f32 %v3646, %v3663
        %v3686 = vadd.f32 %v3647, %v3663
        %v3687 = vadd.f32 %v3648, %v3663
        %v3688 = vadd.f32 %v3649, %v3663
        %v3689 = vadd.f32 %v3650, %v3663
        %v3690 = vadd.f32 %v3651, %v3663
        %v3691 = vadd.f32 %v3652, %v3663
        %v3692 = vadd.f32 %v3653, %v3663
        %v3693 = vadd.f32 %v3654, %v3663
        %v3694 = vadd.f32 %v3655, %v3663
        %v3695 = vadd.f32 %v3656, %v3663
        %v3696 = vadd.f32 %v3657, %v3663
        %vm3697 = vcmask 64512
        %3698 = vst.msk [vmem:[%s208] sm:$0xff] %vm3697, %v3665
        %3699 = vst.msk [vmem:[%s208 + $0x8] sm:$0xff] %vm3697, %v3666
        %3700 = vst.msk [vmem:[%s208 + $0x10] sm:$0xff] %vm3697, %v3667
        %3701 = vst.msk [vmem:[%s208 + $0x18] sm:$0xff] %vm3697, %v3668
        %3702 = vst.msk [vmem:[%s208 + $0x20] sm:$0xff] %vm3697, %v3669
        %3703 = vst.msk [vmem:[%s208 + $0x28] sm:$0xff] %vm3697, %v3670
        %3704 = vst.msk [vmem:[%s208 + $0x30] sm:$0xff] %vm3697, %v3671
        %3705 = vst.msk [vmem:[%s208 + $0x38] sm:$0xff] %vm3697, %v3672
        %3706 = vst.msk [vmem:[%s208 + $0x40] sm:$0xff] %vm3697, %v3673
        %3707 = vst.msk [vmem:[%s208 + $0x48] sm:$0xff] %vm3697, %v3674
        %3708 = vst.msk [vmem:[%s208 + $0x50] sm:$0xff] %vm3697, %v3675
        %3709 = vst.msk [vmem:[%s208 + $0x58] sm:$0xff] %vm3697, %v3676
        %3710 = vst.msk [vmem:[%s208 + $0x60] sm:$0xff] %vm3697, %v3677
        %3711 = vst.msk [vmem:[%s208 + $0x68] sm:$0xff] %vm3697, %v3678
        %3712 = vst.msk [vmem:[%s208 + $0x70] sm:$0xff] %vm3697, %v3679
        %3713 = vst.msk [vmem:[%s208 + $0x78] sm:$0xff] %vm3697, %v3680
        %3714 = vst.msk [vmem:[%s208 + $0x80] sm:$0xff] %vm3697, %v3681
        %3715 = vst.msk [vmem:[%s208 + $0x88] sm:$0xff] %vm3697, %v3682
        %3716 = vst.msk [vmem:[%s208 + $0x90] sm:$0xff] %vm3697, %v3683
        %3717 = vst.msk [vmem:[%s208 + $0x98] sm:$0xff] %vm3697, %v3684
        %3718 = vst.msk [vmem:[%s208 + $0xa0] sm:$0xff] %vm3697, %v3685
        %3719 = vst.msk [vmem:[%s208 + $0xa8] sm:$0xff] %vm3697, %v3686
        %3720 = vst.msk [vmem:[%s208 + $0xb0] sm:$0xff] %vm3697, %v3687
        %3721 = vst.msk [vmem:[%s208 + $0xb8] sm:$0xff] %vm3697, %v3688
        %3722 = vst.msk [vmem:[%s208 + $0xc0] sm:$0xff] %vm3697, %v3689
        %3723 = vst.msk [vmem:[%s208 + $0xc8] sm:$0xff] %vm3697, %v3690
        %3724 = vst.msk [vmem:[%s208 + $0xd0] sm:$0xff] %vm3697, %v3691
        %3725 = vst.msk [vmem:[%s208 + $0xd8] sm:$0xff] %vm3697, %v3692
        %3726 = vst.msk [vmem:[%s208 + $0xe0] sm:$0xff] %vm3697, %v3693
        %3727 = vst.msk [vmem:[%s208 + $0xe8] sm:$0xff] %vm3697, %v3694
        %3728 = vst.msk [vmem:[%s208 + $0xf0] sm:$0xff] %vm3697, %v3695
        %3729 = vst.msk [vmem:[%s208 + $0xf8] sm:$0xff] %vm3697, %v3696
        %v3730 = vsel %vm3697, %v3665, 0.0
        %v3731 = vsel %vm3697, %v3666, 0.0
        %v3732 = vadd.f32 %v3730, %v3731
        %v3733 = vsel %vm3697, %v3667, 0.0
        %v3734 = vadd.f32 %v3732, %v3733
        %v3735 = vsel %vm3697, %v3668, 0.0
        %v3736 = vadd.f32 %v3734, %v3735
        %v3737 = vsel %vm3697, %v3669, 0.0
        %v3738 = vadd.f32 %v3736, %v3737
        %v3739 = vsel %vm3697, %v3670, 0.0
        %v3740 = vadd.f32 %v3738, %v3739
        %v3741 = vsel %vm3697, %v3671, 0.0
        %v3742 = vadd.f32 %v3740, %v3741
        %v3743 = vsel %vm3697, %v3672, 0.0
        %v3744 = vadd.f32 %v3742, %v3743
        %v3745 = vsel %vm3697, %v3673, 0.0
        %v3746 = vadd.f32 %v3744, %v3745
        %v3747 = vsel %vm3697, %v3674, 0.0
        %v3748 = vadd.f32 %v3746, %v3747
        %v3749 = vsel %vm3697, %v3675, 0.0
        %v3750 = vadd.f32 %v3748, %v3749
        %v3751 = vsel %vm3697, %v3676, 0.0
        %v3752 = vadd.f32 %v3750, %v3751
        %v3753 = vsel %vm3697, %v3677, 0.0
        %v3754 = vadd.f32 %v3752, %v3753
        %v3755 = vsel %vm3697, %v3678, 0.0
        %v3756 = vadd.f32 %v3754, %v3755
        %v3757 = vsel %vm3697, %v3679, 0.0
        %v3758 = vadd.f32 %v3756, %v3757
        %v3759 = vsel %vm3697, %v3680, 0.0
        %v3760 = vadd.f32 %v3758, %v3759
        %v3761 = vsel %vm3697, %v3681, 0.0
        %v3762 = vadd.f32 %v3760, %v3761
        %v3763 = vsel %vm3697, %v3682, 0.0
        %v3764 = vadd.f32 %v3762, %v3763
        %v3765 = vsel %vm3697, %v3683, 0.0
        %v3766 = vadd.f32 %v3764, %v3765
        %v3767 = vsel %vm3697, %v3684, 0.0
        %v3768 = vadd.f32 %v3766, %v3767
        %v3769 = vsel %vm3697, %v3685, 0.0
        %v3770 = vadd.f32 %v3768, %v3769
        %v3771 = vsel %vm3697, %v3686, 0.0
        %v3772 = vadd.f32 %v3770, %v3771
        %v3773 = vsel %vm3697, %v3687, 0.0
        %v3774 = vadd.f32 %v3772, %v3773
        %v3775 = vsel %vm3697, %v3688, 0.0
        %v3776 = vadd.f32 %v3774, %v3775
        %v3777 = vsel %vm3697, %v3689, 0.0
        %v3778 = vadd.f32 %v3776, %v3777
        %v3779 = vsel %vm3697, %v3690, 0.0
        %v3780 = vadd.f32 %v3778, %v3779
        %v3781 = vsel %vm3697, %v3691, 0.0
        %v3782 = vadd.f32 %v3780, %v3781
        %v3783 = vsel %vm3697, %v3692, 0.0
        %v3784 = vadd.f32 %v3782, %v3783
        %v3785 = vsel %vm3697, %v3693, 0.0
        %v3786 = vadd.f32 %v3784, %v3785
        %v3787 = vsel %vm3697, %v3694, 0.0
        %v3788 = vadd.f32 %v3786, %v3787
        %v3789 = vsel %vm3697, %v3695, 0.0
        %v3790 = vadd.f32 %v3788, %v3789
        %v3791 = vsel %vm3697, %v3696, 0.0
        %v3792 = vadd.f32 %v3790, %v3791
        %v3793 = vrot.slane %v3792, 4
        %v3794 = vadd.f32 %v3792, %v3793
        %v3795 = vrot.slane %v3794, 2
        %v3796 = vadd.f32 %v3794, %v3795
        %v3797 = vrot.slane %v3796, 1
        %v3798 = vadd.f32 %v3796, %v3797
        %v3799 = vmul.f32 %v3665, %v3665
        %v3800 = vmul.f32 %v3666, %v3666
        %v3801 = vmul.f32 %v3667, %v3667
        %v3802 = vmul.f32 %v3668, %v3668
        %v3803 = vmul.f32 %v3669, %v3669
        %v3804 = vmul.f32 %v3670, %v3670
        %v3805 = vmul.f32 %v3671, %v3671
        %v3806 = vmul.f32 %v3672, %v3672
        %v3807 = vmul.f32 %v3673, %v3673
        %v3808 = vmul.f32 %v3674, %v3674
        %v3809 = vmul.f32 %v3675, %v3675
        %v3810 = vmul.f32 %v3676, %v3676
        %v3811 = vmul.f32 %v3677, %v3677
        %v3812 = vmul.f32 %v3678, %v3678
        %v3813 = vmul.f32 %v3679, %v3679
        %v3814 = vmul.f32 %v3680, %v3680
        %v3815 = vmul.f32 %v3681, %v3681
        %v3816 = vmul.f32 %v3682, %v3682
        %v3817 = vmul.f32 %v3683, %v3683
        %v3818 = vmul.f32 %v3684, %v3684
        %v3819 = vmul.f32 %v3685, %v3685
        %v3820 = vmul.f32 %v3686, %v3686
        %v3821 = vmul.f32 %v3687, %v3687
        %v3822 = vmul.f32 %v3688, %v3688
        %v3823 = vmul.f32 %v3689, %v3689
        %v3824 = vmul.f32 %v3690, %v3690
        %v3825 = vmul.f32 %v3691, %v3691
        %v3826 = vmul.f32 %v3692, %v3692
        %v3827 = vmul.f32 %v3693, %v3693
        %v3828 = vmul.f32 %v3694, %v3694
        %v3829 = vmul.f32 %v3695, %v3695
        %v3830 = vmul.f32 %v3696, %v3696
        %v3831 = vsel %vm3697, %v3799, 0.0
        %v3832 = vsel %vm3697, %v3800, 0.0
        %v3833 = vadd.f32 %v3831, %v3832
        %v3834 = vsel %vm3697, %v3801, 0.0
        %v3835 = vadd.f32 %v3833, %v3834
        %v3836 = vsel %vm3697, %v3802, 0.0
        %v3837 = vadd.f32 %v3835, %v3836
        %v3838 = vsel %vm3697, %v3803, 0.0
        %v3839 = vadd.f32 %v3837, %v3838
        %v3840 = vsel %vm3697, %v3804, 0.0
        %v3841 = vadd.f32 %v3839, %v3840
        %v3842 = vsel %vm3697, %v3805, 0.0
        %v3843 = vadd.f32 %v3841, %v3842
        %v3844 = vsel %vm3697, %v3806, 0.0
        %v3845 = vadd.f32 %v3843, %v3844
        %v3846 = vsel %vm3697, %v3807, 0.0
        %v3847 = vadd.f32 %v3845, %v3846
        %v3848 = vsel %vm3697, %v3808, 0.0
        %v3849 = vadd.f32 %v3847, %v3848
        %v3850 = vsel %vm3697, %v3809, 0.0
        %v3851 = vadd.f32 %v3849, %v3850
        %v3852 = vsel %vm3697, %v3810, 0.0
        %v3853 = vadd.f32 %v3851, %v3852
        %v3854 = vsel %vm3697, %v3811, 0.0
        %v3855 = vadd.f32 %v3853, %v3854
        %v3856 = vsel %vm3697, %v3812, 0.0
        %v3857 = vadd.f32 %v3855, %v3856
        %v3858 = vsel %vm3697, %v3813, 0.0
        %v3859 = vadd.f32 %v3857, %v3858
        %v3860 = vsel %vm3697, %v3814, 0.0
        %v3861 = vadd.f32 %v3859, %v3860
        %v3862 = vsel %vm3697, %v3815, 0.0
        %v3863 = vadd.f32 %v3861, %v3862
        %v3864 = vsel %vm3697, %v3816, 0.0
        %v3865 = vadd.f32 %v3863, %v3864
        %v3866 = vsel %vm3697, %v3817, 0.0
        %v3867 = vadd.f32 %v3865, %v3866
        %v3868 = vsel %vm3697, %v3818, 0.0
        %v3869 = vadd.f32 %v3867, %v3868
        %v3870 = vsel %vm3697, %v3819, 0.0
        %v3871 = vadd.f32 %v3869, %v3870
        %v3872 = vsel %vm3697, %v3820, 0.0
        %v3873 = vadd.f32 %v3871, %v3872
        %v3874 = vsel %vm3697, %v3821, 0.0
        %v3875 = vadd.f32 %v3873, %v3874
        %v3876 = vsel %vm3697, %v3822, 0.0
        %v3877 = vadd.f32 %v3875, %v3876
        %v3878 = vsel %vm3697, %v3823, 0.0
        %v3879 = vadd.f32 %v3877, %v3878
        %v3880 = vsel %vm3697, %v3824, 0.0
        %v3881 = vadd.f32 %v3879, %v3880
        %v3882 = vsel %vm3697, %v3825, 0.0
        %v3883 = vadd.f32 %v3881, %v3882
        %v3884 = vsel %vm3697, %v3826, 0.0
        %v3885 = vadd.f32 %v3883, %v3884
        %v3886 = vsel %vm3697, %v3827, 0.0
        %v3887 = vadd.f32 %v3885, %v3886
        %v3888 = vsel %vm3697, %v3828, 0.0
        %v3889 = vadd.f32 %v3887, %v3888
        %v3890 = vsel %vm3697, %v3829, 0.0
        %v3891 = vadd.f32 %v3889, %v3890
        %v3892 = vsel %vm3697, %v3830, 0.0
        %v3893 = vadd.f32 %v3891, %v3892
        %v3894 = vrot.slane %v3893, 4
        %v3895 = vadd.f32 %v3893, %v3894
        %v3896 = vrot.slane %v3895, 2
        %v3897 = vadd.f32 %v3895, %v3896
        %v3898 = vrot.slane %v3897, 1
        %v3899 = vadd.f32 %v3897, %v3898
        %vm3900 = vcmask 1040384
        %v3901 = vsel %vm3900, %v3798, %v3899
        %vm3902 = vcmask 58368
        %3903 = vst.msk [vmem:[%s198] sm:$0x3] %vm3902, %v3901
        %p3904 = scmp.lt.s32.totalorder %s19, 1
        %s3905 = scalar_select %p3904, %s19, 1
        %s3906 = smul.addr %s3905, 32
        %s3907 = smul.addr %s3906, 8
        %s3908 = scalar_lea.vmem %s3, %s3907
        %s3909 = sand.u32 %s121, 1
        %s3910 = scalar_lea.sflag [#allocation3], %s3909
        %s3911 = sand.u32 %s121, 1
        %s3912 = smul.addr %s3911, 2
        %s3913 = scalar_lea.vmem [#allocation2], %s3912
        // Predicated region
        $region33: #{tpu_custom_call.1} parent=31 // pred_check
          %p3914 = pneg %p105
        $region34: #{tpu_custom_call.1} parent=31 // pred_check_branch
          %3916 = sbr.rel (%p3914) target = $region36
        $region35: #{tpu_custom_call.1} parent=31 // pred_region
          _
        $region36: #{tpu_custom_call.1} parent=31 // pred_fallthru
          _
        // Predicated region
        $region37: #{tpu_custom_call.1} parent=31 // pred_check
          %p3917 = pneg %p131
        $region38: #{tpu_custom_call.1} parent=31 // pred_check_branch
          %3919 = sbr.rel (%p3917) target = $region40
        $region39: #{tpu_custom_call.1} parent=31 // pred_region
          %s3921 = ssub.s32 32, 32
          %3922 = vsyncadd %s3910, %s3921
          %s3923 = smul.addr %s19, 32
          %s3924 = scalar_lea.hbm %s4, %s3923
          %s3926 = sshll.u32 %s3913, 4
          %s3927 = int_to_ptr.vmem [resolvable:$true] %s3926
          %3929 = dma.vmem_to_hbm [thread:$0]  %s3927, 32, %s3924, %s3910
        $region40: #{tpu_custom_call.1} parent=31 // pred_fallthru
          _
      $region32: #{tpu_custom_call.1} parent=5 // pred_fallthru
        _
      %p3930 = scmp.le.s32.totalorder 2, %s14
      // Predicated region
      $region41: #{tpu_custom_call.1} parent=5 // pred_check
        %p3931 = pneg %p3930
      $region42: #{tpu_custom_call.1} parent=5 // pred_check_branch
        %3933 = sbr.rel (%p3931) target = $region44
      $region43: #{tpu_custom_call.1} parent=5 // pred_region
        %s3934 = ssub.s32 %s14, 2
        // Predicated region
        $region45: #{tpu_custom_call.1} parent=43 // pred_check
          %p3935 = pneg %p111
        $region46: #{tpu_custom_call.1} parent=43 // pred_check_branch
          %3937 = sbr.rel (%p3935) target = $region48
        $region47: #{tpu_custom_call.1} parent=43 // pred_region
          %p3938 = scmp.lt.s32.totalorder %s20, 1
          %s3939 = scalar_select %p3938, %s20, 1
          %s3940 = smul.addr %s3939, 32
          %s3941 = smul.addr %s3940, 8
          %s3942 = scalar_lea.vmem %s3, %s3941
        $region48: #{tpu_custom_call.1} parent=43 // pred_fallthru
          _
        // Predicated region
        $region49: #{tpu_custom_call.1} parent=43 // pred_check
          %p3943 = pneg %p137
        $region50: #{tpu_custom_call.1} parent=43 // pred_check_branch
          %3945 = sbr.rel (%p3943) target = $region52
        $region51: #{tpu_custom_call.1} parent=43 // pred_region
          %s3946 = sand.u32 %s122, 1
          %s3947 = scalar_lea.sflag [#allocation3], %s3946
          %s3948 = sand.u32 %s122, 1
          %s3949 = smul.addr %s3948, 2
          %s3950 = scalar_lea.vmem [#allocation2], %s3949
          %3951 = dma.done %s3947, 32
        $region52: #{tpu_custom_call.1} parent=43 // pred_fallthru
          _
      $region44: #{tpu_custom_call.1} parent=5 // pred_fallthru
        _
    $region6: #{tpu_custom_call.1} parent=1 // loop_footer
      %s18 = sadd.s32 1, %s14
    $region7: #{tpu_custom_call.1} parent=1 // loop_footer_branch
      %13 = sbr.rel target = $region3
    $region8: #{tpu_custom_call.1} parent=1 // loop_exit
      _
    %3952 = vsyncpa [#allocation3], 1
    %s3953 = scalar_lea.sflag [#allocation3], 1
    %3954 = vsyncpa %s3953, 1

</llo_original>
